<compile_context>
chip_gen: v5e
topology: v5e:2x2
jax: 0.10.0
libtpu: 0.0.40
codegen_flags: <defaults>
</compile_context>

<pallas_src>
import functools

import jax
import jax.numpy as jnp
from jax.experimental import pallas as pl
from jax.experimental.pallas import tpu as pltpu

_BF16 = jnp.bfloat16
_F32 = jnp.float32


def _vmem_limit_bytes(frac=0.75, fallback=48 * 1024 * 1024):
    """~75% of physical VMEM: ~96 MiB on v5e/v6e (128 MiB), ~48 MiB on v7x (64 MiB)."""
    try:
        info = pltpu.get_tpu_info()
        cap = getattr(info, "vmem_capacity_bytes", None)
        if cap:
            return int(cap * frac)
    except Exception:
        pass
    return fallback


# --------------------------------------------------------------------------- #
# Kernel 1: fused per-head Q/K/V projection (scale folded into Q)             #
# --------------------------------------------------------------------------- #
def qkv_project_kernel(x_ref, wq_ref, bq_ref, wk_ref, bk_ref, wv_ref, bv_ref,
                       q_ref, k_ref, v_ref):
    x = x_ref[0]                       # (TR, D) bf16
    n_heads = q_ref.shape[1]
    # Static per-head loop: each matmul writes exactly one (TR, hs) head slab,
    # avoiding any lane-offset slicing of a (TR, D) result.  One-time cost.
    for h in range(n_heads):
        q = jnp.dot(x, wq_ref[h], preferred_element_type=_F32) + bq_ref[h]
        k = jnp.dot(x, wk_ref[h], preferred_element_type=_F32) + bk_ref[h]
        v = jnp.dot(x, wv_ref[h], preferred_element_type=_F32) + bv_ref[h]
        q_ref[0, h] = q.astype(_BF16)
        k_ref[0, h] = k.astype(_BF16)
        v_ref[0, h] = v.astype(_BF16)


# --------------------------------------------------------------------------- #
# Kernel 2: flash attention (all heads per step) + output proj + residual+LN1 #
# --------------------------------------------------------------------------- #
def attention_ln1_kernel(nkv_ref,                      # scalar prefetch: (B,) int32
                         xres_ref, q_ref, k_ref, v_ref, mask_ref,
                         wo_ref, bo_ref, g1_ref, be1_ref,
                         h1_ref,
                         m_sc, l_sc, ctx_sc, *, eps):
    b = pl.program_id(0)
    ki = pl.program_id(2)
    n_kv = pl.num_programs(2)

    @pl.when(ki == 0)
    def _init():
        m_sc[...] = jnp.full(m_sc.shape, -jnp.inf, _F32)
        l_sc[...] = jnp.zeros(l_sc.shape, _F32)
        ctx_sc[...] = jnp.zeros(ctx_sc.shape, _F32)

    # Skip kv blocks that lie entirely past the last un-masked key of this
    # batch row (their contribution in the -1e18 reference underflows to 0).
    @pl.when(ki < nkv_ref[b])
    def _step():
        q = q_ref[0]                   # (H, TQ,  hs) bf16, 1/sqrt(hs) pre-folded
        k = k_ref[0]                   # (H, TKV, hs) bf16
        v = v_ref[0]                   # (H, TKV, hs) bf16

        # NT-form batched matmul: contracts the minor hs dim of both operands,
        # so no explicit transpose/relayout of K is materialized.
        s = jnp.einsum("hqd,hkd->hqk", q, k,
                       preferred_element_type=_F32)          # (H, TQ, TKV) f32
        key_masked = mask_ref[...] == 0.0                     # (1, 1, TKV)
        s = jnp.where(key_masked, jnp.float32(-1e18), s)

        m_prev = m_sc[...]
        m_new = jnp.maximum(m_prev, s.max(axis=-1, keepdims=True))
        alpha = jnp.exp(m_prev - m_new)
        p = jnp.exp(s - m_new)                                # f32 probs
        l_sc[...] = alpha * l_sc[...] + p.sum(axis=-1, keepdims=True)
        ctx_sc[...] = alpha * ctx_sc[...] + jnp.einsum(
            "hqk,hkd->hqd", p.astype(_BF16), v, preferred_element_type=_F32)
        m_sc[...] = m_new

    # Epilogue once per (batch, q-block): normalize, output projection over all
    # heads, bias, residual, LayerNorm1.
    @pl.when(ki == n_kv - 1)
    def _finalize():
        ctx = (ctx_sc[...] * pl.reciprocal(l_sc[...], approx=True)).astype(_BF16)
        n_heads = ctx_sc.shape[0]
        acc = jnp.dot(ctx[0], wo_ref[0], preferred_element_type=_F32)  # (TQ, D)
        for h in range(1, n_heads):
            acc = acc + jnp.dot(ctx[h], wo_ref[h], preferred_element_type=_F32)

        attn = acc + bo_ref[...] + xres_ref[0]                # residual in f32
        mu = jnp.mean(attn, axis=-1, keepdims=True)
        var = jnp.mean((attn - mu) ** 2, axis=-1, keepdims=True)
        h1_ref[0] = ((attn - mu) * jax.lax.rsqrt(var + eps) * g1_ref[...]
                     + be1_ref[...]).astype(h1_ref.dtype)


# --------------------------------------------------------------------------- #
# Kernel 3: position-wise FFN + residual + LayerNorm2                         #
# --------------------------------------------------------------------------- #
def ffn_ln2_kernel(h1_ref, w1_ref, b1_ref, w2_ref, b2_ref, g2_ref, be2_ref,
                   out_ref, *, eps):
    h1 = h1_ref[0]                                            # (TR, D) f32
    f = jnp.dot(h1.astype(_BF16), w1_ref[...],
                preferred_element_type=_F32) + b1_ref[...]
    f = jnp.maximum(f, 0.0)
    f = jnp.dot(f.astype(_BF16), w2_ref[...],
                preferred_element_type=_F32) + b2_ref[...]
    o = f + h1
    mu = jnp.mean(o, axis=-1, keepdims=True)
    var = jnp.mean((o - mu) ** 2, axis=-1, keepdims=True)
    out_ref[0] = ((o - mu) * jax.lax.rsqrt(var + eps) * g2_ref[...]
                  + be2_ref[...]).astype(out_ref.dtype)


# --------------------------------------------------------------------------- #
# Wrapper                                                                     #
# --------------------------------------------------------------------------- #
def encoder_block(x, mask, params, *, n_heads, eps=1e-5,
                  block_q=256, block_kv=256, block_rows=256):
    """x: (B, S, D) float32, mask: (B, S) (1 keep / 0 masked key). Eval forward."""
    B, S, D = x.shape
    assert D % n_heads == 0
    hs = D // n_heads
    H = n_heads

    tq = min(block_q, S)
    tkv = min(block_kv, S)
    tr = min(block_rows, S)
    assert S % tq == 0 and (tq % 8 == 0 or tq == S)
    assert S % tkv == 0 and (tkv % 128 == 0 or tkv == S)
    assert S % tr == 0 and (tr % 8 == 0 or tr == S)

    vmem_limit = _vmem_limit_bytes()
    bf16, f32 = _BF16, _F32

    # -------- one-time parameter prep (weights assumed (in, out) layout) -----
    inv_sqrt_hs = 1.0 / float(hs) ** 0.5

    def heads_in(w, scale=1.0):    # (D, D) -> (H, D, hs) bf16
        return (jnp.transpose(w.reshape(D, H, hs), (1, 0, 2)) * scale).astype(bf16)

    def heads_bias(b, scale=1.0):  # (D,) -> (H, 1, hs) f32
        return (b.reshape(H, 1, hs) * scale).astype(f32)

    def row(v):                    # (N,) -> (1, N) f32
        return v.reshape(1, -1).astype(f32)

    wq = heads_in(params["wq"], inv_sqrt_hs)      # score scale folded into Q
    bq = heads_bias(params["bq"], inv_sqrt_hs)
    wk, bk = heads_in(params["wk"]), heads_bias(params["bk"])
    wv, bv = heads_in(params["wv"]), heads_bias(params["bv"])
    wo = params["wo"].reshape(H, hs, D).astype(bf16)          # per-head rows of W_o
    bo = row(params["bo"])
    g1, be1 = row(params["ln1_g"]), row(params["ln1_b"])
    w1, b1 = params["w1"].astype(bf16), row(params["b1"])
    w2, b2 = params["w2"].astype(bf16), row(params["b2"])
    g2, be2 = row(params["ln2_g"]), row(params["ln2_b"])

    x_bf = x.astype(bf16)                 # bf16 projection stream (half HBM bytes)
    mask3 = mask.reshape(B, 1, S).astype(f32)

    # Per-batch count of kv blocks that contain at least one un-masked key
    # (suffix padding beyond this contributes exactly 0 in the -1e18 reference).
    mask_pos = mask.reshape(B, S) != 0
    any_valid = jnp.any(mask_pos, axis=-1)
    last_plus1 = jnp.where(any_valid, S - jnp.argmax(mask_pos[:, ::-1], axis=-1), 1)
    nkv = jnp.maximum((last_plus1 + tkv - 1) // tkv, 1).astype(jnp.int32)   # (B,)

    # ---------------- kernel 1: per-head Q/K/V projection --------------------
    whead_spec = pl.BlockSpec((H, D, hs), lambda b_, si: (0, 0, 0))
    bhead_spec = pl.BlockSpec((H, 1, hs), lambda b_, si: (0, 0, 0))
    qkv_out_spec = pl.BlockSpec((1, H, tr, hs), lambda b_, si: (b_, 0, si, 0))

    q_h, k_h, v_h = pl.pallas_call(
        qkv_project_kernel,
        out_shape=tuple(jax.ShapeDtypeStruct((B, H, S, hs), bf16) for _ in range(3)),
        grid_spec=pltpu.PrefetchScalarGridSpec(
            num_scalar_prefetch=0,
            grid=(B, S // tr),
            in_specs=[
                pl.BlockSpec((1, tr, D), lambda b_, si: (b_, si, 0)),
                whead_spec, bhead_spec, whead_spec, bhead_spec, whead_spec, bhead_spec,
            ],
            out_specs=(qkv_out_spec, qkv_out_spec, qkv_out_spec),
        ),
        compiler_params=pltpu.CompilerParams(
            dimension_semantics=("parallel", "parallel"),
            vmem_limit_bytes=vmem_limit),
    )(x_bf, wq, bq, wk, bk, wv, bv)

    # ---------------- kernel 2: flash attention + residual + LN1 -------------
    def kv_map(b_, qi, ki, nkv_ref):
        # Clamp the kv block index for padded batches: the block index does not
        # change on skipped steps, so Pallas issues no DMA for them.
        return (b_, 0, jnp.minimum(ki, nkv_ref[b_] - 1), 0)

    def mask_map(b_, qi, ki, nkv_ref):
        return (b_, 0, jnp.minimum(ki, nkv_ref[b_] - 1))

    h1 = pl.pallas_call(
        functools.partial(attention_ln1_kernel, eps=eps),
        out_shape=jax.ShapeDtypeStruct((B, S, D), f32),
        grid_spec=pltpu.PrefetchScalarGridSpec(
            num_scalar_prefetch=1,
            grid=(B, S // tq, S // tkv),
            in_specs=[
                pl.BlockSpec((1, tq, D), lambda b_, qi, ki, n: (b_, qi, 0)),       # residual x (f32)
                pl.BlockSpec((1, H, tq, hs), lambda b_, qi, ki, n: (b_, 0, qi, 0)),  # Q (scaled, bf16)
                pl.BlockSpec((1, H, tkv, hs), kv_map),                              # K
                pl.BlockSpec((1, H, tkv, hs), kv_map),                              # V
                pl.BlockSpec((1, 1, tkv), mask_map),                                # key mask
                pl.BlockSpec((H, hs, D), lambda b_, qi, ki, n: (0, 0, 0)),          # W_o (per head)
                pl.BlockSpec((1, D), lambda b_, qi, ki, n: (0, 0)),                 # b_o
                pl.BlockSpec((1, D), lambda b_, qi, ki, n: (0, 0)),                 # ln1 gamma
                pl.BlockSpec((1, D), lambda b_, qi, ki, n: (0, 0)),                 # ln1 beta
            ],
            out_specs=pl.BlockSpec((1, tq, D), lambda b_, qi, ki, n: (b_, qi, 0)),
            scratch_shapes=[
                pltpu.VMEM((H, tq, 1), f32),     # running max  m
                pltpu.VMEM((H, tq, 1), f32),     # running sum  l
                pltpu.VMEM((H, tq, hs), f32),    # unnormalized context
            ],
        ),
        compiler_params=pltpu.CompilerParams(
            dimension_semantics=("parallel", "parallel", "arbitrary"),
            vmem_limit_bytes=vmem_limit),
    )(nkv, x, q_h, k_h, v_h, mask3, wo, bo, g1, be1)

    # ---------------- kernel 3: FFN + residual + LN2 -------------------------
    out = pl.pallas_call(
        functools.partial(ffn_ln2_kernel, eps=eps),
        out_shape=jax.ShapeDtypeStruct((B, S, D), x.dtype),
        grid_spec=pltpu.PrefetchScalarGridSpec(
            num_scalar_prefetch=0,
            grid=(B, S // tr),
            in_specs=[
                pl.BlockSpec((1, tr, D), lambda b_, si: (b_, si, 0)),
                pl.BlockSpec(w1.shape, lambda b_, si: (0, 0)),
                pl.BlockSpec(b1.shape, lambda b_, si: (0, 0)),
                pl.BlockSpec(w2.shape, lambda b_, si: (0, 0)),
                pl.BlockSpec(b2.shape, lambda b_, si: (0, 0)),
                pl.BlockSpec(g2.shape, lambda b_, si: (0, 0)),
                pl.BlockSpec(be2.shape, lambda b_, si: (0, 0)),
            ],
            out_specs=pl.BlockSpec((1, tr, D), lambda b_, si: (b_, si, 0)),
        ),
        compiler_params=pltpu.CompilerParams(
            dimension_semantics=("parallel", "parallel"),
            vmem_limit_bytes=vmem_limit),
    )(h1, w1, b1, w2, b2, g2, be2)
    return out


# ---------------------------- pure-JAX reference -----------------------------
def encoder_block_ref(x, mask, params, *, n_heads, eps=1e-5, mm_dtype=jnp.float32):
    """Reference. mm_dtype=bfloat16 mimics the kernel's MXU precision."""
    B, S, D = x.shape
    hs = D // n_heads
    c = lambda a: a.astype(mm_dtype)

    def mm(a, b):
        return jnp.dot(c(a), c(b), preferred_element_type=jnp.float32)

    q = mm(x, params["wq"]) + params["bq"]
    k = mm(x, params["wk"]) + params["bk"]
    v = mm(x, params["wv"]) + params["bv"]
    q = q.reshape(B, S, n_heads, hs).transpose(0, 2, 1, 3)
    k = k.reshape(B, S, n_heads, hs).transpose(0, 2, 1, 3)
    v = v.reshape(B, S, n_heads, hs).transpose(0, 2, 1, 3)
    s = jnp.einsum("bhqd,bhkd->bhqk", c(q), c(k),
                   preferred_element_type=jnp.float32) / jnp.sqrt(jnp.float32(hs))
    s = jnp.where(mask[:, None, None, :] == 0, -1e18, s)
    a = jax.nn.softmax(s, axis=-1)
    ctx = jnp.einsum("bhqk,bhkd->bhqd", c(a), c(v),
                     preferred_element_type=jnp.float32)
    ctx = ctx.transpose(0, 2, 1, 3).reshape(B, S, D)
    ctx = mm(ctx, params["wo"]) + params["bo"]

    def ln(a_, g, b_):
        mu = a_.mean(-1, keepdims=True)
        var = ((a_ - mu) ** 2).mean(-1, keepdims=True)
        return (a_ - mu) * jax.lax.rsqrt(var + eps) * g + b_

    h = ln(ctx + x, params["ln1_g"], params["ln1_b"])
    f = jnp.maximum(mm(h, params["w1"]) + params["b1"], 0.0)
    f = mm(f, params["w2"]) + params["b2"]
    return ln(f + h, params["ln2_g"], params["ln2_b"])


if __name__ == "__main__":
    # Small but tiling-exercising shapes at the default 256 tiles:
    # 2 q-blocks, 2 kv-blocks, 4 heads -> accumulation + kv-block-skip paths run.
    B, S, D, NH, HID = 2, 512, 128, 4, 256

    key = jax.random.PRNGKey(0)
    ks = jax.random.split(key, 16)
    sc = 0.1
    params = {
        "wq": jax.random.normal(ks[0], (D, D), jnp.float32) * sc,
        "bq": jax.random.normal(ks[1], (D,), jnp.float32) * sc,
        "wk": jax.random.normal(ks[2], (D, D), jnp.float32) * sc,
        "bk": jax.random.normal(ks[3], (D,), jnp.float32) * sc,
        "wv": jax.random.normal(ks[4], (D, D), jnp.float32) * sc,
        "bv": jax.random.normal(ks[5], (D,), jnp.float32) * sc,
        "wo": jax.random.normal(ks[6], (D, D), jnp.float32) * sc,
        "bo": jax.random.normal(ks[7], (D,), jnp.float32) * sc,
        "ln1_g": jnp.ones((D,), jnp.float32),
        "ln1_b": jnp.zeros((D,), jnp.float32),
        "w1": jax.random.normal(ks[8], (D, HID), jnp.float32) * sc,
        "b1": jax.random.normal(ks[9], (HID,), jnp.float32) * sc,
        "w2": jax.random.normal(ks[10], (HID, D), jnp.float32) * sc,
        "b2": jax.random.normal(ks[11], (D,), jnp.float32) * sc,
        "ln2_g": jnp.ones((D,), jnp.float32),
        "ln2_b": jnp.zeros((D,), jnp.float32),
    }

    x = jax.random.normal(ks[12], (B, S, D), jnp.float32)
    # Key-padding mask: 1 = attend, 0 = masked.  Batch 1 masks its last 300 key
    # positions so its second kv block (256 wide) is fully masked and gets
    # skipped via the scalar-prefetched per-batch kv-block count.
    mask = jnp.ones((B, S), jnp.float32).at[1, 212:].set(0.0)

    out = jax.block_until_ready(encoder_block(x, mask, params, n_heads=NH))
    assert out.shape == (B, S, D)

    # Compare against a precision-matched (bf16 matmul operands) reference.
    ref = encoder_block_ref(x, mask, params, n_heads=NH, mm_dtype=jnp.bfloat16)
    err = float(jnp.max(jnp.abs(out - ref)))
    assert err < 5e-2, err

    print("KERNEL_OK")
</pallas_src>

<mosaic_0001>
module attributes {stable_mosaic.version = 11 : i64} {
  func.func @qkv_project_kernel(%arg0: i32, %arg1: i32, %arg2: memref<1x256x128xbf16, #tpu.memory_space<vmem>>, %arg3: memref<4x128x32xbf16, #tpu.memory_space<vmem>>, %arg4: memref<4x1x32xf32, #tpu.memory_space<vmem>>, %arg5: memref<4x128x32xbf16, #tpu.memory_space<vmem>>, %arg6: memref<4x1x32xf32, #tpu.memory_space<vmem>>, %arg7: memref<4x128x32xbf16, #tpu.memory_space<vmem>>, %arg8: memref<4x1x32xf32, #tpu.memory_space<vmem>>, %arg9: memref<1x4x256x32xbf16, #tpu.memory_space<vmem>>, %arg10: memref<1x4x256x32xbf16, #tpu.memory_space<vmem>>, %arg11: memref<1x4x256x32xbf16, #tpu.memory_space<vmem>>) attributes {dimension_semantics = [#tpu.dimension_semantics<parallel>, #tpu.dimension_semantics<parallel>], iteration_bounds = array<i64: 2, 2>, scalar_prefetch = 0 : i64, scratch_operands = 0 : i64, tpu.core_type = #tpu.core_type<tc>, window_params = [{transform_indices = @transform_0, window_bounds = array<i64: 1, 256, 128>}, {pipeline_mode = #tpu.pipeline_mode<synchronous>, transform_indices = @transform_1, window_bounds = array<i64: 4, 128, 32>}, {pipeline_mode = #tpu.pipeline_mode<synchronous>, transform_indices = @transform_2, window_bounds = array<i64: 4, 1, 32>}, {pipeline_mode = #tpu.pipeline_mode<synchronous>, transform_indices = @transform_3, window_bounds = array<i64: 4, 128, 32>}, {pipeline_mode = #tpu.pipeline_mode<synchronous>, transform_indices = @transform_4, window_bounds = array<i64: 4, 1, 32>}, {pipeline_mode = #tpu.pipeline_mode<synchronous>, transform_indices = @transform_5, window_bounds = array<i64: 4, 128, 32>}, {pipeline_mode = #tpu.pipeline_mode<synchronous>, transform_indices = @transform_6, window_bounds = array<i64: 4, 1, 32>}, {transform_indices = @transform_7, window_bounds = array<i64: 1, 4, 256, 32>}, {transform_indices = @transform_8, window_bounds = array<i64: 1, 4, 256, 32>}, {transform_indices = @transform_9, window_bounds = array<i64: 1, 4, 256, 32>}]} {
    %c0 = arith.constant 0 : index
    %c0_0 = arith.constant 0 : index
    %c0_1 = arith.constant 0 : index
    %0 = vector.load %arg2[%c0, %c0_0, %c0_1] : memref<1x256x128xbf16, #tpu.memory_space<vmem>>, vector<1x256x128xbf16>
    %1 = vector.shape_cast %0 : vector<1x256x128xbf16> to vector<256x128xbf16>
    %c0_2 = arith.constant 0 : index
    %c0_3 = arith.constant 0 : index
    %c0_4 = arith.constant 0 : index
    %2 = vector.load %arg3[%c0_2, %c0_3, %c0_4] : memref<4x128x32xbf16, #tpu.memory_space<vmem>>, vector<1x128x32xbf16>
    %3 = vector.shape_cast %2 : vector<1x128x32xbf16> to vector<128x32xbf16>
    %cst = arith.constant dense<0.000000e+00> : vector<256x32xf32>
    %4 = tpu.matmul %1, %3, %cst {dimension_numbers = #tpu.dot_dimension_numbers<[1], [0], [0], [1], [0, 0, 1, 1], [], []>} : vector<256x128xbf16>, vector<128x32xbf16>, vector<256x32xf32> -> vector<256x32xf32>
    %c0_5 = arith.constant 0 : index
    %c0_6 = arith.constant 0 : index
    %c0_7 = arith.constant 0 : index
    %5 = vector.load %arg4[%c0_5, %c0_6, %c0_7] : memref<4x1x32xf32, #tpu.memory_space<vmem>>, vector<1x1x32xf32>
    %6 = vector.shape_cast %5 : vector<1x1x32xf32> to vector<1x32xf32>
    %7 = vector.broadcast %6 : vector<1x32xf32> to vector<256x32xf32>
    %8 = arith.addf %4, %7 : vector<256x32xf32>
    %c0_8 = arith.constant 0 : index
    %c0_9 = arith.constant 0 : index
    %c0_10 = arith.constant 0 : index
    %9 = vector.load %arg5[%c0_8, %c0_9, %c0_10] : memref<4x128x32xbf16, #tpu.memory_space<vmem>>, vector<1x128x32xbf16>
    %10 = vector.shape_cast %9 : vector<1x128x32xbf16> to vector<128x32xbf16>
    %cst_11 = arith.constant dense<0.000000e+00> : vector<256x32xf32>
    %11 = tpu.matmul %1, %10, %cst_11 {dimension_numbers = #tpu.dot_dimension_numbers<[1], [0], [0], [1], [0, 0, 1, 1], [], []>} : vector<256x128xbf16>, vector<128x32xbf16>, vector<256x32xf32> -> vector<256x32xf32>
    %c0_12 = arith.constant 0 : index
    %c0_13 = arith.constant 0 : index
    %c0_14 = arith.constant 0 : index
    %12 = vector.load %arg6[%c0_12, %c0_13, %c0_14] : memref<4x1x32xf32, #tpu.memory_space<vmem>>, vector<1x1x32xf32>
    %13 = vector.shape_cast %12 : vector<1x1x32xf32> to vector<1x32xf32>
    %14 = vector.broadcast %13 : vector<1x32xf32> to vector<256x32xf32>
    %15 = arith.addf %11, %14 : vector<256x32xf32>
    %c0_15 = arith.constant 0 : index
    %c0_16 = arith.constant 0 : index
    %c0_17 = arith.constant 0 : index
    %16 = vector.load %arg7[%c0_15, %c0_16, %c0_17] : memref<4x128x32xbf16, #tpu.memory_space<vmem>>, vector<1x128x32xbf16>
    %17 = vector.shape_cast %16 : vector<1x128x32xbf16> to vector<128x32xbf16>
    %cst_18 = arith.constant dense<0.000000e+00> : vector<256x32xf32>
    %18 = tpu.matmul %1, %17, %cst_18 {dimension_numbers = #tpu.dot_dimension_numbers<[1], [0], [0], [1], [0, 0, 1, 1], [], []>} : vector<256x128xbf16>, vector<128x32xbf16>, vector<256x32xf32> -> vector<256x32xf32>
    %c0_19 = arith.constant 0 : index
    %c0_20 = arith.constant 0 : index
    %c0_21 = arith.constant 0 : index
    %19 = vector.load %arg8[%c0_19, %c0_20, %c0_21] : memref<4x1x32xf32, #tpu.memory_space<vmem>>, vector<1x1x32xf32>
    %20 = vector.shape_cast %19 : vector<1x1x32xf32> to vector<1x32xf32>
    %21 = vector.broadcast %20 : vector<1x32xf32> to vector<256x32xf32>
    %22 = arith.addf %18, %21 : vector<256x32xf32>
    %23 = arith.truncf %8 : vector<256x32xf32> to vector<256x32xbf16>
    %c0_22 = arith.constant 0 : index
    %c0_23 = arith.constant 0 : index
    %c0_24 = arith.constant 0 : index
    %c0_25 = arith.constant 0 : index
    %24 = vector.load %arg9[%c0_22, %c0_23, %c0_24, %c0_25] : memref<1x4x256x32xbf16, #tpu.memory_space<vmem>>, vector<1x1x256x32xbf16>
    %25 = vector.shape_cast %24 : vector<1x1x256x32xbf16> to vector<256x32xbf16>
    %26 = vector.shape_cast %23 : vector<256x32xbf16> to vector<1x1x256x32xbf16>
    tpu.vector_store %arg9[%c0_22, %c0_23, %c0_24, %c0_25], %26 {strides = array<i32>} : memref<1x4x256x32xbf16, #tpu.memory_space<vmem>>, vector<1x1x256x32xbf16>,
    %27 = arith.truncf %15 : vector<256x32xf32> to vector<256x32xbf16>
    %c0_26 = arith.constant 0 : index
    %c0_27 = arith.constant 0 : index
    %c0_28 = arith.constant 0 : index
    %c0_29 = arith.constant 0 : index
    %28 = vector.load %arg10[%c0_26, %c0_27, %c0_28, %c0_29] : memref<1x4x256x32xbf16, #tpu.memory_space<vmem>>, vector<1x1x256x32xbf16>
    %29 = vector.shape_cast %28 : vector<1x1x256x32xbf16> to vector<256x32xbf16>
    %30 = vector.shape_cast %27 : vector<256x32xbf16> to vector<1x1x256x32xbf16>
    tpu.vector_store %arg10[%c0_26, %c0_27, %c0_28, %c0_29], %30 {strides = array<i32>} : memref<1x4x256x32xbf16, #tpu.memory_space<vmem>>, vector<1x1x256x32xbf16>,
    %31 = arith.truncf %22 : vector<256x32xf32> to vector<256x32xbf16>
    %c0_30 = arith.constant 0 : index
    %c0_31 = arith.constant 0 : index
    %c0_32 = arith.constant 0 : index
    %c0_33 = arith.constant 0 : index
    %32 = vector.load %arg11[%c0_30, %c0_31, %c0_32, %c0_33] : memref<1x4x256x32xbf16, #tpu.memory_space<vmem>>, vector<1x1x256x32xbf16>
    %33 = vector.shape_cast %32 : vector<1x1x256x32xbf16> to vector<256x32xbf16>
    %34 = vector.shape_cast %31 : vector<256x32xbf16> to vector<1x1x256x32xbf16>
    tpu.vector_store %arg11[%c0_30, %c0_31, %c0_32, %c0_33], %34 {strides = array<i32>} : memref<1x4x256x32xbf16, #tpu.memory_space<vmem>>, vector<1x1x256x32xbf16>,
    %c1 = arith.constant 1 : index
    %c0_34 = arith.constant 0 : index
    %c0_35 = arith.constant 0 : index
    %35 = vector.load %arg3[%c1, %c0_34, %c0_35] : memref<4x128x32xbf16, #tpu.memory_space<vmem>>, vector<1x128x32xbf16>
    %36 = vector.shape_cast %35 : vector<1x128x32xbf16> to vector<128x32xbf16>
    %cst_36 = arith.constant dense<0.000000e+00> : vector<256x32xf32>
    %37 = tpu.matmul %1, %36, %cst_36 {dimension_numbers = #tpu.dot_dimension_numbers<[1], [0], [0], [1], [0, 0, 1, 1], [], []>} : vector<256x128xbf16>, vector<128x32xbf16>, vector<256x32xf32> -> vector<256x32xf32>
    %c1_37 = arith.constant 1 : index
    %c0_38 = arith.constant 0 : index
    %c0_39 = arith.constant 0 : index
    %38 = vector.load %arg4[%c1_37, %c0_38, %c0_39] : memref<4x1x32xf32, #tpu.memory_space<vmem>>, vector<1x1x32xf32>
    %39 = vector.shape_cast %38 : vector<1x1x32xf32> to vector<1x32xf32>
    %40 = vector.broadcast %39 : vector<1x32xf32> to vector<256x32xf32>
    %41 = arith.addf %37, %40 : vector<256x32xf32>
    %c1_40 = arith.constant 1 : index
    %c0_41 = arith.constant 0 : index
    %c0_42 = arith.constant 0 : index
    %42 = vector.load %arg5[%c1_40, %c0_41, %c0_42] : memref<4x128x32xbf16, #tpu.memory_space<vmem>>, vector<1x128x32xbf16>
    %43 = vector.shape_cast %42 : vector<1x128x32xbf16> to vector<128x32xbf16>
    %cst_43 = arith.constant dense<0.000000e+00> : vector<256x32xf32>
    %44 = tpu.matmul %1, %43, %cst_43 {dimension_numbers = #tpu.dot_dimension_numbers<[1], [0], [0], [1], [0, 0, 1, 1], [], []>} : vector<256x128xbf16>, vector<128x32xbf16>, vector<256x32xf32> -> vector<256x32xf32>
    %c1_44 = arith.constant 1 : index
    %c0_45 = arith.constant 0 : index
    %c0_46 = arith.constant 0 : index
    %45 = vector.load %arg6[%c1_44, %c0_45, %c0_46] : memref<4x1x32xf32, #tpu.memory_space<vmem>>, vector<1x1x32xf32>
    %46 = vector.shape_cast %45 : vector<1x1x32xf32> to vector<1x32xf32>
    %47 = vector.broadcast %46 : vector<1x32xf32> to vector<256x32xf32>
    %48 = arith.addf %44, %47 : vector<256x32xf32>
    %c1_47 = arith.constant 1 : index
    %c0_48 = arith.constant 0 : index
    %c0_49 = arith.constant 0 : index
    %49 = vector.load %arg7[%c1_47, %c0_48, %c0_49] : memref<4x128x32xbf16, #tpu.memory_space<vmem>>, vector<1x128x32xbf16>
    %50 = vector.shape_cast %49 : vector<1x128x32xbf16> to vector<128x32xbf16>
    %cst_50 = arith.constant dense<0.000000e+00> : vector<256x32xf32>
    %51 = tpu.matmul %1, %50, %cst_50 {dimension_numbers = #tpu.dot_dimension_numbers<[1], [0], [0], [1], [0, 0, 1, 1], [], []>} : vector<256x128xbf16>, vector<128x32xbf16>, vector<256x32xf32> -> vector<256x32xf32>
    %c1_51 = arith.constant 1 : index
    %c0_52 = arith.constant 0 : index
    %c0_53 = arith.constant 0 : index
    %52 = vector.load %arg8[%c1_51, %c0_52, %c0_53] : memref<4x1x32xf32, #tpu.memory_space<vmem>>, vector<1x1x32xf32>
    %53 = vector.shape_cast %52 : vector<1x1x32xf32> to vector<1x32xf32>
    %54 = vector.broadcast %53 : vector<1x32xf32> to vector<256x32xf32>
    %55 = arith.addf %51, %54 : vector<256x32xf32>
    %56 = arith.truncf %41 : vector<256x32xf32> to vector<256x32xbf16>
    %c0_54 = arith.constant 0 : index
    %c1_55 = arith.constant 1 : index
    %c0_56 = arith.constant 0 : index
    %c0_57 = arith.constant 0 : index
    %57 = vector.load %arg9[%c0_54, %c1_55, %c0_56, %c0_57] : memref<1x4x256x32xbf16, #tpu.memory_space<vmem>>, vector<1x1x256x32xbf16>
    %58 = vector.shape_cast %57 : vector<1x1x256x32xbf16> to vector<256x32xbf16>
    %59 = vector.shape_cast %56 : vector<256x32xbf16> to vector<1x1x256x32xbf16>
    tpu.vector_store %arg9[%c0_54, %c1_55, %c0_56, %c0_57], %59 {strides = array<i32>} : memref<1x4x256x32xbf16, #tpu.memory_space<vmem>>, vector<1x1x256x32xbf16>,
    %60 = arith.truncf %48 : vector<256x32xf32> to vector<256x32xbf16>
    %c0_58 = arith.constant 0 : index
    %c1_59 = arith.constant 1 : index
    %c0_60 = arith.constant 0 : index
    %c0_61 = arith.constant 0 : index
    %61 = vector.load %arg10[%c0_58, %c1_59, %c0_60, %c0_61] : memref<1x4x256x32xbf16, #tpu.memory_space<vmem>>, vector<1x1x256x32xbf16>
    %62 = vector.shape_cast %61 : vector<1x1x256x32xbf16> to vector<256x32xbf16>
    %63 = vector.shape_cast %60 : vector<256x32xbf16> to vector<1x1x256x32xbf16>
    tpu.vector_store %arg10[%c0_58, %c1_59, %c0_60, %c0_61], %63 {strides = array<i32>} : memref<1x4x256x32xbf16, #tpu.memory_space<vmem>>, vector<1x1x256x32xbf16>,
    %64 = arith.truncf %55 : vector<256x32xf32> to vector<256x32xbf16>
    %c0_62 = arith.constant 0 : index
    %c1_63 = arith.constant 1 : index
    %c0_64 = arith.constant 0 : index
    %c0_65 = arith.constant 0 : index
    %65 = vector.load %arg11[%c0_62, %c1_63, %c0_64, %c0_65] : memref<1x4x256x32xbf16, #tpu.memory_space<vmem>>, vector<1x1x256x32xbf16>
    %66 = vector.shape_cast %65 : vector<1x1x256x32xbf16> to vector<256x32xbf16>
    %67 = vector.shape_cast %64 : vector<256x32xbf16> to vector<1x1x256x32xbf16>
    tpu.vector_store %arg11[%c0_62, %c1_63, %c0_64, %c0_65], %67 {strides = array<i32>} : memref<1x4x256x32xbf16, #tpu.memory_space<vmem>>, vector<1x1x256x32xbf16>,
    %c2 = arith.constant 2 : index
    %c0_66 = arith.constant 0 : index
    %c0_67 = arith.constant 0 : index
    %68 = vector.load %arg3[%c2, %c0_66, %c0_67] : memref<4x128x32xbf16, #tpu.memory_space<vmem>>, vector<1x128x32xbf16>
    %69 = vector.shape_cast %68 : vector<1x128x32xbf16> to vector<128x32xbf16>
    %cst_68 = arith.constant dense<0.000000e+00> : vector<256x32xf32>
    %70 = tpu.matmul %1, %69, %cst_68 {dimension_numbers = #tpu.dot_dimension_numbers<[1], [0], [0], [1], [0, 0, 1, 1], [], []>} : vector<256x128xbf16>, vector<128x32xbf16>, vector<256x32xf32> -> vector<256x32xf32>
    %c2_69 = arith.constant 2 : index
    %c0_70 = arith.constant 0 : index
    %c0_71 = arith.constant 0 : index
    %71 = vector.load %arg4[%c2_69, %c0_70, %c0_71] : memref<4x1x32xf32, #tpu.memory_space<vmem>>, vector<1x1x32xf32>
    %72 = vector.shape_cast %71 : vector<1x1x32xf32> to vector<1x32xf32>
    %73 = vector.broadcast %72 : vector<1x32xf32> to vector<256x32xf32>
    %74 = arith.addf %70, %73 : vector<256x32xf32>
    %c2_72 = arith.constant 2 : index
    %c0_73 = arith.constant 0 : index
    %c0_74 = arith.constant 0 : index
    %75 = vector.load %arg5[%c2_72, %c0_73, %c0_74] : memref<4x128x32xbf16, #tpu.memory_space<vmem>>, vector<1x128x32xbf16>
    %76 = vector.shape_cast %75 : vector<1x128x32xbf16> to vector<128x32xbf16>
    %cst_75 = arith.constant dense<0.000000e+00> : vector<256x32xf32>
    %77 = tpu.matmul %1, %76, %cst_75 {dimension_numbers = #tpu.dot_dimension_numbers<[1], [0], [0], [1], [0, 0, 1, 1], [], []>} : vector<256x128xbf16>, vector<128x32xbf16>, vector<256x32xf32> -> vector<256x32xf32>
    %c2_76 = arith.constant 2 : index
    %c0_77 = arith.constant 0 : index
    %c0_78 = arith.constant 0 : index
    %78 = vector.load %arg6[%c2_76, %c0_77, %c0_78] : memref<4x1x32xf32, #tpu.memory_space<vmem>>, vector<1x1x32xf32>
    %79 = vector.shape_cast %78 : vector<1x1x32xf32> to vector<1x32xf32>
    %80 = vector.broadcast %79 : vector<1x32xf32> to vector<256x32xf32>
    %81 = arith.addf %77, %80 : vector<256x32xf32>
    %c2_79 = arith.constant 2 : index
    %c0_80 = arith.constant 0 : index
    %c0_81 = arith.constant 0 : index
    %82 = vector.load %arg7[%c2_79, %c0_80, %c0_81] : memref<4x128x32xbf16, #tpu.memory_space<vmem>>, vector<1x128x32xbf16>
    %83 = vector.shape_cast %82 : vector<1x128x32xbf16> to vector<128x32xbf16>
    %cst_82 = arith.constant dense<0.000000e+00> : vector<256x32xf32>
    %84 = tpu.matmul %1, %83, %cst_82 {dimension_numbers = #tpu.dot_dimension_numbers<[1], [0], [0], [1], [0, 0, 1, 1], [], []>} : vector<256x128xbf16>, vector<128x32xbf16>, vector<256x32xf32> -> vector<256x32xf32>
    %c2_83 = arith.constant 2 : index
    %c0_84 = arith.constant 0 : index
    %c0_85 = arith.constant 0 : index
    %85 = vector.load %arg8[%c2_83, %c0_84, %c0_85] : memref<4x1x32xf32, #tpu.memory_space<vmem>>, vector<1x1x32xf32>
    %86 = vector.shape_cast %85 : vector<1x1x32xf32> to vector<1x32xf32>
    %87 = vector.broadcast %86 : vector<1x32xf32> to vector<256x32xf32>
    %88 = arith.addf %84, %87 : vector<256x32xf32>
    %89 = arith.truncf %74 : vector<256x32xf32> to vector<256x32xbf16>
    %c0_86 = arith.constant 0 : index
    %c2_87 = arith.constant 2 : index
    %c0_88 = arith.constant 0 : index
    %c0_89 = arith.constant 0 : index
    %90 = vector.load %arg9[%c0_86, %c2_87, %c0_88, %c0_89] : memref<1x4x256x32xbf16, #tpu.memory_space<vmem>>, vector<1x1x256x32xbf16>
    %91 = vector.shape_cast %90 : vector<1x1x256x32xbf16> to vector<256x32xbf16>
    %92 = vector.shape_cast %89 : vector<256x32xbf16> to vector<1x1x256x32xbf16>
    tpu.vector_store %arg9[%c0_86, %c2_87, %c0_88, %c0_89], %92 {strides = array<i32>} : memref<1x4x256x32xbf16, #tpu.memory_space<vmem>>, vector<1x1x256x32xbf16>,
    %93 = arith.truncf %81 : vector<256x32xf32> to vector<256x32xbf16>
    %c0_90 = arith.constant 0 : index
    %c2_91 = arith.constant 2 : index
    %c0_92 = arith.constant 0 : index
    %c0_93 = arith.constant 0 : index
    %94 = vector.load %arg10[%c0_90, %c2_91, %c0_92, %c0_93] : memref<1x4x256x32xbf16, #tpu.memory_space<vmem>>, vector<1x1x256x32xbf16>
    %95 = vector.shape_cast %94 : vector<1x1x256x32xbf16> to vector<256x32xbf16>
    %96 = vector.shape_cast %93 : vector<256x32xbf16> to vector<1x1x256x32xbf16>
    tpu.vector_store %arg10[%c0_90, %c2_91, %c0_92, %c0_93], %96 {strides = array<i32>} : memref<1x4x256x32xbf16, #tpu.memory_space<vmem>>, vector<1x1x256x32xbf16>,
    %97 = arith.truncf %88 : vector<256x32xf32> to vector<256x32xbf16>
    %c0_94 = arith.constant 0 : index
    %c2_95 = arith.constant 2 : index
    %c0_96 = arith.constant 0 : index
    %c0_97 = arith.constant 0 : index
    %98 = vector.load %arg11[%c0_94, %c2_95, %c0_96, %c0_97] : memref<1x4x256x32xbf16, #tpu.memory_space<vmem>>, vector<1x1x256x32xbf16>
    %99 = vector.shape_cast %98 : vector<1x1x256x32xbf16> to vector<256x32xbf16>
    %100 = vector.shape_cast %97 : vector<256x32xbf16> to vector<1x1x256x32xbf16>
    tpu.vector_store %arg11[%c0_94, %c2_95, %c0_96, %c0_97], %100 {strides = array<i32>} : memref<1x4x256x32xbf16, #tpu.memory_space<vmem>>, vector<1x1x256x32xbf16>,
    %c3 = arith.constant 3 : index
    %c0_98 = arith.constant 0 : index
    %c0_99 = arith.constant 0 : index
    %101 = vector.load %arg3[%c3, %c0_98, %c0_99] : memref<4x128x32xbf16, #tpu.memory_space<vmem>>, vector<1x128x32xbf16>
    %102 = vector.shape_cast %101 : vector<1x128x32xbf16> to vector<128x32xbf16>
    %cst_100 = arith.constant dense<0.000000e+00> : vector<256x32xf32>
    %103 = tpu.matmul %1, %102, %cst_100 {dimension_numbers = #tpu.dot_dimension_numbers<[1], [0], [0], [1], [0, 0, 1, 1], [], []>} : vector<256x128xbf16>, vector<128x32xbf16>, vector<256x32xf32> -> vector<256x32xf32>
    %c3_101 = arith.constant 3 : index
    %c0_102 = arith.constant 0 : index
    %c0_103 = arith.constant 0 : index
    %104 = vector.load %arg4[%c3_101, %c0_102, %c0_103] : memref<4x1x32xf32, #tpu.memory_space<vmem>>, vector<1x1x32xf32>
    %105 = vector.shape_cast %104 : vector<1x1x32xf32> to vector<1x32xf32>
    %106 = vector.broadcast %105 : vector<1x32xf32> to vector<256x32xf32>
    %107 = arith.addf %103, %106 : vector<256x32xf32>
    %c3_104 = arith.constant 3 : index
    %c0_105 = arith.constant 0 : index
    %c0_106 = arith.constant 0 : index
    %108 = vector.load %arg5[%c3_104, %c0_105, %c0_106] : memref<4x128x32xbf16, #tpu.memory_space<vmem>>, vector<1x128x32xbf16>
    %109 = vector.shape_cast %108 : vector<1x128x32xbf16> to vector<128x32xbf16>
    %cst_107 = arith.constant dense<0.000000e+00> : vector<256x32xf32>
    %110 = tpu.matmul %1, %109, %cst_107 {dimension_numbers = #tpu.dot_dimension_numbers<[1], [0], [0], [1], [0, 0, 1, 1], [], []>} : vector<256x128xbf16>, vector<128x32xbf16>, vector<256x32xf32> -> vector<256x32xf32>
    %c3_108 = arith.constant 3 : index
    %c0_109 = arith.constant 0 : index
    %c0_110 = arith.constant 0 : index
    %111 = vector.load %arg6[%c3_108, %c0_109, %c0_110] : memref<4x1x32xf32, #tpu.memory_space<vmem>>, vector<1x1x32xf32>
    %112 = vector.shape_cast %111 : vector<1x1x32xf32> to vector<1x32xf32>
    %113 = vector.broadcast %112 : vector<1x32xf32> to vector<256x32xf32>
    %114 = arith.addf %110, %113 : vector<256x32xf32>
    %c3_111 = arith.constant 3 : index
    %c0_112 = arith.constant 0 : index
    %c0_113 = arith.constant 0 : index
    %115 = vector.load %arg7[%c3_111, %c0_112, %c0_113] : memref<4x128x32xbf16, #tpu.memory_space<vmem>>, vector<1x128x32xbf16>
    %116 = vector.shape_cast %115 : vector<1x128x32xbf16> to vector<128x32xbf16>
    %cst_114 = arith.constant dense<0.000000e+00> : vector<256x32xf32>
    %117 = tpu.matmul %1, %116, %cst_114 {dimension_numbers = #tpu.dot_dimension_numbers<[1], [0], [0], [1], [0, 0, 1, 1], [], []>} : vector<256x128xbf16>, vector<128x32xbf16>, vector<256x32xf32> -> vector<256x32xf32>
    %c3_115 = arith.constant 3 : index
    %c0_116 = arith.constant 0 : index
    %c0_117 = arith.constant 0 : index
    %118 = vector.load %arg8[%c3_115, %c0_116, %c0_117] : memref<4x1x32xf32, #tpu.memory_space<vmem>>, vector<1x1x32xf32>
    %119 = vector.shape_cast %118 : vector<1x1x32xf32> to vector<1x32xf32>
    %120 = vector.broadcast %119 : vector<1x32xf32> to vector<256x32xf32>
    %121 = arith.addf %117, %120 : vector<256x32xf32>
    %122 = arith.truncf %107 : vector<256x32xf32> to vector<256x32xbf16>
    %c0_118 = arith.constant 0 : index
    %c3_119 = arith.constant 3 : index
    %c0_120 = arith.constant 0 : index
    %c0_121 = arith.constant 0 : index
    %123 = vector.load %arg9[%c0_118, %c3_119, %c0_120, %c0_121] : memref<1x4x256x32xbf16, #tpu.memory_space<vmem>>, vector<1x1x256x32xbf16>
    %124 = vector.shape_cast %123 : vector<1x1x256x32xbf16> to vector<256x32xbf16>
    %125 = vector.shape_cast %122 : vector<256x32xbf16> to vector<1x1x256x32xbf16>
    tpu.vector_store %arg9[%c0_118, %c3_119, %c0_120, %c0_121], %125 {strides = array<i32>} : memref<1x4x256x32xbf16, #tpu.memory_space<vmem>>, vector<1x1x256x32xbf16>,
    %126 = arith.truncf %114 : vector<256x32xf32> to vector<256x32xbf16>
    %c0_122 = arith.constant 0 : index
    %c3_123 = arith.constant 3 : index
    %c0_124 = arith.constant 0 : index
    %c0_125 = arith.constant 0 : index
    %127 = vector.load %arg10[%c0_122, %c3_123, %c0_124, %c0_125] : memref<1x4x256x32xbf16, #tpu.memory_space<vmem>>, vector<1x1x256x32xbf16>
    %128 = vector.shape_cast %127 : vector<1x1x256x32xbf16> to vector<256x32xbf16>
    %129 = vector.shape_cast %126 : vector<256x32xbf16> to vector<1x1x256x32xbf16>
    tpu.vector_store %arg10[%c0_122, %c3_123, %c0_124, %c0_125], %129 {strides = array<i32>} : memref<1x4x256x32xbf16, #tpu.memory_space<vmem>>, vector<1x1x256x32xbf16>,
    %130 = arith.truncf %121 : vector<256x32xf32> to vector<256x32xbf16>
    %c0_126 = arith.constant 0 : index
    %c3_127 = arith.constant 3 : index
    %c0_128 = arith.constant 0 : index
    %c0_129 = arith.constant 0 : index
    %131 = vector.load %arg11[%c0_126, %c3_127, %c0_128, %c0_129] : memref<1x4x256x32xbf16, #tpu.memory_space<vmem>>, vector<1x1x256x32xbf16>
    %132 = vector.shape_cast %131 : vector<1x1x256x32xbf16> to vector<256x32xbf16>
    %133 = vector.shape_cast %130 : vector<256x32xbf16> to vector<1x1x256x32xbf16>
    tpu.vector_store %arg11[%c0_126, %c3_127, %c0_128, %c0_129], %133 {strides = array<i32>} : memref<1x4x256x32xbf16, #tpu.memory_space<vmem>>, vector<1x1x256x32xbf16>,
    return
  }
  func.func @transform_0(%arg0: i32, %arg1: i32) -> (i32, i32, i32) {
    %c0_i32 = arith.constant 0 : i32
    %c0_i32_0 = arith.constant 0 : i32
    return %arg0, %arg1, %c0_i32 : i32, i32, i32
  }
  func.func @transform_1(%arg0: i32, %arg1: i32) -> (i32, i32, i32) {
    %c0_i32 = arith.constant 0 : i32
    %c0_i32_0 = arith.constant 0 : i32
    %c0_i32_1 = arith.constant 0 : i32
    %c0_i32_2 = arith.constant 0 : i32
    return %c0_i32, %c0_i32_0, %c0_i32_1 : i32, i32, i32
  }
  func.func @transform_2(%arg0: i32, %arg1: i32) -> (i32, i32, i32) {
    %c0_i32 = arith.constant 0 : i32
    %c0_i32_0 = arith.constant 0 : i32
    %c0_i32_1 = arith.constant 0 : i32
    %c0_i32_2 = arith.constant 0 : i32
    return %c0_i32, %c0_i32_0, %c0_i32_1 : i32, i32, i32
  }
  func.func @transform_3(%arg0: i32, %arg1: i32) -> (i32, i32, i32) {
    %c0_i32 = arith.constant 0 : i32
    %c0_i32_0 = arith.constant 0 : i32
    %c0_i32_1 = arith.constant 0 : i32
    %c0_i32_2 = arith.constant 0 : i32
    return %c0_i32, %c0_i32_0, %c0_i32_1 : i32, i32, i32
  }
  func.func @transform_4(%arg0: i32, %arg1: i32) -> (i32, i32, i32) {
    %c0_i32 = arith.constant 0 : i32
    %c0_i32_0 = arith.constant 0 : i32
    %c0_i32_1 = arith.constant 0 : i32
    %c0_i32_2 = arith.constant 0 : i32
    return %c0_i32, %c0_i32_0, %c0_i32_1 : i32, i32, i32
  }
  func.func @transform_5(%arg0: i32, %arg1: i32) -> (i32, i32, i32) {
    %c0_i32 = arith.constant 0 : i32
    %c0_i32_0 = arith.constant 0 : i32
    %c0_i32_1 = arith.constant 0 : i32
    %c0_i32_2 = arith.constant 0 : i32
    return %c0_i32, %c0_i32_0, %c0_i32_1 : i32, i32, i32
  }
  func.func @transform_6(%arg0: i32, %arg1: i32) -> (i32, i32, i32) {
    %c0_i32 = arith.constant 0 : i32
    %c0_i32_0 = arith.constant 0 : i32
    %c0_i32_1 = arith.constant 0 : i32
    %c0_i32_2 = arith.constant 0 : i32
    return %c0_i32, %c0_i32_0, %c0_i32_1 : i32, i32, i32
  }
  func.func @transform_7(%arg0: i32, %arg1: i32) -> (i32, i32, i32, i32) {
    %c0_i32 = arith.constant 0 : i32
    %c0_i32_0 = arith.constant 0 : i32
    %c0_i32_1 = arith.constant 0 : i32
    return %arg0, %c0_i32, %arg1, %c0_i32_0 : i32, i32, i32, i32
  }
  func.func @transform_8(%arg0: i32, %arg1: i32) -> (i32, i32, i32, i32) {
    %c0_i32 = arith.constant 0 : i32
    %c0_i32_0 = arith.constant 0 : i32
    %c0_i32_1 = arith.constant 0 : i32
    return %arg0, %c0_i32, %arg1, %c0_i32_0 : i32, i32, i32, i32
  }
  func.func @transform_9(%arg0: i32, %arg1: i32) -> (i32, i32, i32, i32) {
    %c0_i32 = arith.constant 0 : i32
    %c0_i32_0 = arith.constant 0 : i32
    %c0_i32_1 = arith.constant 0 : i32
    return %arg0, %c0_i32, %arg1, %c0_i32_0 : i32, i32, i32, i32
  }
}

</mosaic_0001>

<llo_original>
// kernel: tpu_custom_call.1
$region0: #{tpu_custom_call.1}
  #allocation0 [shape = 'u32[]', space=smem, size = 0x4, offset = 0x4, fixed_abs, tag = 'smem constant byte address 0x4 - core index']
  #allocation1 [shape = 'u32[72,128]{1,0:T(1,128)}', space=vmem, size = 0x9000, scoped, tag = 'internal scratch']
  %s0 = inlined_call_operand.vmem [shape: bf16[2,512,128], index: 0, kind: input, shape index: {}]
  %s1 = inlined_call_operand.vmem [shape: bf16[4,128,32], index: 1, kind: input, shape index: {}]
  %s2 = inlined_call_operand.vmem [shape: f32[4,1,32], index: 2, kind: input, shape index: {}]
  %s3 = inlined_call_operand.vmem [shape: bf16[4,128,32], index: 3, kind: input, shape index: {}]
  %s4 = inlined_call_operand.vmem [shape: f32[4,1,32], index: 4, kind: input, shape index: {}]
  %s5 = inlined_call_operand.vmem [shape: bf16[4,128,32], index: 5, kind: input, shape index: {}]
  %s6 = inlined_call_operand.vmem [shape: f32[4,1,32], index: 6, kind: input, shape index: {}]
  %s7 = inlined_call_operand.vmem [shape: bf16[2,4,512,32], index: 7, kind: output, shape index: {0}]
  %s8 = inlined_call_operand.vmem [shape: bf16[2,4,512,32], index: 8, kind: output, shape index: {1}]
  %s9 = inlined_call_operand.vmem [shape: bf16[2,4,512,32], index: 9, kind: output, shape index: {2}]
  %10 = xla_tuple %s7, %s8, %s9
  %s11 = sld [smem:[#allocation0]]
  $region188: #{tpu_custom_call.1} parent=0
    _
  %s13 = ssub.s32 1, %s11
  %s14 = scalar_select 0, %s13, %s11
  $region1: #{tpu_custom_call.1} parent=0
    #allocation2 [shape = 'u8[524288]{0}', space=vmem, size = 0x80000, scoped, tag = 'output window, operand 0']
    #allocation3 [shape = 'u8[524288]{0}', space=vmem, size = 0x80000, scoped, tag = 'output window, operand 1']
    #allocation4 [shape = 'u8[524288]{0}', space=vmem, size = 0x80000, scoped, tag = 'output window, operand 2']
    loop: start=0, step=1, limit=6
    $region2: #{tpu_custom_call.1} parent=1 // loop_pre_header
      _
    $region3: #{tpu_custom_call.1} parent=1 // loop_header
      %s16 = sphi 0, %s20
      %p17 = scmp.ge.s32.totalorder %s16, 6
      %s23 = sphi 0, %s35
      %s24 = sphi 0, %s31
      %s25 = sphi 0, %s23
      %s26 = sphi 0, %s24
      %s27 = sphi 0, %s25
      %s28 = sphi 0, %s26
      %s40 = sphi 0, %s42
      %s43 = sphi 0, %s40
      %s44 = sphi 0, %s43
      %s60 = sphi 0, %s44
      %s64 = sphi 0, %s64
      %s66 = sphi 0, %s64
      %s67 = sphi 0, %s66
      %s81 = sphi 0, %s67
      %s85 = sphi 0, %s85
      %s87 = sphi 0, %s85
      %s88 = sphi 0, %s87
      %s102 = sphi 0, %s88
      %s106 = sphi 0, %s106
      %s108 = sphi 0, %s106
      %s109 = sphi 0, %s108
      %s123 = sphi 0, %s109
      %s127 = sphi 0, %s127
      %s129 = sphi 0, %s127
      %s130 = sphi 0, %s129
      %s144 = sphi 0, %s130
      %s148 = sphi 0, %s148
      %s150 = sphi 0, %s148
      %s151 = sphi 0, %s150
      %s165 = sphi 0, %s151
      %s169 = sphi 0, %s169
      %s171 = sphi 0, %s169
      %s172 = sphi 0, %s171
      %s186 = sphi 0, %s172
      %s194 = sphi 0, %s196
      %s197 = sphi 0, %s194
      %s198 = sphi 0, %s197
      %s214 = sphi 0, %s198
      %s222 = sphi 0, %s224
      %s225 = sphi 0, %s222
      %s226 = sphi 0, %s225
      %s242 = sphi 0, %s226
      %s250 = sphi 0, %s252
      %s253 = sphi 0, %s250
      %s254 = sphi 0, %s253
      %s270 = sphi 0, %s254
    $region4: #{tpu_custom_call.1} parent=1 // loop_header_branch
      %19 = sbr.rel (%p17) target = $region8
    $region5: #{tpu_custom_call.1} parent=1 // loop_body
      %s21 = ssub.s32 %s16, 1
      %s22 = ssub.s32 %s16, 2
      %s29 = sadd.s32 1, %s24
      %p30 = scmp.ge.s32.totalorder %s29, 2
      %s31 = scalar_select %p30, 0, %s29
      %s32 = sadd.s32 1, %s23
      %s33 = scalar_select %p30, %s32, %s23
      %p34 = scmp.ge.s32.totalorder %s33, 2
      %s35 = scalar_select %p34, 0, %s33
      %s36 = ssub.s32 %s23, %s35
      %s37 = ssub.s32 %s24, %s31
      %s38 = sor.u32 %s36, %s37
      %p39 = scmp.eq.s32.totalorder %s38, 0
      %s41 = sadd.s32 %s40, 1
      %s42 = scalar_select %p39, %s40, %s41
      %p45 = pneg %p39
      %p46 = scmp.eq.s32.totalorder %s16, 3
      %p47 = por %p45, %p46
      %p48 = scmp.ne.s32.totalorder %s40, %s43
      %p49 = scmp.eq.s32.totalorder %s16, 0
      %p50 = por %p48, %p49
      %p51 = scmp.ne.s32.totalorder %s40, %s43
      %p52 = scmp.eq.s32.totalorder %s21, 3
      %p53 = por %p51, %p52
      %p54 = scmp.ne.s32.totalorder %s43, %s44
      %p55 = scmp.eq.s32.totalorder %s21, 0
      %p56 = por %p54, %p55
      %p57 = scmp.ne.s32.totalorder %s43, %s44
      %p58 = scmp.eq.s32.totalorder %s22, 3
      %p59 = por %p57, %p58
      %p61 = scmp.ne.s32.totalorder %s44, %s60
      %p62 = scmp.eq.s32.totalorder %s22, 0
      %p63 = por %p61, %p62
      %s65 = sadd.s32 %s64, 1
      %p68 = scmp.eq.s32.totalorder %s16, 3
      %p69 = scmp.ne.s32.totalorder %s64, %s66
      %p70 = scmp.eq.s32.totalorder %s16, 0
      %p71 = por %p69, %p70
      %p72 = scmp.ne.s32.totalorder %s64, %s66
      %p73 = scmp.eq.s32.totalorder %s21, 3
      %p74 = por %p72, %p73
      %p75 = scmp.ne.s32.totalorder %s66, %s67
      %p76 = scmp.eq.s32.totalorder %s21, 0
      %p77 = por %p75, %p76
      %p78 = scmp.ne.s32.totalorder %s66, %s67
      %p79 = scmp.eq.s32.totalorder %s22, 3
      %p80 = por %p78, %p79
      %p82 = scmp.ne.s32.totalorder %s67, %s81
      %p83 = scmp.eq.s32.totalorder %s22, 0
      %p84 = por %p82, %p83
      %s86 = sadd.s32 %s85, 1
      %p89 = scmp.eq.s32.totalorder %s16, 3
      %p90 = scmp.ne.s32.totalorder %s85, %s87
      %p91 = scmp.eq.s32.totalorder %s16, 0
      %p92 = por %p90, %p91
      %p93 = scmp.ne.s32.totalorder %s85, %s87
      %p94 = scmp.eq.s32.totalorder %s21, 3
      %p95 = por %p93, %p94
      %p96 = scmp.ne.s32.totalorder %s87, %s88
      %p97 = scmp.eq.s32.totalorder %s21, 0
      %p98 = por %p96, %p97
      %p99 = scmp.ne.s32.totalorder %s87, %s88
      %p100 = scmp.eq.s32.totalorder %s22, 3
      %p101 = por %p99, %p100
      %p103 = scmp.ne.s32.totalorder %s88, %s102
      %p104 = scmp.eq.s32.totalorder %s22, 0
      %p105 = por %p103, %p104
      %s107 = sadd.s32 %s106, 1
      %p110 = scmp.eq.s32.totalorder %s16, 3
      %p111 = scmp.ne.s32.totalorder %s106, %s108
      %p112 = scmp.eq.s32.totalorder %s16, 0
      %p113 = por %p111, %p112
      %p114 = scmp.ne.s32.totalorder %s106, %s108
      %p115 = scmp.eq.s32.totalorder %s21, 3
      %p116 = por %p114, %p115
      %p117 = scmp.ne.s32.totalorder %s108, %s109
      %p118 = scmp.eq.s32.totalorder %s21, 0
      %p119 = por %p117, %p118
      %p120 = scmp.ne.s32.totalorder %s108, %s109
      %p121 = scmp.eq.s32.totalorder %s22, 3
      %p122 = por %p120, %p121
      %p124 = scmp.ne.s32.totalorder %s109, %s123
      %p125 = scmp.eq.s32.totalorder %s22, 0
      %p126 = por %p124, %p125
      %s128 = sadd.s32 %s127, 1
      %p131 = scmp.eq.s32.totalorder %s16, 3
      %p132 = scmp.ne.s32.totalorder %s127, %s129
      %p133 = scmp.eq.s32.totalorder %s16, 0
      %p134 = por %p132, %p133
      %p135 = scmp.ne.s32.totalorder %s127, %s129
      %p136 = scmp.eq.s32.totalorder %s21, 3
      %p137 = por %p135, %p136
      %p138 = scmp.ne.s32.totalorder %s129, %s130
      %p139 = scmp.eq.s32.totalorder %s21, 0
      %p140 = por %p138, %p139
      %p141 = scmp.ne.s32.totalorder %s129, %s130
      %p142 = scmp.eq.s32.totalorder %s22, 3
      %p143 = por %p141, %p142
      %p145 = scmp.ne.s32.totalorder %s130, %s144
      %p146 = scmp.eq.s32.totalorder %s22, 0
      %p147 = por %p145, %p146
      %s149 = sadd.s32 %s148, 1
      %p152 = scmp.eq.s32.totalorder %s16, 3
      %p153 = scmp.ne.s32.totalorder %s148, %s150
      %p154 = scmp.eq.s32.totalorder %s16, 0
      %p155 = por %p153, %p154
      %p156 = scmp.ne.s32.totalorder %s148, %s150
      %p157 = scmp.eq.s32.totalorder %s21, 3
      %p158 = por %p156, %p157
      %p159 = scmp.ne.s32.totalorder %s150, %s151
      %p160 = scmp.eq.s32.totalorder %s21, 0
      %p161 = por %p159, %p160
      %p162 = scmp.ne.s32.totalorder %s150, %s151
      %p163 = scmp.eq.s32.totalorder %s22, 3
      %p164 = por %p162, %p163
      %p166 = scmp.ne.s32.totalorder %s151, %s165
      %p167 = scmp.eq.s32.totalorder %s22, 0
      %p168 = por %p166, %p167
      %s170 = sadd.s32 %s169, 1
      %p173 = scmp.eq.s32.totalorder %s16, 3
      %p174 = scmp.ne.s32.totalorder %s169, %s171
      %p175 = scmp.eq.s32.totalorder %s16, 0
      %p176 = por %p174, %p175
      %p177 = scmp.ne.s32.totalorder %s169, %s171
      %p178 = scmp.eq.s32.totalorder %s21, 3
      %p179 = por %p177, %p178
      %p180 = scmp.ne.s32.totalorder %s171, %s172
      %p181 = scmp.eq.s32.totalorder %s21, 0
      %p182 = por %p180, %p181
      %p183 = scmp.ne.s32.totalorder %s171, %s172
      %p184 = scmp.eq.s32.totalorder %s22, 3
      %p185 = por %p183, %p184
      %p187 = scmp.ne.s32.totalorder %s172, %s186
      %p188 = scmp.eq.s32.totalorder %s22, 0
      %p189 = por %p187, %p188
      %s190 = ssub.s32 %s23, %s35
      %s191 = ssub.s32 %s24, %s31
      %s192 = sor.u32 %s190, %s191
      %p193 = scmp.eq.s32.totalorder %s192, 0
      %s195 = sadd.s32 %s194, 1
      %s196 = scalar_select %p193, %s194, %s195
      %p199 = pneg %p193
      %p200 = scmp.eq.s32.totalorder %s16, 3
      %p201 = por %p199, %p200
      %p202 = scmp.ne.s32.totalorder %s194, %s197
      %p203 = scmp.eq.s32.totalorder %s16, 0
      %p204 = por %p202, %p203
      %p205 = scmp.ne.s32.totalorder %s194, %s197
      %p206 = scmp.eq.s32.totalorder %s21, 3
      %p207 = por %p205, %p206
      %p208 = scmp.ne.s32.totalorder %s197, %s198
      %p209 = scmp.eq.s32.totalorder %s21, 0
      %p210 = por %p208, %p209
      %p211 = scmp.ne.s32.totalorder %s197, %s198
      %p212 = scmp.eq.s32.totalorder %s22, 3
      %p213 = por %p211, %p212
      %p215 = scmp.ne.s32.totalorder %s198, %s214
      %p216 = scmp.eq.s32.totalorder %s22, 0
      %p217 = por %p215, %p216
      %s218 = ssub.s32 %s23, %s35
      %s219 = ssub.s32 %s24, %s31
      %s220 = sor.u32 %s218, %s219
      %p221 = scmp.eq.s32.totalorder %s220, 0
      %s223 = sadd.s32 %s222, 1
      %s224 = scalar_select %p221, %s222, %s223
      %p227 = pneg %p221
      %p228 = scmp.eq.s32.totalorder %s16, 3
      %p229 = por %p227, %p228
      %p230 = scmp.ne.s32.totalorder %s222, %s225
      %p231 = scmp.eq.s32.totalorder %s16, 0
      %p232 = por %p230, %p231
      %p233 = scmp.ne.s32.totalorder %s222, %s225
      %p234 = scmp.eq.s32.totalorder %s21, 3
      %p235 = por %p233, %p234
      %p236 = scmp.ne.s32.totalorder %s225, %s226
      %p237 = scmp.eq.s32.totalorder %s21, 0
      %p238 = por %p236, %p237
      %p239 = scmp.ne.s32.totalorder %s225, %s226
      %p240 = scmp.eq.s32.totalorder %s22, 3
      %p241 = por %p239, %p240
      %p243 = scmp.ne.s32.totalorder %s226, %s242
      %p244 = scmp.eq.s32.totalorder %s22, 0
      %p245 = por %p243, %p244
      %s246 = ssub.s32 %s23, %s35
      %s247 = ssub.s32 %s24, %s31
      %s248 = sor.u32 %s246, %s247
      %p249 = scmp.eq.s32.totalorder %s248, 0
      %s251 = sadd.s32 %s250, 1
      %s252 = scalar_select %p249, %s250, %s251
      %p255 = pneg %p249
      %p256 = scmp.eq.s32.totalorder %s16, 3
      %p257 = por %p255, %p256
      %p258 = scmp.ne.s32.totalorder %s250, %s253
      %p259 = scmp.eq.s32.totalorder %s16, 0
      %p260 = por %p258, %p259
      %p261 = scmp.ne.s32.totalorder %s250, %s253
      %p262 = scmp.eq.s32.totalorder %s21, 3
      %p263 = por %p261, %p262
      %p264 = scmp.ne.s32.totalorder %s253, %s254
      %p265 = scmp.eq.s32.totalorder %s21, 0
      %p266 = por %p264, %p265
      %p267 = scmp.ne.s32.totalorder %s253, %s254
      %p268 = scmp.eq.s32.totalorder %s22, 3
      %p269 = por %p267, %p268
      %p271 = scmp.ne.s32.totalorder %s254, %s270
      %p272 = scmp.eq.s32.totalorder %s22, 0
      %p273 = por %p271, %p272
      %p274 = scmp.le.s32.totalorder 1, %s16
      %p275 = scmp.lt.s32.totalorder %s16, 5
      %p276 = pnand %p274, %p275
      %p277 = pneg %p276
      // Predicated region
      $region9: #{tpu_custom_call.1} parent=5 // pred_check
        _
      $region10: #{tpu_custom_call.1} parent=5 // pred_check_branch
        %279 = sbr.rel (%p276) target = $region12
      $region11: #{tpu_custom_call.1} parent=5 // pred_region
        %s280 = ssub.s32 %s16, 1
        // Predicated region
        $region13: #{tpu_custom_call.1} parent=11 // pred_check
          %p281 = pneg %p77
        $region14: #{tpu_custom_call.1} parent=11 // pred_check_branch
          %283 = sbr.rel (%p281) target = $region16
        $region15: #{tpu_custom_call.1} parent=11 // pred_region
          _
        $region16: #{tpu_custom_call.1} parent=11 // pred_fallthru
          _
        // Predicated region
        $region17: #{tpu_custom_call.1} parent=11 // pred_check
          %p284 = pneg %p98
        $region18: #{tpu_custom_call.1} parent=11 // pred_check_branch
          %286 = sbr.rel (%p284) target = $region20
        $region19: #{tpu_custom_call.1} parent=11 // pred_region
          _
        $region20: #{tpu_custom_call.1} parent=11 // pred_fallthru
          _
        // Predicated region
        $region21: #{tpu_custom_call.1} parent=11 // pred_check
          %p287 = pneg %p119
        $region22: #{tpu_custom_call.1} parent=11 // pred_check_branch
          %289 = sbr.rel (%p287) target = $region24
        $region23: #{tpu_custom_call.1} parent=11 // pred_region
          _
        $region24: #{tpu_custom_call.1} parent=11 // pred_fallthru
          _
        // Predicated region
        $region25: #{tpu_custom_call.1} parent=11 // pred_check
          %p290 = pneg %p140
        $region26: #{tpu_custom_call.1} parent=11 // pred_check_branch
          %292 = sbr.rel (%p290) target = $region28
        $region27: #{tpu_custom_call.1} parent=11 // pred_region
          _
        $region28: #{tpu_custom_call.1} parent=11 // pred_fallthru
          _
        // Predicated region
        $region29: #{tpu_custom_call.1} parent=11 // pred_check
          %p293 = pneg %p161
        $region30: #{tpu_custom_call.1} parent=11 // pred_check_branch
          %295 = sbr.rel (%p293) target = $region32
        $region31: #{tpu_custom_call.1} parent=11 // pred_region
          _
        $region32: #{tpu_custom_call.1} parent=11 // pred_fallthru
          _
        // Predicated region
        $region33: #{tpu_custom_call.1} parent=11 // pred_check
          %p296 = pneg %p182
        $region34: #{tpu_custom_call.1} parent=11 // pred_check_branch
          %298 = sbr.rel (%p296) target = $region36
        $region35: #{tpu_custom_call.1} parent=11 // pred_region
          _
        $region36: #{tpu_custom_call.1} parent=11 // pred_fallthru
          _
      $region12: #{tpu_custom_call.1} parent=5 // pred_fallthru
        _
      %p299 = scmp.lt.s32.totalorder %s16, 4
      // Predicated region
      $region37: #{tpu_custom_call.1} parent=5 // pred_check
        %p300 = pneg %p299
      $region38: #{tpu_custom_call.1} parent=5 // pred_check_branch
        %302 = sbr.rel (%p300) target = $region40
      $region39: #{tpu_custom_call.1} parent=5 // pred_region
        // Predicated region
        $region41: #{tpu_custom_call.1} parent=39 // pred_check
          %p303 = pneg %p50
        $region42: #{tpu_custom_call.1} parent=39 // pred_check_branch
          %305 = sbr.rel (%p303) target = $region44
        $region43: #{tpu_custom_call.1} parent=39 // pred_region
          %s306 = smul.u32 32, %s24
          %p307 = scmp.lt.s32.totalorder %s23, 1
          %s308 = scalar_select %p307, %s23, 1
          %p309 = scmp.lt.s32.totalorder %s306, 63
          %s310 = scalar_select %p309, %s306, 63
          %s311 = smul.addr %s308, 64
          %s312 = sadd.s32 %s310, %s311
          %s313 = smul.addr %s312, 4
          %s314 = scalar_lea.vmem %s0, %s313
          %s315 = smul.u32 32, %s24
        $region44: #{tpu_custom_call.1} parent=39 // pred_fallthru
          _
      $region40: #{tpu_custom_call.1} parent=5 // pred_fallthru
        _
      %p316 = scmp.le.s32.totalorder 1, %s16
      %p317 = scmp.lt.s32.totalorder %s16, 5
      %p318 = pnand %p316, %p317
      %p319 = pneg %p318
      // Predicated region
      $region45: #{tpu_custom_call.1} parent=5 // pred_check
        _
      $region46: #{tpu_custom_call.1} parent=5 // pred_check_branch
        %321 = sbr.rel (%p318) target = $region48
      $region47: #{tpu_custom_call.1} parent=5 // pred_region
        %s322 = ssub.s32 %s16, 1
        %s323 = smul.u32 32, %s26
        %p324 = scmp.lt.s32.totalorder %s25, 1
        %s325 = scalar_select %p324, %s25, 1
        %p326 = scmp.lt.s32.totalorder %s323, 63
        %s327 = scalar_select %p326, %s323, 63
        %s328 = smul.addr %s325, 64
        %s329 = sadd.s32 %s327, %s328
        %s330 = smul.addr %s329, 4
        %s331 = scalar_lea.vmem %s0, %s330
        %p332 = pneg %p56
        %p333 = pneg %p53
        %p334 = pneg %p77
        %p335 = pneg %p74
        %p336 = pneg %p98
        %p337 = pneg %p95
        %p338 = pneg %p119
        %p339 = pneg %p116
        %p340 = pneg %p140
        %p341 = pneg %p137
        %p342 = pneg %p161
        %p343 = pneg %p158
        %p344 = pneg %p182
        %p345 = pneg %p179
        %p346 = pneg %p210
        %p347 = pneg %p207
        %s348 = sand.u32 %s197, 1
        %s349 = sand.u32 %s197, 1
        %s350 = smul.addr %s349, 512
        %s351 = scalar_lea.vmem [#allocation2], %s350
        %p352 = pneg %p238
        %p353 = pneg %p235
        %s354 = sand.u32 %s225, 1
        %s355 = sand.u32 %s225, 1
        %s356 = smul.addr %s355, 512
        %s357 = scalar_lea.vmem [#allocation3], %s356
        %p358 = pneg %p266
        %p359 = pneg %p263
        %s360 = sand.u32 %s253, 1
        %s361 = sand.u32 %s253, 1
        %s362 = smul.addr %s361, 512
        %s363 = scalar_lea.vmem [#allocation4], %s362
        %s364 = smul.u32 32, %s26
        %p365 = scmp.lt.s32.totalorder %s25, 1
        %s366 = scalar_select %p365, %s25, 1
        %p367 = scmp.lt.s32.totalorder %s364, 63
        %s368 = scalar_select %p367, %s364, 63
        %s369 = smul.addr %s366, 64
        %s370 = sadd.s32 %s368, %s369
        %s371 = smul.addr %s370, 4
        %s372 = scalar_lea.vmem %s0, %s371
        %s373 = smul.u32 32, %s26
        %s374 = smul.u32 32, %s26
        %s375 = smul.u32 32, %s26
        %s376 = smul.u32 32, %s26
        %v377 = vld [vmem:[%s372] sm:$0xf]
        %v378 = vld [vmem:[%s372 + $0x4] sm:$0xf]
        %v379 = vld [vmem:[%s372 + $0x8] sm:$0xf]
        %v380 = vld [vmem:[%s372 + $0xc] sm:$0xf]
        %v381 = vld [vmem:[%s372 + $0x10] sm:$0xf]
        %v382 = vld [vmem:[%s372 + $0x14] sm:$0xf]
        %v383 = vld [vmem:[%s372 + $0x18] sm:$0xf]
        %v384 = vld [vmem:[%s372 + $0x1c] sm:$0xf]
        %v385 = vld [vmem:[%s372 + $0x20] sm:$0xf]
        %v386 = vld [vmem:[%s372 + $0x24] sm:$0xf]
        %v387 = vld [vmem:[%s372 + $0x28] sm:$0xf]
        %v388 = vld [vmem:[%s372 + $0x2c] sm:$0xf]
        %v389 = vld [vmem:[%s372 + $0x30] sm:$0xf]
        %v390 = vld [vmem:[%s372 + $0x34] sm:$0xf]
        %v391 = vld [vmem:[%s372 + $0x38] sm:$0xf]
        %v392 = vld [vmem:[%s372 + $0x3c] sm:$0xf]
        %v393 = vld [vmem:[%s372 + $0x40] sm:$0xf]
        %v394 = vld [vmem:[%s372 + $0x44] sm:$0xf]
        %v395 = vld [vmem:[%s372 + $0x48] sm:$0xf]
        %v396 = vld [vmem:[%s372 + $0x4c] sm:$0xf]
        %v397 = vld [vmem:[%s372 + $0x50] sm:$0xf]
        %v398 = vld [vmem:[%s372 + $0x54] sm:$0xf]
        %v399 = vld [vmem:[%s372 + $0x58] sm:$0xf]
        %v400 = vld [vmem:[%s372 + $0x5c] sm:$0xf]
        %v401 = vld [vmem:[%s372 + $0x60] sm:$0xf]
        %v402 = vld [vmem:[%s372 + $0x64] sm:$0xf]
        %v403 = vld [vmem:[%s372 + $0x68] sm:$0xf]
        %v404 = vld [vmem:[%s372 + $0x6c] sm:$0xf]
        %v405 = vld [vmem:[%s372 + $0x70] sm:$0xf]
        %v406 = vld [vmem:[%s372 + $0x74] sm:$0xf]
        %v407 = vld [vmem:[%s372 + $0x78] sm:$0xf]
        %v408 = vld [vmem:[%s372 + $0x7c] sm:$0xf]
        %v409 = vld [vmem:[%s1] sm:$0xf]
        %v410 = vld [vmem:[%s1 + $0x4] sm:$0xf]
        %v411 = vld [vmem:[%s1 + $0x8] sm:$0xf]
        %v412 = vld [vmem:[%s1 + $0xc] sm:$0xf]
        %v413 = vld [vmem:[%s1 + $0x10] sm:$0xf]
        %v414 = vld [vmem:[%s1 + $0x14] sm:$0xf]
        %v415 = vld [vmem:[%s1 + $0x18] sm:$0xf]
        %v416 = vld [vmem:[%s1 + $0x1c] sm:$0xf]
        %v417 = vld [vmem:[%s1 + $0x20] sm:$0xf]
        %v418 = vld [vmem:[%s1 + $0x24] sm:$0xf]
        %v419 = vld [vmem:[%s1 + $0x28] sm:$0xf]
        %v420 = vld [vmem:[%s1 + $0x2c] sm:$0xf]
        %v421 = vld [vmem:[%s1 + $0x30] sm:$0xf]
        %v422 = vld [vmem:[%s1 + $0x34] sm:$0xf]
        %v423 = vld [vmem:[%s1 + $0x38] sm:$0xf]
        %v424 = vld [vmem:[%s1 + $0x3c] sm:$0xf]
        %v425 = vld [vmem:[%s2] sm:$0x1]
        %v427 = vperm.slane %v425, 0
        %v461 = vunpack.c.l.b16 %v377
        %v462 = vunpack.c.l.b16 %v378
        %v463 = vunpack.c.l.b16 %v379
        %v464 = vunpack.c.l.b16 %v380
        %v465 = vunpack.c.l.b16 %v381
        %v466 = vunpack.c.l.b16 %v382
        %v467 = vunpack.c.l.b16 %v383
        %v468 = vunpack.c.l.b16 %v384
        %v469 = vunpack.c.l.b16 %v385
        %v470 = vunpack.c.l.b16 %v386
        %v471 = vunpack.c.l.b16 %v387
        %v472 = vunpack.c.l.b16 %v388
        %v473 = vunpack.c.l.b16 %v389
        %v474 = vunpack.c.l.b16 %v390
        %v475 = vunpack.c.l.b16 %v391
        %v476 = vunpack.c.l.b16 %v392
        %v477 = vunpack.c.l.b16 %v393
        %v478 = vunpack.c.l.b16 %v394
        %v479 = vunpack.c.l.b16 %v395
        %v480 = vunpack.c.l.b16 %v396
        %v481 = vunpack.c.l.b16 %v397
        %v482 = vunpack.c.l.b16 %v398
        %v483 = vunpack.c.l.b16 %v399
        %v484 = vunpack.c.l.b16 %v400
        %v485 = vunpack.c.l.b16 %v401
        %v486 = vunpack.c.l.b16 %v402
        %v487 = vunpack.c.l.b16 %v403
        %v488 = vunpack.c.l.b16 %v404
        %v489 = vunpack.c.l.b16 %v405
        %v490 = vunpack.c.l.b16 %v406
        %v491 = vunpack.c.l.b16 %v407
        %v492 = vunpack.c.l.b16 %v408
        %v493 = vpack.c.b16 %v462, %v461
        %v494 = vpack.c.b16 %v464, %v463
        %v495 = vpack.c.b16 %v466, %v465
        %v496 = vpack.c.b16 %v468, %v467
        %v497 = vpack.c.b16 %v470, %v469
        %v498 = vpack.c.b16 %v472, %v471
        %v499 = vpack.c.b16 %v474, %v473
        %v500 = vpack.c.b16 %v476, %v475
        %v501 = vpack.c.b16 %v478, %v477
        %v502 = vpack.c.b16 %v480, %v479
        %v503 = vpack.c.b16 %v482, %v481
        %v504 = vpack.c.b16 %v484, %v483
        %v505 = vpack.c.b16 %v486, %v485
        %v506 = vpack.c.b16 %v488, %v487
        %v507 = vpack.c.b16 %v490, %v489
        %v508 = vpack.c.b16 %v492, %v491
        %v541 = vunpack.c.l.b16 %v409
        %v542 = vunpack.c.l.b16 %v410
        %v543 = vunpack.c.l.b16 %v411
        %v544 = vunpack.c.l.b16 %v412
        %v545 = vunpack.c.l.b16 %v413
        %v546 = vunpack.c.l.b16 %v414
        %v547 = vunpack.c.l.b16 %v415
        %v548 = vunpack.c.l.b16 %v416
        %v549 = vunpack.c.l.b16 %v417
        %v550 = vunpack.c.l.b16 %v418
        %v551 = vunpack.c.l.b16 %v419
        %v552 = vunpack.c.l.b16 %v420
        %v553 = vunpack.c.l.b16 %v421
        %v554 = vunpack.c.l.b16 %v422
        %v555 = vunpack.c.l.b16 %v423
        %v556 = vunpack.c.l.b16 %v424
        %v557 = vpack.c.b16 %v542, %v541
        %v558 = vpack.c.b16 %v544, %v543
        %v559 = vpack.c.b16 %v546, %v545
        %v560 = vpack.c.b16 %v548, %v547
        %v561 = vpack.c.b16 %v550, %v549
        %v562 = vpack.c.b16 %v552, %v551
        %v563 = vpack.c.b16 %v554, %v553
        %v564 = vpack.c.b16 %v556, %v555
        %573 = vmatpush.bf16.msra.mxu0 %v564
        %574 = vmatpush.bf16.msra.mxu0 %v563
        %575 = vmatpush.bf16.msra.mxu0 %v562
        %576 = vmatpush.bf16.msra.mxu0 %v561
        %577 = vmatpush.bf16.msra.mxu0 %v560
        %578 = vmatpush.bf16.msra.mxu0 %v559
        %579 = vmatpush.bf16.msra.mxu0 %v558
        %580 = vmatpush.bf16.msra.mxu0 %v557
        %581 = vmatmul.bf16.gmra.mxu0 %v493
        %v582 = vpop.f32.mrf.mxu0
        %v583 = vadd.f32 %v427, %v582
        %v584 = vpop.f32.mrf.mxu0
        %v585 = vadd.f32 %v427, %v584
        %586 = vmatmul.bf16.gmra.mxu0 %v494
        %v587 = vpop.f32.mrf.mxu0
        %v588 = vadd.f32 %v427, %v587
        %v589 = vpop.f32.mrf.mxu0
        %v590 = vadd.f32 %v427, %v589
        %591 = vmatmul.bf16.gmra.mxu0 %v495
        %v592 = vpop.f32.mrf.mxu0
        %v593 = vadd.f32 %v427, %v592
        %v594 = vpop.f32.mrf.mxu0
        %v595 = vadd.f32 %v427, %v594
        %596 = vmatmul.bf16.gmra.mxu0 %v496
        %v597 = vpop.f32.mrf.mxu0
        %v598 = vadd.f32 %v427, %v597
        %v599 = vpop.f32.mrf.mxu0
        %v600 = vadd.f32 %v427, %v599
        %601 = vmatmul.bf16.gmra.mxu0 %v497
        %v602 = vpop.f32.mrf.mxu0
        %v603 = vadd.f32 %v427, %v602
        %v604 = vpop.f32.mrf.mxu0
        %v605 = vadd.f32 %v427, %v604
        %606 = vmatmul.bf16.gmra.mxu0 %v498
        %v607 = vpop.f32.mrf.mxu0
        %v608 = vadd.f32 %v427, %v607
        %v609 = vpop.f32.mrf.mxu0
        %v610 = vadd.f32 %v427, %v609
        %611 = vmatmul.bf16.gmra.mxu0 %v499
        %v612 = vpop.f32.mrf.mxu0
        %v613 = vadd.f32 %v427, %v612
        %v614 = vpop.f32.mrf.mxu0
        %v615 = vadd.f32 %v427, %v614
        %616 = vmatmul.bf16.gmra.mxu0 %v500
        %v617 = vpop.f32.mrf.mxu0
        %v618 = vadd.f32 %v427, %v617
        %v619 = vpop.f32.mrf.mxu0
        %v620 = vadd.f32 %v427, %v619
        %621 = vmatmul.bf16.gmra.mxu0 %v501
        %v622 = vpop.f32.mrf.mxu0
        %v623 = vadd.f32 %v427, %v622
        %v624 = vpop.f32.mrf.mxu0
        %v625 = vadd.f32 %v427, %v624
        %626 = vmatmul.bf16.gmra.mxu0 %v502
        %v627 = vpop.f32.mrf.mxu0
        %v628 = vadd.f32 %v427, %v627
        %v629 = vpop.f32.mrf.mxu0
        %v630 = vadd.f32 %v427, %v629
        %631 = vmatmul.bf16.gmra.mxu0 %v503
        %v632 = vpop.f32.mrf.mxu0
        %v633 = vadd.f32 %v427, %v632
        %v634 = vpop.f32.mrf.mxu0
        %v635 = vadd.f32 %v427, %v634
        %636 = vmatmul.bf16.gmra.mxu0 %v504
        %v637 = vpop.f32.mrf.mxu0
        %v638 = vadd.f32 %v427, %v637
        %v639 = vpop.f32.mrf.mxu0
        %v640 = vadd.f32 %v427, %v639
        %641 = vmatmul.bf16.gmra.mxu0 %v505
        %v642 = vpop.f32.mrf.mxu0
        %v643 = vadd.f32 %v427, %v642
        %v644 = vpop.f32.mrf.mxu0
        %v645 = vadd.f32 %v427, %v644
        %646 = vmatmul.bf16.gmra.mxu0 %v506
        %v647 = vpop.f32.mrf.mxu0
        %v648 = vadd.f32 %v427, %v647
        %v649 = vpop.f32.mrf.mxu0
        %v650 = vadd.f32 %v427, %v649
        %651 = vmatmul.bf16.gmra.mxu0 %v507
        %v652 = vpop.f32.mrf.mxu0
        %v653 = vadd.f32 %v427, %v652
        %v654 = vpop.f32.mrf.mxu0
        %v655 = vadd.f32 %v427, %v654
        %656 = vmatmul.bf16.gmra.mxu0 %v508
        %v657 = vpop.f32.mrf.mxu0
        %v658 = vadd.f32 %v427, %v657
        %v659 = vpop.f32.mrf.mxu0
        %v660 = vadd.f32 %v427, %v659
        %661 = vdwg.mxu0
        %v662 = vld [vmem:[%s3] sm:$0xf]
        %v663 = vld [vmem:[%s3 + $0x4] sm:$0xf]
        %v664 = vld [vmem:[%s3 + $0x8] sm:$0xf]
        %v665 = vld [vmem:[%s3 + $0xc] sm:$0xf]
        %v666 = vld [vmem:[%s3 + $0x10] sm:$0xf]
        %v667 = vld [vmem:[%s3 + $0x14] sm:$0xf]
        %v668 = vld [vmem:[%s3 + $0x18] sm:$0xf]
        %v669 = vld [vmem:[%s3 + $0x1c] sm:$0xf]
        %v670 = vld [vmem:[%s3 + $0x20] sm:$0xf]
        %v671 = vld [vmem:[%s3 + $0x24] sm:$0xf]
        %v672 = vld [vmem:[%s3 + $0x28] sm:$0xf]
        %v673 = vld [vmem:[%s3 + $0x2c] sm:$0xf]
        %v674 = vld [vmem:[%s3 + $0x30] sm:$0xf]
        %v675 = vld [vmem:[%s3 + $0x34] sm:$0xf]
        %v676 = vld [vmem:[%s3 + $0x38] sm:$0xf]
        %v677 = vld [vmem:[%s3 + $0x3c] sm:$0xf]
        %v678 = vld [vmem:[%s4] sm:$0x1]
        %v680 = vperm.slane %v678, 0
        %v698 = vunpack.c.l.b16 %v662
        %v699 = vunpack.c.l.b16 %v663
        %v700 = vunpack.c.l.b16 %v664
        %v701 = vunpack.c.l.b16 %v665
        %v702 = vunpack.c.l.b16 %v666
        %v703 = vunpack.c.l.b16 %v667
        %v704 = vunpack.c.l.b16 %v668
        %v705 = vunpack.c.l.b16 %v669
        %v706 = vunpack.c.l.b16 %v670
        %v707 = vunpack.c.l.b16 %v671
        %v708 = vunpack.c.l.b16 %v672
        %v709 = vunpack.c.l.b16 %v673
        %v710 = vunpack.c.l.b16 %v674
        %v711 = vunpack.c.l.b16 %v675
        %v712 = vunpack.c.l.b16 %v676
        %v713 = vunpack.c.l.b16 %v677
        %v714 = vpack.c.b16 %v699, %v698
        %v715 = vpack.c.b16 %v701, %v700
        %v716 = vpack.c.b16 %v703, %v702
        %v717 = vpack.c.b16 %v705, %v704
        %v718 = vpack.c.b16 %v707, %v706
        %v719 = vpack.c.b16 %v709, %v708
        %v720 = vpack.c.b16 %v711, %v710
        %v721 = vpack.c.b16 %v713, %v712
        %730 = vmatpush.bf16.msra.mxu0 %v721
        %731 = vmatpush.bf16.msra.mxu0 %v720
        %732 = vmatpush.bf16.msra.mxu0 %v719
        %733 = vmatpush.bf16.msra.mxu0 %v718
        %734 = vmatpush.bf16.msra.mxu0 %v717
        %735 = vmatpush.bf16.msra.mxu0 %v716
        %736 = vmatpush.bf16.msra.mxu0 %v715
        %737 = vmatpush.bf16.msra.mxu0 %v714
        %738 = vmatmul.bf16.gmra.mxu0 %v493
        %v739 = vpop.f32.mrf.mxu0
        %v740 = vadd.f32 %v680, %v739
        %v741 = vpop.f32.mrf.mxu0
        %v742 = vadd.f32 %v680, %v741
        %743 = vmatmul.bf16.gmra.mxu0 %v494
        %v744 = vpop.f32.mrf.mxu0
        %v745 = vadd.f32 %v680, %v744
        %v746 = vpop.f32.mrf.mxu0
        %v747 = vadd.f32 %v680, %v746
        %748 = vmatmul.bf16.gmra.mxu0 %v495
        %v749 = vpop.f32.mrf.mxu0
        %v750 = vadd.f32 %v680, %v749
        %v751 = vpop.f32.mrf.mxu0
        %v752 = vadd.f32 %v680, %v751
        %753 = vmatmul.bf16.gmra.mxu0 %v496
        %v754 = vpop.f32.mrf.mxu0
        %v755 = vadd.f32 %v680, %v754
        %v756 = vpop.f32.mrf.mxu0
        %v757 = vadd.f32 %v680, %v756
        %758 = vmatmul.bf16.gmra.mxu0 %v497
        %v759 = vpop.f32.mrf.mxu0
        %v760 = vadd.f32 %v680, %v759
        %v761 = vpop.f32.mrf.mxu0
        %v762 = vadd.f32 %v680, %v761
        %763 = vmatmul.bf16.gmra.mxu0 %v498
        %v764 = vpop.f32.mrf.mxu0
        %v765 = vadd.f32 %v680, %v764
        %v766 = vpop.f32.mrf.mxu0
        %v767 = vadd.f32 %v680, %v766
        %768 = vmatmul.bf16.gmra.mxu0 %v499
        %v769 = vpop.f32.mrf.mxu0
        %v770 = vadd.f32 %v680, %v769
        %v771 = vpop.f32.mrf.mxu0
        %v772 = vadd.f32 %v680, %v771
        %773 = vmatmul.bf16.gmra.mxu0 %v500
        %v774 = vpop.f32.mrf.mxu0
        %v775 = vadd.f32 %v680, %v774
        %v776 = vpop.f32.mrf.mxu0
        %v777 = vadd.f32 %v680, %v776
        %778 = vmatmul.bf16.gmra.mxu0 %v501
        %v779 = vpop.f32.mrf.mxu0
        %v780 = vadd.f32 %v680, %v779
        %v781 = vpop.f32.mrf.mxu0
        %v782 = vadd.f32 %v680, %v781
        %783 = vmatmul.bf16.gmra.mxu0 %v502
        %v784 = vpop.f32.mrf.mxu0
        %v785 = vadd.f32 %v680, %v784
        %v786 = vpop.f32.mrf.mxu0
        %v787 = vadd.f32 %v680, %v786
        %788 = vmatmul.bf16.gmra.mxu0 %v503
        %v789 = vpop.f32.mrf.mxu0
        %v790 = vadd.f32 %v680, %v789
        %v791 = vpop.f32.mrf.mxu0
        %v792 = vadd.f32 %v680, %v791
        %793 = vmatmul.bf16.gmra.mxu0 %v504
        %v794 = vpop.f32.mrf.mxu0
        %v795 = vadd.f32 %v680, %v794
        %v796 = vpop.f32.mrf.mxu0
        %v797 = vadd.f32 %v680, %v796
        %798 = vmatmul.bf16.gmra.mxu0 %v505
        %v799 = vpop.f32.mrf.mxu0
        %v800 = vadd.f32 %v680, %v799
        %v801 = vpop.f32.mrf.mxu0
        %v802 = vadd.f32 %v680, %v801
        %803 = vmatmul.bf16.gmra.mxu0 %v506
        %v804 = vpop.f32.mrf.mxu0
        %v805 = vadd.f32 %v680, %v804
        %v806 = vpop.f32.mrf.mxu0
        %v807 = vadd.f32 %v680, %v806
        %808 = vmatmul.bf16.gmra.mxu0 %v507
        %v809 = vpop.f32.mrf.mxu0
        %v810 = vadd.f32 %v680, %v809
        %v811 = vpop.f32.mrf.mxu0
        %v812 = vadd.f32 %v680, %v811
        %813 = vmatmul.bf16.gmra.mxu0 %v508
        %v814 = vpop.f32.mrf.mxu0
        %v815 = vadd.f32 %v680, %v814
        %v816 = vpop.f32.mrf.mxu0
        %v817 = vadd.f32 %v680, %v816
        %818 = vdwg.mxu0
        %v819 = vld [vmem:[%s5] sm:$0xf]
        %v820 = vld [vmem:[%s5 + $0x4] sm:$0xf]
        %v821 = vld [vmem:[%s5 + $0x8] sm:$0xf]
        %v822 = vld [vmem:[%s5 + $0xc] sm:$0xf]
        %v823 = vld [vmem:[%s5 + $0x10] sm:$0xf]
        %v824 = vld [vmem:[%s5 + $0x14] sm:$0xf]
        %v825 = vld [vmem:[%s5 + $0x18] sm:$0xf]
        %v826 = vld [vmem:[%s5 + $0x1c] sm:$0xf]
        %v827 = vld [vmem:[%s5 + $0x20] sm:$0xf]
        %v828 = vld [vmem:[%s5 + $0x24] sm:$0xf]
        %v829 = vld [vmem:[%s5 + $0x28] sm:$0xf]
        %v830 = vld [vmem:[%s5 + $0x2c] sm:$0xf]
        %v831 = vld [vmem:[%s5 + $0x30] sm:$0xf]
        %v832 = vld [vmem:[%s5 + $0x34] sm:$0xf]
        %v833 = vld [vmem:[%s5 + $0x38] sm:$0xf]
        %v834 = vld [vmem:[%s5 + $0x3c] sm:$0xf]
        %v835 = vld [vmem:[%s6] sm:$0x1]
        %v837 = vperm.slane %v835, 0
        %v855 = vunpack.c.l.b16 %v819
        %v856 = vunpack.c.l.b16 %v820
        %v857 = vunpack.c.l.b16 %v821
        %v858 = vunpack.c.l.b16 %v822
        %v859 = vunpack.c.l.b16 %v823
        %v860 = vunpack.c.l.b16 %v824
        %v861 = vunpack.c.l.b16 %v825
        %v862 = vunpack.c.l.b16 %v826
        %v863 = vunpack.c.l.b16 %v827
        %v864 = vunpack.c.l.b16 %v828
        %v865 = vunpack.c.l.b16 %v829
        %v866 = vunpack.c.l.b16 %v830
        %v867 = vunpack.c.l.b16 %v831
        %v868 = vunpack.c.l.b16 %v832
        %v869 = vunpack.c.l.b16 %v833
        %v870 = vunpack.c.l.b16 %v834
        %v871 = vpack.c.b16 %v856, %v855
        %v872 = vpack.c.b16 %v858, %v857
        %v873 = vpack.c.b16 %v860, %v859
        %v874 = vpack.c.b16 %v862, %v861
        %v875 = vpack.c.b16 %v864, %v863
        %v876 = vpack.c.b16 %v866, %v865
        %v877 = vpack.c.b16 %v868, %v867
        %v878 = vpack.c.b16 %v870, %v869
        %887 = vmatpush.bf16.msra.mxu0 %v878
        %888 = vmatpush.bf16.msra.mxu0 %v877
        %889 = vmatpush.bf16.msra.mxu0 %v876
        %890 = vmatpush.bf16.msra.mxu0 %v875
        %891 = vmatpush.bf16.msra.mxu0 %v874
        %892 = vmatpush.bf16.msra.mxu0 %v873
        %893 = vmatpush.bf16.msra.mxu0 %v872
        %894 = vmatpush.bf16.msra.mxu0 %v871
        %895 = vmatmul.bf16.gmra.mxu0 %v493
        %v896 = vpop.f32.mrf.mxu0
        %v897 = vadd.f32 %v837, %v896
        %v898 = vpop.f32.mrf.mxu0
        %v899 = vadd.f32 %v837, %v898
        %900 = vmatmul.bf16.gmra.mxu0 %v494
        %v901 = vpop.f32.mrf.mxu0
        %v902 = vadd.f32 %v837, %v901
        %v903 = vpop.f32.mrf.mxu0
        %v904 = vadd.f32 %v837, %v903
        %905 = vmatmul.bf16.gmra.mxu0 %v495
        %v906 = vpop.f32.mrf.mxu0
        %v907 = vadd.f32 %v837, %v906
        %v908 = vpop.f32.mrf.mxu0
        %v909 = vadd.f32 %v837, %v908
        %910 = vmatmul.bf16.gmra.mxu0 %v496
        %v911 = vpop.f32.mrf.mxu0
        %v912 = vadd.f32 %v837, %v911
        %v913 = vpop.f32.mrf.mxu0
        %v914 = vadd.f32 %v837, %v913
        %915 = vmatmul.bf16.gmra.mxu0 %v497
        %v916 = vpop.f32.mrf.mxu0
        %v917 = vadd.f32 %v837, %v916
        %v918 = vpop.f32.mrf.mxu0
        %v919 = vadd.f32 %v837, %v918
        %920 = vmatmul.bf16.gmra.mxu0 %v498
        %v921 = vpop.f32.mrf.mxu0
        %v922 = vadd.f32 %v837, %v921
        %v923 = vpop.f32.mrf.mxu0
        %v924 = vadd.f32 %v837, %v923
        %925 = vmatmul.bf16.gmra.mxu0 %v499
        %v926 = vpop.f32.mrf.mxu0
        %v927 = vadd.f32 %v837, %v926
        %v928 = vpop.f32.mrf.mxu0
        %v929 = vadd.f32 %v837, %v928
        %930 = vmatmul.bf16.gmra.mxu0 %v500
        %v931 = vpop.f32.mrf.mxu0
        %v932 = vadd.f32 %v837, %v931
        %v933 = vpop.f32.mrf.mxu0
        %v934 = vadd.f32 %v837, %v933
        %935 = vmatmul.bf16.gmra.mxu0 %v501
        %v936 = vpop.f32.mrf.mxu0
        %v937 = vadd.f32 %v837, %v936
        %v938 = vpop.f32.mrf.mxu0
        %v939 = vadd.f32 %v837, %v938
        %940 = vmatmul.bf16.gmra.mxu0 %v502
        %v941 = vpop.f32.mrf.mxu0
        %v942 = vadd.f32 %v837, %v941
        %v943 = vpop.f32.mrf.mxu0
        %v944 = vadd.f32 %v837, %v943
        %945 = vmatmul.bf16.gmra.mxu0 %v503
        %v946 = vpop.f32.mrf.mxu0
        %v947 = vadd.f32 %v837, %v946
        %v948 = vpop.f32.mrf.mxu0
        %v949 = vadd.f32 %v837, %v948
        %950 = vmatmul.bf16.gmra.mxu0 %v504
        %v951 = vpop.f32.mrf.mxu0
        %v952 = vadd.f32 %v837, %v951
        %v953 = vpop.f32.mrf.mxu0
        %v954 = vadd.f32 %v837, %v953
        %955 = vmatmul.bf16.gmra.mxu0 %v505
        %v956 = vpop.f32.mrf.mxu0
        %v957 = vadd.f32 %v837, %v956
        %v958 = vpop.f32.mrf.mxu0
        %v959 = vadd.f32 %v837, %v958
        %960 = vmatmul.bf16.gmra.mxu0 %v506
        %v961 = vpop.f32.mrf.mxu0
        %v962 = vadd.f32 %v837, %v961
        %v963 = vpop.f32.mrf.mxu0
        %v964 = vadd.f32 %v837, %v963
        %965 = vmatmul.bf16.gmra.mxu0 %v507
        %v966 = vpop.f32.mrf.mxu0
        %v967 = vadd.f32 %v837, %v966
        %v968 = vpop.f32.mrf.mxu0
        %v969 = vadd.f32 %v837, %v968
        %970 = vmatmul.bf16.gmra.mxu0 %v508
        %v971 = vpop.f32.mrf.mxu0
        %v972 = vadd.f32 %v837, %v971
        %v973 = vpop.f32.mrf.mxu0
        %v974 = vadd.f32 %v837, %v973
        %975 = vdwg.mxu0
        %v976 = vpack.c.bf16 %v583, %v583
        %v977 = vpack.c.bf16 %v585, %v585
        %v978 = vpack.c.bf16 %v588, %v588
        %v979 = vpack.c.bf16 %v590, %v590
        %v980 = vpack.c.bf16 %v593, %v593
        %v981 = vpack.c.bf16 %v595, %v595
        %v982 = vpack.c.bf16 %v598, %v598
        %v983 = vpack.c.bf16 %v600, %v600
        %v984 = vpack.c.bf16 %v603, %v603
        %v985 = vpack.c.bf16 %v605, %v605
        %v986 = vpack.c.bf16 %v608, %v608
        %v987 = vpack.c.bf16 %v610, %v610
        %v988 = vpack.c.bf16 %v613, %v613
        %v989 = vpack.c.bf16 %v615, %v615
        %v990 = vpack.c.bf16 %v618, %v618
        %v991 = vpack.c.bf16 %v620, %v620
        %v992 = vpack.c.bf16 %v623, %v623
        %v993 = vpack.c.bf16 %v625, %v625
        %v994 = vpack.c.bf16 %v628, %v628
        %v995 = vpack.c.bf16 %v630, %v630
        %v996 = vpack.c.bf16 %v633, %v633
        %v997 = vpack.c.bf16 %v635, %v635
        %v998 = vpack.c.bf16 %v638, %v638
        %v999 = vpack.c.bf16 %v640, %v640
        %v1000 = vpack.c.bf16 %v643, %v643
        %v1001 = vpack.c.bf16 %v645, %v645
        %v1002 = vpack.c.bf16 %v648, %v648
        %v1003 = vpack.c.bf16 %v650, %v650
        %v1004 = vpack.c.bf16 %v653, %v653
        %v1005 = vpack.c.bf16 %v655, %v655
        %v1006 = vpack.c.bf16 %v658, %v658
        %v1007 = vpack.c.bf16 %v660, %v660
        %vm1008 = vcmask 257024
        %1009 = vst.msk [vmem:[%s351] sm:$0xf] %vm1008, %v976
        %1010 = vst.msk [vmem:[%s351 + $0x4] sm:$0xf] %vm1008, %v977
        %1011 = vst.msk [vmem:[%s351 + $0x8] sm:$0xf] %vm1008, %v978
        %1012 = vst.msk [vmem:[%s351 + $0xc] sm:$0xf] %vm1008, %v979
        %1013 = vst.msk [vmem:[%s351 + $0x10] sm:$0xf] %vm1008, %v980
        %1014 = vst.msk [vmem:[%s351 + $0x14] sm:$0xf] %vm1008, %v981
        %1015 = vst.msk [vmem:[%s351 + $0x18] sm:$0xf] %vm1008, %v982
        %1016 = vst.msk [vmem:[%s351 + $0x1c] sm:$0xf] %vm1008, %v983
        %1017 = vst.msk [vmem:[%s351 + $0x20] sm:$0xf] %vm1008, %v984
        %1018 = vst.msk [vmem:[%s351 + $0x24] sm:$0xf] %vm1008, %v985
        %1019 = vst.msk [vmem:[%s351 + $0x28] sm:$0xf] %vm1008, %v986
        %1020 = vst.msk [vmem:[%s351 + $0x2c] sm:$0xf] %vm1008, %v987
        %1021 = vst.msk [vmem:[%s351 + $0x30] sm:$0xf] %vm1008, %v988
        %1022 = vst.msk [vmem:[%s351 + $0x34] sm:$0xf] %vm1008, %v989
        %1023 = vst.msk [vmem:[%s351 + $0x38] sm:$0xf] %vm1008, %v990
        %1024 = vst.msk [vmem:[%s351 + $0x3c] sm:$0xf] %vm1008, %v991
        %1025 = vst.msk [vmem:[%s351 + $0x40] sm:$0xf] %vm1008, %v992
        %1026 = vst.msk [vmem:[%s351 + $0x44] sm:$0xf] %vm1008, %v993
        %1027 = vst.msk [vmem:[%s351 + $0x48] sm:$0xf] %vm1008, %v994
        %1028 = vst.msk [vmem:[%s351 + $0x4c] sm:$0xf] %vm1008, %v995
        %1029 = vst.msk [vmem:[%s351 + $0x50] sm:$0xf] %vm1008, %v996
        %1030 = vst.msk [vmem:[%s351 + $0x54] sm:$0xf] %vm1008, %v997
        %1031 = vst.msk [vmem:[%s351 + $0x58] sm:$0xf] %vm1008, %v998
        %1032 = vst.msk [vmem:[%s351 + $0x5c] sm:$0xf] %vm1008, %v999
        %1033 = vst.msk [vmem:[%s351 + $0x60] sm:$0xf] %vm1008, %v1000
        %1034 = vst.msk [vmem:[%s351 + $0x64] sm:$0xf] %vm1008, %v1001
        %1035 = vst.msk [vmem:[%s351 + $0x68] sm:$0xf] %vm1008, %v1002
        %1036 = vst.msk [vmem:[%s351 + $0x6c] sm:$0xf] %vm1008, %v1003
        %1037 = vst.msk [vmem:[%s351 + $0x70] sm:$0xf] %vm1008, %v1004
        %1038 = vst.msk [vmem:[%s351 + $0x74] sm:$0xf] %vm1008, %v1005
        %1039 = vst.msk [vmem:[%s351 + $0x78] sm:$0xf] %vm1008, %v1006
        %1040 = vst.msk [vmem:[%s351 + $0x7c] sm:$0xf] %vm1008, %v1007
        %v1041 = vpack.c.bf16 %v740, %v740
        %v1042 = vpack.c.bf16 %v742, %v742
        %v1043 = vpack.c.bf16 %v745, %v745
        %v1044 = vpack.c.bf16 %v747, %v747
        %v1045 = vpack.c.bf16 %v750, %v750
        %v1046 = vpack.c.bf16 %v752, %v752
        %v1047 = vpack.c.bf16 %v755, %v755
        %v1048 = vpack.c.bf16 %v757, %v757
        %v1049 = vpack.c.bf16 %v760, %v760
        %v1050 = vpack.c.bf16 %v762, %v762
        %v1051 = vpack.c.bf16 %v765, %v765
        %v1052 = vpack.c.bf16 %v767, %v767
        %v1053 = vpack.c.bf16 %v770, %v770
        %v1054 = vpack.c.bf16 %v772, %v772
        %v1055 = vpack.c.bf16 %v775, %v775
        %v1056 = vpack.c.bf16 %v777, %v777
        %v1057 = vpack.c.bf16 %v780, %v780
        %v1058 = vpack.c.bf16 %v782, %v782
        %v1059 = vpack.c.bf16 %v785, %v785
        %v1060 = vpack.c.bf16 %v787, %v787
        %v1061 = vpack.c.bf16 %v790, %v790
        %v1062 = vpack.c.bf16 %v792, %v792
        %v1063 = vpack.c.bf16 %v795, %v795
        %v1064 = vpack.c.bf16 %v797, %v797
        %v1065 = vpack.c.bf16 %v800, %v800
        %v1066 = vpack.c.bf16 %v802, %v802
        %v1067 = vpack.c.bf16 %v805, %v805
        %v1068 = vpack.c.bf16 %v807, %v807
        %v1069 = vpack.c.bf16 %v810, %v810
        %v1070 = vpack.c.bf16 %v812, %v812
        %v1071 = vpack.c.bf16 %v815, %v815
        %v1072 = vpack.c.bf16 %v817, %v817
        %1073 = vst.msk [vmem:[%s357] sm:$0xf] %vm1008, %v1041
        %1074 = vst.msk [vmem:[%s357 + $0x4] sm:$0xf] %vm1008, %v1042
        %1075 = vst.msk [vmem:[%s357 + $0x8] sm:$0xf] %vm1008, %v1043
        %1076 = vst.msk [vmem:[%s357 + $0xc] sm:$0xf] %vm1008, %v1044
        %1077 = vst.msk [vmem:[%s357 + $0x10] sm:$0xf] %vm1008, %v1045
        %1078 = vst.msk [vmem:[%s357 + $0x14] sm:$0xf] %vm1008, %v1046
        %1079 = vst.msk [vmem:[%s357 + $0x18] sm:$0xf] %vm1008, %v1047
        %1080 = vst.msk [vmem:[%s357 + $0x1c] sm:$0xf] %vm1008, %v1048
        %1081 = vst.msk [vmem:[%s357 + $0x20] sm:$0xf] %vm1008, %v1049
        %1082 = vst.msk [vmem:[%s357 + $0x24] sm:$0xf] %vm1008, %v1050
        %1083 = vst.msk [vmem:[%s357 + $0x28] sm:$0xf] %vm1008, %v1051
        %1084 = vst.msk [vmem:[%s357 + $0x2c] sm:$0xf] %vm1008, %v1052
        %1085 = vst.msk [vmem:[%s357 + $0x30] sm:$0xf] %vm1008, %v1053
        %1086 = vst.msk [vmem:[%s357 + $0x34] sm:$0xf] %vm1008, %v1054
        %1087 = vst.msk [vmem:[%s357 + $0x38] sm:$0xf] %vm1008, %v1055
        %1088 = vst.msk [vmem:[%s357 + $0x3c] sm:$0xf] %vm1008, %v1056
        %1089 = vst.msk [vmem:[%s357 + $0x40] sm:$0xf] %vm1008, %v1057
        %1090 = vst.msk [vmem:[%s357 + $0x44] sm:$0xf] %vm1008, %v1058
        %1091 = vst.msk [vmem:[%s357 + $0x48] sm:$0xf] %vm1008, %v1059
        %1092 = vst.msk [vmem:[%s357 + $0x4c] sm:$0xf] %vm1008, %v1060
        %1093 = vst.msk [vmem:[%s357 + $0x50] sm:$0xf] %vm1008, %v1061
        %1094 = vst.msk [vmem:[%s357 + $0x54] sm:$0xf] %vm1008, %v1062
        %1095 = vst.msk [vmem:[%s357 + $0x58] sm:$0xf] %vm1008, %v1063
        %1096 = vst.msk [vmem:[%s357 + $0x5c] sm:$0xf] %vm1008, %v1064
        %1097 = vst.msk [vmem:[%s357 + $0x60] sm:$0xf] %vm1008, %v1065
        %1098 = vst.msk [vmem:[%s357 + $0x64] sm:$0xf] %vm1008, %v1066
        %1099 = vst.msk [vmem:[%s357 + $0x68] sm:$0xf] %vm1008, %v1067
        %1100 = vst.msk [vmem:[%s357 + $0x6c] sm:$0xf] %vm1008, %v1068
        %1101 = vst.msk [vmem:[%s357 + $0x70] sm:$0xf] %vm1008, %v1069
        %1102 = vst.msk [vmem:[%s357 + $0x74] sm:$0xf] %vm1008, %v1070
        %1103 = vst.msk [vmem:[%s357 + $0x78] sm:$0xf] %vm1008, %v1071
        %1104 = vst.msk [vmem:[%s357 + $0x7c] sm:$0xf] %vm1008, %v1072
        %v1105 = vpack.c.bf16 %v897, %v897
        %v1106 = vpack.c.bf16 %v899, %v899
        %v1107 = vpack.c.bf16 %v902, %v902
        %v1108 = vpack.c.bf16 %v904, %v904
        %v1109 = vpack.c.bf16 %v907, %v907
        %v1110 = vpack.c.bf16 %v909, %v909
        %v1111 = vpack.c.bf16 %v912, %v912
        %v1112 = vpack.c.bf16 %v914, %v914
        %v1113 = vpack.c.bf16 %v917, %v917
        %v1114 = vpack.c.bf16 %v919, %v919
        %v1115 = vpack.c.bf16 %v922, %v922
        %v1116 = vpack.c.bf16 %v924, %v924
        %v1117 = vpack.c.bf16 %v927, %v927
        %v1118 = vpack.c.bf16 %v929, %v929
        %v1119 = vpack.c.bf16 %v932, %v932
        %v1120 = vpack.c.bf16 %v934, %v934
        %v1121 = vpack.c.bf16 %v937, %v937
        %v1122 = vpack.c.bf16 %v939, %v939
        %v1123 = vpack.c.bf16 %v942, %v942
        %v1124 = vpack.c.bf16 %v944, %v944
        %v1125 = vpack.c.bf16 %v947, %v947
        %v1126 = vpack.c.bf16 %v949, %v949
        %v1127 = vpack.c.bf16 %v952, %v952
        %v1128 = vpack.c.bf16 %v954, %v954
        %v1129 = vpack.c.bf16 %v957, %v957
        %v1130 = vpack.c.bf16 %v959, %v959
        %v1131 = vpack.c.bf16 %v962, %v962
        %v1132 = vpack.c.bf16 %v964, %v964
        %v1133 = vpack.c.bf16 %v967, %v967
        %v1134 = vpack.c.bf16 %v969, %v969
        %v1135 = vpack.c.bf16 %v972, %v972
        %v1136 = vpack.c.bf16 %v974, %v974
        %1137 = vst.msk [vmem:[%s363] sm:$0xf] %vm1008, %v1105
        %1138 = vst.msk [vmem:[%s363 + $0x4] sm:$0xf] %vm1008, %v1106
        %1139 = vst.msk [vmem:[%s363 + $0x8] sm:$0xf] %vm1008, %v1107
        %1140 = vst.msk [vmem:[%s363 + $0xc] sm:$0xf] %vm1008, %v1108
        %1141 = vst.msk [vmem:[%s363 + $0x10] sm:$0xf] %vm1008, %v1109
        %1142 = vst.msk [vmem:[%s363 + $0x14] sm:$0xf] %vm1008, %v1110
        %1143 = vst.msk [vmem:[%s363 + $0x18] sm:$0xf] %vm1008, %v1111
        %1144 = vst.msk [vmem:[%s363 + $0x1c] sm:$0xf] %vm1008, %v1112
        %1145 = vst.msk [vmem:[%s363 + $0x20] sm:$0xf] %vm1008, %v1113
        %1146 = vst.msk [vmem:[%s363 + $0x24] sm:$0xf] %vm1008, %v1114
        %1147 = vst.msk [vmem:[%s363 + $0x28] sm:$0xf] %vm1008, %v1115
        %1148 = vst.msk [vmem:[%s363 + $0x2c] sm:$0xf] %vm1008, %v1116
        %1149 = vst.msk [vmem:[%s363 + $0x30] sm:$0xf] %vm1008, %v1117
        %1150 = vst.msk [vmem:[%s363 + $0x34] sm:$0xf] %vm1008, %v1118
        %1151 = vst.msk [vmem:[%s363 + $0x38] sm:$0xf] %vm1008, %v1119
        %1152 = vst.msk [vmem:[%s363 + $0x3c] sm:$0xf] %vm1008, %v1120
        %1153 = vst.msk [vmem:[%s363 + $0x40] sm:$0xf] %vm1008, %v1121
        %1154 = vst.msk [vmem:[%s363 + $0x44] sm:$0xf] %vm1008, %v1122
        %1155 = vst.msk [vmem:[%s363 + $0x48] sm:$0xf] %vm1008, %v1123
        %1156 = vst.msk [vmem:[%s363 + $0x4c] sm:$0xf] %vm1008, %v1124
        %1157 = vst.msk [vmem:[%s363 + $0x50] sm:$0xf] %vm1008, %v1125
        %1158 = vst.msk [vmem:[%s363 + $0x54] sm:$0xf] %vm1008, %v1126
        %1159 = vst.msk [vmem:[%s363 + $0x58] sm:$0xf] %vm1008, %v1127
        %1160 = vst.msk [vmem:[%s363 + $0x5c] sm:$0xf] %vm1008, %v1128
        %1161 = vst.msk [vmem:[%s363 + $0x60] sm:$0xf] %vm1008, %v1129
        %1162 = vst.msk [vmem:[%s363 + $0x64] sm:$0xf] %vm1008, %v1130
        %1163 = vst.msk [vmem:[%s363 + $0x68] sm:$0xf] %vm1008, %v1131
        %1164 = vst.msk [vmem:[%s363 + $0x6c] sm:$0xf] %vm1008, %v1132
        %1165 = vst.msk [vmem:[%s363 + $0x70] sm:$0xf] %vm1008, %v1133
        %1166 = vst.msk [vmem:[%s363 + $0x74] sm:$0xf] %vm1008, %v1134
        %1167 = vst.msk [vmem:[%s363 + $0x78] sm:$0xf] %vm1008, %v1135
        %1168 = vst.msk [vmem:[%s363 + $0x7c] sm:$0xf] %vm1008, %v1136
        %s1169 = scalar_lea.vmem %s1, 64
        %v1170 = vld [vmem:[%s1169] sm:$0xf]
        %v1171 = vld [vmem:[%s1169 + $0x4] sm:$0xf]
        %v1172 = vld [vmem:[%s1169 + $0x8] sm:$0xf]
        %v1173 = vld [vmem:[%s1169 + $0xc] sm:$0xf]
        %v1174 = vld [vmem:[%s1169 + $0x10] sm:$0xf]
        %v1175 = vld [vmem:[%s1169 + $0x14] sm:$0xf]
        %v1176 = vld [vmem:[%s1169 + $0x18] sm:$0xf]
        %v1177 = vld [vmem:[%s1169 + $0x1c] sm:$0xf]
        %v1178 = vld [vmem:[%s1169 + $0x20] sm:$0xf]
        %v1179 = vld [vmem:[%s1169 + $0x24] sm:$0xf]
        %v1180 = vld [vmem:[%s1169 + $0x28] sm:$0xf]
        %v1181 = vld [vmem:[%s1169 + $0x2c] sm:$0xf]
        %v1182 = vld [vmem:[%s1169 + $0x30] sm:$0xf]
        %v1183 = vld [vmem:[%s1169 + $0x34] sm:$0xf]
        %v1184 = vld [vmem:[%s1169 + $0x38] sm:$0xf]
        %v1185 = vld [vmem:[%s1169 + $0x3c] sm:$0xf]
        %s1186 = scalar_lea.vmem %s2, 1
        %v1187 = vld [vmem:[%s1186] sm:$0x1]
        %v1189 = vperm.slane %v1187, 0
        %v1207 = vunpack.c.l.b16 %v1170
        %v1208 = vunpack.c.l.b16 %v1171
        %v1209 = vunpack.c.l.b16 %v1172
        %v1210 = vunpack.c.l.b16 %v1173
        %v1211 = vunpack.c.l.b16 %v1174
        %v1212 = vunpack.c.l.b16 %v1175
        %v1213 = vunpack.c.l.b16 %v1176
        %v1214 = vunpack.c.l.b16 %v1177
        %v1215 = vunpack.c.l.b16 %v1178
        %v1216 = vunpack.c.l.b16 %v1179
        %v1217 = vunpack.c.l.b16 %v1180
        %v1218 = vunpack.c.l.b16 %v1181
        %v1219 = vunpack.c.l.b16 %v1182
        %v1220 = vunpack.c.l.b16 %v1183
        %v1221 = vunpack.c.l.b16 %v1184
        %v1222 = vunpack.c.l.b16 %v1185
        %v1223 = vpack.c.b16 %v1208, %v1207
        %v1224 = vpack.c.b16 %v1210, %v1209
        %v1225 = vpack.c.b16 %v1212, %v1211
        %v1226 = vpack.c.b16 %v1214, %v1213
        %v1227 = vpack.c.b16 %v1216, %v1215
        %v1228 = vpack.c.b16 %v1218, %v1217
        %v1229 = vpack.c.b16 %v1220, %v1219
        %v1230 = vpack.c.b16 %v1222, %v1221
        %1239 = vmatpush.bf16.msra.mxu0 %v1230
        %1240 = vmatpush.bf16.msra.mxu0 %v1229
        %1241 = vmatpush.bf16.msra.mxu0 %v1228
        %1242 = vmatpush.bf16.msra.mxu0 %v1227
        %1243 = vmatpush.bf16.msra.mxu0 %v1226
        %1244 = vmatpush.bf16.msra.mxu0 %v1225
        %1245 = vmatpush.bf16.msra.mxu0 %v1224
        %1246 = vmatpush.bf16.msra.mxu0 %v1223
        %1247 = vmatmul.bf16.gmra.mxu0 %v493
        %v1248 = vpop.f32.mrf.mxu0
        %v1249 = vadd.f32 %v1189, %v1248
        %v1250 = vpop.f32.mrf.mxu0
        %v1251 = vadd.f32 %v1189, %v1250
        %1252 = vmatmul.bf16.gmra.mxu0 %v494
        %v1253 = vpop.f32.mrf.mxu0
        %v1254 = vadd.f32 %v1189, %v1253
        %v1255 = vpop.f32.mrf.mxu0
        %v1256 = vadd.f32 %v1189, %v1255
        %1257 = vmatmul.bf16.gmra.mxu0 %v495
        %v1258 = vpop.f32.mrf.mxu0
        %v1259 = vadd.f32 %v1189, %v1258
        %v1260 = vpop.f32.mrf.mxu0
        %v1261 = vadd.f32 %v1189, %v1260
        %1262 = vmatmul.bf16.gmra.mxu0 %v496
        %v1263 = vpop.f32.mrf.mxu0
        %v1264 = vadd.f32 %v1189, %v1263
        %v1265 = vpop.f32.mrf.mxu0
        %v1266 = vadd.f32 %v1189, %v1265
        %1267 = vmatmul.bf16.gmra.mxu0 %v497
        %v1268 = vpop.f32.mrf.mxu0
        %v1269 = vadd.f32 %v1189, %v1268
        %v1270 = vpop.f32.mrf.mxu0
        %v1271 = vadd.f32 %v1189, %v1270
        %1272 = vmatmul.bf16.gmra.mxu0 %v498
        %v1273 = vpop.f32.mrf.mxu0
        %v1274 = vadd.f32 %v1189, %v1273
        %v1275 = vpop.f32.mrf.mxu0
        %v1276 = vadd.f32 %v1189, %v1275
        %1277 = vmatmul.bf16.gmra.mxu0 %v499
        %v1278 = vpop.f32.mrf.mxu0
        %v1279 = vadd.f32 %v1189, %v1278
        %v1280 = vpop.f32.mrf.mxu0
        %v1281 = vadd.f32 %v1189, %v1280
        %1282 = vmatmul.bf16.gmra.mxu0 %v500
        %v1283 = vpop.f32.mrf.mxu0
        %v1284 = vadd.f32 %v1189, %v1283
        %v1285 = vpop.f32.mrf.mxu0
        %v1286 = vadd.f32 %v1189, %v1285
        %1287 = vmatmul.bf16.gmra.mxu0 %v501
        %v1288 = vpop.f32.mrf.mxu0
        %v1289 = vadd.f32 %v1189, %v1288
        %v1290 = vpop.f32.mrf.mxu0
        %v1291 = vadd.f32 %v1189, %v1290
        %1292 = vmatmul.bf16.gmra.mxu0 %v502
        %v1293 = vpop.f32.mrf.mxu0
        %v1294 = vadd.f32 %v1189, %v1293
        %v1295 = vpop.f32.mrf.mxu0
        %v1296 = vadd.f32 %v1189, %v1295
        %1297 = vmatmul.bf16.gmra.mxu0 %v503
        %v1298 = vpop.f32.mrf.mxu0
        %v1299 = vadd.f32 %v1189, %v1298
        %v1300 = vpop.f32.mrf.mxu0
        %v1301 = vadd.f32 %v1189, %v1300
        %1302 = vmatmul.bf16.gmra.mxu0 %v504
        %v1303 = vpop.f32.mrf.mxu0
        %v1304 = vadd.f32 %v1189, %v1303
        %v1305 = vpop.f32.mrf.mxu0
        %v1306 = vadd.f32 %v1189, %v1305
        %1307 = vmatmul.bf16.gmra.mxu0 %v505
        %v1308 = vpop.f32.mrf.mxu0
        %v1309 = vadd.f32 %v1189, %v1308
        %v1310 = vpop.f32.mrf.mxu0
        %v1311 = vadd.f32 %v1189, %v1310
        %1312 = vmatmul.bf16.gmra.mxu0 %v506
        %v1313 = vpop.f32.mrf.mxu0
        %v1314 = vadd.f32 %v1189, %v1313
        %v1315 = vpop.f32.mrf.mxu0
        %v1316 = vadd.f32 %v1189, %v1315
        %1317 = vmatmul.bf16.gmra.mxu0 %v507
        %v1318 = vpop.f32.mrf.mxu0
        %v1319 = vadd.f32 %v1189, %v1318
        %v1320 = vpop.f32.mrf.mxu0
        %v1321 = vadd.f32 %v1189, %v1320
        %1322 = vmatmul.bf16.gmra.mxu0 %v508
        %v1323 = vpop.f32.mrf.mxu0
        %v1324 = vadd.f32 %v1189, %v1323
        %v1325 = vpop.f32.mrf.mxu0
        %v1326 = vadd.f32 %v1189, %v1325
        %1327 = vdwg.mxu0
        %s1328 = scalar_lea.vmem %s3, 64
        %v1329 = vld [vmem:[%s1328] sm:$0xf]
        %v1330 = vld [vmem:[%s1328 + $0x4] sm:$0xf]
        %v1331 = vld [vmem:[%s1328 + $0x8] sm:$0xf]
        %v1332 = vld [vmem:[%s1328 + $0xc] sm:$0xf]
        %v1333 = vld [vmem:[%s1328 + $0x10] sm:$0xf]
        %v1334 = vld [vmem:[%s1328 + $0x14] sm:$0xf]
        %v1335 = vld [vmem:[%s1328 + $0x18] sm:$0xf]
        %v1336 = vld [vmem:[%s1328 + $0x1c] sm:$0xf]
        %v1337 = vld [vmem:[%s1328 + $0x20] sm:$0xf]
        %v1338 = vld [vmem:[%s1328 + $0x24] sm:$0xf]
        %v1339 = vld [vmem:[%s1328 + $0x28] sm:$0xf]
        %v1340 = vld [vmem:[%s1328 + $0x2c] sm:$0xf]
        %v1341 = vld [vmem:[%s1328 + $0x30] sm:$0xf]
        %v1342 = vld [vmem:[%s1328 + $0x34] sm:$0xf]
        %v1343 = vld [vmem:[%s1328 + $0x38] sm:$0xf]
        %v1344 = vld [vmem:[%s1328 + $0x3c] sm:$0xf]
        %s1345 = scalar_lea.vmem %s4, 1
        %v1346 = vld [vmem:[%s1345] sm:$0x1]
        %v1348 = vperm.slane %v1346, 0
        %v1366 = vunpack.c.l.b16 %v1329
        %v1367 = vunpack.c.l.b16 %v1330
        %v1368 = vunpack.c.l.b16 %v1331
        %v1369 = vunpack.c.l.b16 %v1332
        %v1370 = vunpack.c.l.b16 %v1333
        %v1371 = vunpack.c.l.b16 %v1334
        %v1372 = vunpack.c.l.b16 %v1335
        %v1373 = vunpack.c.l.b16 %v1336
        %v1374 = vunpack.c.l.b16 %v1337
        %v1375 = vunpack.c.l.b16 %v1338
        %v1376 = vunpack.c.l.b16 %v1339
        %v1377 = vunpack.c.l.b16 %v1340
        %v1378 = vunpack.c.l.b16 %v1341
        %v1379 = vunpack.c.l.b16 %v1342
        %v1380 = vunpack.c.l.b16 %v1343
        %v1381 = vunpack.c.l.b16 %v1344
        %v1382 = vpack.c.b16 %v1367, %v1366
        %v1383 = vpack.c.b16 %v1369, %v1368
        %v1384 = vpack.c.b16 %v1371, %v1370
        %v1385 = vpack.c.b16 %v1373, %v1372
        %v1386 = vpack.c.b16 %v1375, %v1374
        %v1387 = vpack.c.b16 %v1377, %v1376
        %v1388 = vpack.c.b16 %v1379, %v1378
        %v1389 = vpack.c.b16 %v1381, %v1380
        %1398 = vmatpush.bf16.msra.mxu0 %v1389
        %1399 = vmatpush.bf16.msra.mxu0 %v1388
        %1400 = vmatpush.bf16.msra.mxu0 %v1387
        %1401 = vmatpush.bf16.msra.mxu0 %v1386
        %1402 = vmatpush.bf16.msra.mxu0 %v1385
        %1403 = vmatpush.bf16.msra.mxu0 %v1384
        %1404 = vmatpush.bf16.msra.mxu0 %v1383
        %1405 = vmatpush.bf16.msra.mxu0 %v1382
        %1406 = vmatmul.bf16.gmra.mxu0 %v493
        %v1407 = vpop.f32.mrf.mxu0
        %v1408 = vadd.f32 %v1348, %v1407
        %v1409 = vpop.f32.mrf.mxu0
        %v1410 = vadd.f32 %v1348, %v1409
        %1411 = vmatmul.bf16.gmra.mxu0 %v494
        %v1412 = vpop.f32.mrf.mxu0
        %v1413 = vadd.f32 %v1348, %v1412
        %v1414 = vpop.f32.mrf.mxu0
        %v1415 = vadd.f32 %v1348, %v1414
        %1416 = vmatmul.bf16.gmra.mxu0 %v495
        %v1417 = vpop.f32.mrf.mxu0
        %v1418 = vadd.f32 %v1348, %v1417
        %v1419 = vpop.f32.mrf.mxu0
        %v1420 = vadd.f32 %v1348, %v1419
        %1421 = vmatmul.bf16.gmra.mxu0 %v496
        %v1422 = vpop.f32.mrf.mxu0
        %v1423 = vadd.f32 %v1348, %v1422
        %v1424 = vpop.f32.mrf.mxu0
        %v1425 = vadd.f32 %v1348, %v1424
        %1426 = vmatmul.bf16.gmra.mxu0 %v497
        %v1427 = vpop.f32.mrf.mxu0
        %v1428 = vadd.f32 %v1348, %v1427
        %v1429 = vpop.f32.mrf.mxu0
        %v1430 = vadd.f32 %v1348, %v1429
        %1431 = vmatmul.bf16.gmra.mxu0 %v498
        %v1432 = vpop.f32.mrf.mxu0
        %v1433 = vadd.f32 %v1348, %v1432
        %v1434 = vpop.f32.mrf.mxu0
        %v1435 = vadd.f32 %v1348, %v1434
        %1436 = vmatmul.bf16.gmra.mxu0 %v499
        %v1437 = vpop.f32.mrf.mxu0
        %v1438 = vadd.f32 %v1348, %v1437
        %v1439 = vpop.f32.mrf.mxu0
        %v1440 = vadd.f32 %v1348, %v1439
        %1441 = vmatmul.bf16.gmra.mxu0 %v500
        %v1442 = vpop.f32.mrf.mxu0
        %v1443 = vadd.f32 %v1348, %v1442
        %v1444 = vpop.f32.mrf.mxu0
        %v1445 = vadd.f32 %v1348, %v1444
        %1446 = vmatmul.bf16.gmra.mxu0 %v501
        %v1447 = vpop.f32.mrf.mxu0
        %v1448 = vadd.f32 %v1348, %v1447
        %v1449 = vpop.f32.mrf.mxu0
        %v1450 = vadd.f32 %v1348, %v1449
        %1451 = vmatmul.bf16.gmra.mxu0 %v502
        %v1452 = vpop.f32.mrf.mxu0
        %v1453 = vadd.f32 %v1348, %v1452
        %v1454 = vpop.f32.mrf.mxu0
        %v1455 = vadd.f32 %v1348, %v1454
        %1456 = vmatmul.bf16.gmra.mxu0 %v503
        %v1457 = vpop.f32.mrf.mxu0
        %v1458 = vadd.f32 %v1348, %v1457
        %v1459 = vpop.f32.mrf.mxu0
        %v1460 = vadd.f32 %v1348, %v1459
        %1461 = vmatmul.bf16.gmra.mxu0 %v504
        %v1462 = vpop.f32.mrf.mxu0
        %v1463 = vadd.f32 %v1348, %v1462
        %v1464 = vpop.f32.mrf.mxu0
        %v1465 = vadd.f32 %v1348, %v1464
        %1466 = vmatmul.bf16.gmra.mxu0 %v505
        %v1467 = vpop.f32.mrf.mxu0
        %v1468 = vadd.f32 %v1348, %v1467
        %v1469 = vpop.f32.mrf.mxu0
        %v1470 = vadd.f32 %v1348, %v1469
        %1471 = vmatmul.bf16.gmra.mxu0 %v506
        %v1472 = vpop.f32.mrf.mxu0
        %v1473 = vadd.f32 %v1348, %v1472
        %v1474 = vpop.f32.mrf.mxu0
        %v1475 = vadd.f32 %v1348, %v1474
        %1476 = vmatmul.bf16.gmra.mxu0 %v507
        %v1477 = vpop.f32.mrf.mxu0
        %v1478 = vadd.f32 %v1348, %v1477
        %v1479 = vpop.f32.mrf.mxu0
        %v1480 = vadd.f32 %v1348, %v1479
        %1481 = vmatmul.bf16.gmra.mxu0 %v508
        %v1482 = vpop.f32.mrf.mxu0
        %v1483 = vadd.f32 %v1348, %v1482
        %v1484 = vpop.f32.mrf.mxu0
        %v1485 = vadd.f32 %v1348, %v1484
        %1486 = vdwg.mxu0
        %s1487 = scalar_lea.vmem %s5, 64
        %v1488 = vld [vmem:[%s1487] sm:$0xf]
        %v1489 = vld [vmem:[%s1487 + $0x4] sm:$0xf]
        %v1490 = vld [vmem:[%s1487 + $0x8] sm:$0xf]
        %v1491 = vld [vmem:[%s1487 + $0xc] sm:$0xf]
        %v1492 = vld [vmem:[%s1487 + $0x10] sm:$0xf]
        %v1493 = vld [vmem:[%s1487 + $0x14] sm:$0xf]
        %v1494 = vld [vmem:[%s1487 + $0x18] sm:$0xf]
        %v1495 = vld [vmem:[%s1487 + $0x1c] sm:$0xf]
        %v1496 = vld [vmem:[%s1487 + $0x20] sm:$0xf]
        %v1497 = vld [vmem:[%s1487 + $0x24] sm:$0xf]
        %v1498 = vld [vmem:[%s1487 + $0x28] sm:$0xf]
        %v1499 = vld [vmem:[%s1487 + $0x2c] sm:$0xf]
        %v1500 = vld [vmem:[%s1487 + $0x30] sm:$0xf]
        %v1501 = vld [vmem:[%s1487 + $0x34] sm:$0xf]
        %v1502 = vld [vmem:[%s1487 + $0x38] sm:$0xf]
        %v1503 = vld [vmem:[%s1487 + $0x3c] sm:$0xf]
        %s1504 = scalar_lea.vmem %s6, 1
        %v1505 = vld [vmem:[%s1504] sm:$0x1]
        %v1507 = vperm.slane %v1505, 0
        %v1525 = vunpack.c.l.b16 %v1488
        %v1526 = vunpack.c.l.b16 %v1489
        %v1527 = vunpack.c.l.b16 %v1490
        %v1528 = vunpack.c.l.b16 %v1491
        %v1529 = vunpack.c.l.b16 %v1492
        %v1530 = vunpack.c.l.b16 %v1493
        %v1531 = vunpack.c.l.b16 %v1494
        %v1532 = vunpack.c.l.b16 %v1495
        %v1533 = vunpack.c.l.b16 %v1496
        %v1534 = vunpack.c.l.b16 %v1497
        %v1535 = vunpack.c.l.b16 %v1498
        %v1536 = vunpack.c.l.b16 %v1499
        %v1537 = vunpack.c.l.b16 %v1500
        %v1538 = vunpack.c.l.b16 %v1501
        %v1539 = vunpack.c.l.b16 %v1502
        %v1540 = vunpack.c.l.b16 %v1503
        %v1541 = vpack.c.b16 %v1526, %v1525
        %v1542 = vpack.c.b16 %v1528, %v1527
        %v1543 = vpack.c.b16 %v1530, %v1529
        %v1544 = vpack.c.b16 %v1532, %v1531
        %v1545 = vpack.c.b16 %v1534, %v1533
        %v1546 = vpack.c.b16 %v1536, %v1535
        %v1547 = vpack.c.b16 %v1538, %v1537
        %v1548 = vpack.c.b16 %v1540, %v1539
        %1557 = vmatpush.bf16.msra.mxu0 %v1548
        %1558 = vmatpush.bf16.msra.mxu0 %v1547
        %1559 = vmatpush.bf16.msra.mxu0 %v1546
        %1560 = vmatpush.bf16.msra.mxu0 %v1545
        %1561 = vmatpush.bf16.msra.mxu0 %v1544
        %1562 = vmatpush.bf16.msra.mxu0 %v1543
        %1563 = vmatpush.bf16.msra.mxu0 %v1542
        %1564 = vmatpush.bf16.msra.mxu0 %v1541
        %1565 = vmatmul.bf16.gmra.mxu0 %v493
        %v1566 = vpop.f32.mrf.mxu0
        %v1567 = vadd.f32 %v1507, %v1566
        %v1568 = vpop.f32.mrf.mxu0
        %v1569 = vadd.f32 %v1507, %v1568
        %1570 = vmatmul.bf16.gmra.mxu0 %v494
        %v1571 = vpop.f32.mrf.mxu0
        %v1572 = vadd.f32 %v1507, %v1571
        %v1573 = vpop.f32.mrf.mxu0
        %v1574 = vadd.f32 %v1507, %v1573
        %1575 = vmatmul.bf16.gmra.mxu0 %v495
        %v1576 = vpop.f32.mrf.mxu0
        %v1577 = vadd.f32 %v1507, %v1576
        %v1578 = vpop.f32.mrf.mxu0
        %v1579 = vadd.f32 %v1507, %v1578
        %1580 = vmatmul.bf16.gmra.mxu0 %v496
        %v1581 = vpop.f32.mrf.mxu0
        %v1582 = vadd.f32 %v1507, %v1581
        %v1583 = vpop.f32.mrf.mxu0
        %v1584 = vadd.f32 %v1507, %v1583
        %1585 = vmatmul.bf16.gmra.mxu0 %v497
        %v1586 = vpop.f32.mrf.mxu0
        %v1587 = vadd.f32 %v1507, %v1586
        %v1588 = vpop.f32.mrf.mxu0
        %v1589 = vadd.f32 %v1507, %v1588
        %1590 = vmatmul.bf16.gmra.mxu0 %v498
        %v1591 = vpop.f32.mrf.mxu0
        %v1592 = vadd.f32 %v1507, %v1591
        %v1593 = vpop.f32.mrf.mxu0
        %v1594 = vadd.f32 %v1507, %v1593
        %1595 = vmatmul.bf16.gmra.mxu0 %v499
        %v1596 = vpop.f32.mrf.mxu0
        %v1597 = vadd.f32 %v1507, %v1596
        %v1598 = vpop.f32.mrf.mxu0
        %v1599 = vadd.f32 %v1507, %v1598
        %1600 = vmatmul.bf16.gmra.mxu0 %v500
        %v1601 = vpop.f32.mrf.mxu0
        %v1602 = vadd.f32 %v1507, %v1601
        %v1603 = vpop.f32.mrf.mxu0
        %v1604 = vadd.f32 %v1507, %v1603
        %1605 = vmatmul.bf16.gmra.mxu0 %v501
        %v1606 = vpop.f32.mrf.mxu0
        %v1607 = vadd.f32 %v1507, %v1606
        %v1608 = vpop.f32.mrf.mxu0
        %v1609 = vadd.f32 %v1507, %v1608
        %1610 = vmatmul.bf16.gmra.mxu0 %v502
        %v1611 = vpop.f32.mrf.mxu0
        %v1612 = vadd.f32 %v1507, %v1611
        %v1613 = vpop.f32.mrf.mxu0
        %v1614 = vadd.f32 %v1507, %v1613
        %1615 = vmatmul.bf16.gmra.mxu0 %v503
        %v1616 = vpop.f32.mrf.mxu0
        %v1617 = vadd.f32 %v1507, %v1616
        %v1618 = vpop.f32.mrf.mxu0
        %v1619 = vadd.f32 %v1507, %v1618
        %1620 = vmatmul.bf16.gmra.mxu0 %v504
        %v1621 = vpop.f32.mrf.mxu0
        %v1622 = vadd.f32 %v1507, %v1621
        %v1623 = vpop.f32.mrf.mxu0
        %v1624 = vadd.f32 %v1507, %v1623
        %1625 = vmatmul.bf16.gmra.mxu0 %v505
        %v1626 = vpop.f32.mrf.mxu0
        %v1627 = vadd.f32 %v1507, %v1626
        %v1628 = vpop.f32.mrf.mxu0
        %v1629 = vadd.f32 %v1507, %v1628
        %1630 = vmatmul.bf16.gmra.mxu0 %v506
        %v1631 = vpop.f32.mrf.mxu0
        %v1632 = vadd.f32 %v1507, %v1631
        %v1633 = vpop.f32.mrf.mxu0
        %v1634 = vadd.f32 %v1507, %v1633
        %1635 = vmatmul.bf16.gmra.mxu0 %v507
        %v1636 = vpop.f32.mrf.mxu0
        %v1637 = vadd.f32 %v1507, %v1636
        %v1638 = vpop.f32.mrf.mxu0
        %v1639 = vadd.f32 %v1507, %v1638
        %1640 = vmatmul.bf16.gmra.mxu0 %v508
        %v1641 = vpop.f32.mrf.mxu0
        %v1642 = vadd.f32 %v1507, %v1641
        %v1643 = vpop.f32.mrf.mxu0
        %v1644 = vadd.f32 %v1507, %v1643
        %1645 = vdwg.mxu0
        %v1646 = vpack.c.bf16 %v1249, %v1249
        %v1647 = vpack.c.bf16 %v1251, %v1251
        %v1648 = vpack.c.bf16 %v1254, %v1254
        %v1649 = vpack.c.bf16 %v1256, %v1256
        %v1650 = vpack.c.bf16 %v1259, %v1259
        %v1651 = vpack.c.bf16 %v1261, %v1261
        %v1652 = vpack.c.bf16 %v1264, %v1264
        %v1653 = vpack.c.bf16 %v1266, %v1266
        %v1654 = vpack.c.bf16 %v1269, %v1269
        %v1655 = vpack.c.bf16 %v1271, %v1271
        %v1656 = vpack.c.bf16 %v1274, %v1274
        %v1657 = vpack.c.bf16 %v1276, %v1276
        %v1658 = vpack.c.bf16 %v1279, %v1279
        %v1659 = vpack.c.bf16 %v1281, %v1281
        %v1660 = vpack.c.bf16 %v1284, %v1284
        %v1661 = vpack.c.bf16 %v1286, %v1286
        %v1662 = vpack.c.bf16 %v1289, %v1289
        %v1663 = vpack.c.bf16 %v1291, %v1291
        %v1664 = vpack.c.bf16 %v1294, %v1294
        %v1665 = vpack.c.bf16 %v1296, %v1296
        %v1666 = vpack.c.bf16 %v1299, %v1299
        %v1667 = vpack.c.bf16 %v1301, %v1301
        %v1668 = vpack.c.bf16 %v1304, %v1304
        %v1669 = vpack.c.bf16 %v1306, %v1306
        %v1670 = vpack.c.bf16 %v1309, %v1309
        %v1671 = vpack.c.bf16 %v1311, %v1311
        %v1672 = vpack.c.bf16 %v1314, %v1314
        %v1673 = vpack.c.bf16 %v1316, %v1316
        %v1674 = vpack.c.bf16 %v1319, %v1319
        %v1675 = vpack.c.bf16 %v1321, %v1321
        %v1676 = vpack.c.bf16 %v1324, %v1324
        %v1677 = vpack.c.bf16 %v1326, %v1326
        %s1678 = scalar_lea.vmem %s351, 128 [#allocation2]
        %1679 = vst.msk [vmem:[%s1678] sm:$0xf] %vm1008, %v1646
        %1680 = vst.msk [vmem:[%s1678 + $0x4] sm:$0xf] %vm1008, %v1647
        %1681 = vst.msk [vmem:[%s1678 + $0x8] sm:$0xf] %vm1008, %v1648
        %1682 = vst.msk [vmem:[%s1678 + $0xc] sm:$0xf] %vm1008, %v1649
        %1683 = vst.msk [vmem:[%s1678 + $0x10] sm:$0xf] %vm1008, %v1650
        %1684 = vst.msk [vmem:[%s1678 + $0x14] sm:$0xf] %vm1008, %v1651
        %1685 = vst.msk [vmem:[%s1678 + $0x18] sm:$0xf] %vm1008, %v1652
        %1686 = vst.msk [vmem:[%s1678 + $0x1c] sm:$0xf] %vm1008, %v1653
        %1687 = vst.msk [vmem:[%s1678 + $0x20] sm:$0xf] %vm1008, %v1654
        %1688 = vst.msk [vmem:[%s1678 + $0x24] sm:$0xf] %vm1008, %v1655
        %1689 = vst.msk [vmem:[%s1678 + $0x28] sm:$0xf] %vm1008, %v1656
        %1690 = vst.msk [vmem:[%s1678 + $0x2c] sm:$0xf] %vm1008, %v1657
        %1691 = vst.msk [vmem:[%s1678 + $0x30] sm:$0xf] %vm1008, %v1658
        %1692 = vst.msk [vmem:[%s1678 + $0x34] sm:$0xf] %vm1008, %v1659
        %1693 = vst.msk [vmem:[%s1678 + $0x38] sm:$0xf] %vm1008, %v1660
        %1694 = vst.msk [vmem:[%s1678 + $0x3c] sm:$0xf] %vm1008, %v1661
        %1695 = vst.msk [vmem:[%s1678 + $0x40] sm:$0xf] %vm1008, %v1662
        %1696 = vst.msk [vmem:[%s1678 + $0x44] sm:$0xf] %vm1008, %v1663
        %1697 = vst.msk [vmem:[%s1678 + $0x48] sm:$0xf] %vm1008, %v1664
        %1698 = vst.msk [vmem:[%s1678 + $0x4c] sm:$0xf] %vm1008, %v1665
        %1699 = vst.msk [vmem:[%s1678 + $0x50] sm:$0xf] %vm1008, %v1666
        %1700 = vst.msk [vmem:[%s1678 + $0x54] sm:$0xf] %vm1008, %v1667
        %1701 = vst.msk [vmem:[%s1678 + $0x58] sm:$0xf] %vm1008, %v1668
        %1702 = vst.msk [vmem:[%s1678 + $0x5c] sm:$0xf] %vm1008, %v1669
        %1703 = vst.msk [vmem:[%s1678 + $0x60] sm:$0xf] %vm1008, %v1670
        %1704 = vst.msk [vmem:[%s1678 + $0x64] sm:$0xf] %vm1008, %v1671
        %1705 = vst.msk [vmem:[%s1678 + $0x68] sm:$0xf] %vm1008, %v1672
        %1706 = vst.msk [vmem:[%s1678 + $0x6c] sm:$0xf] %vm1008, %v1673
        %1707 = vst.msk [vmem:[%s1678 + $0x70] sm:$0xf] %vm1008, %v1674
        %1708 = vst.msk [vmem:[%s1678 + $0x74] sm:$0xf] %vm1008, %v1675
        %1709 = vst.msk [vmem:[%s1678 + $0x78] sm:$0xf] %vm1008, %v1676
        %1710 = vst.msk [vmem:[%s1678 + $0x7c] sm:$0xf] %vm1008, %v1677
        %v1711 = vpack.c.bf16 %v1408, %v1408
        %v1712 = vpack.c.bf16 %v1410, %v1410
        %v1713 = vpack.c.bf16 %v1413, %v1413
        %v1714 = vpack.c.bf16 %v1415, %v1415
        %v1715 = vpack.c.bf16 %v1418, %v1418
        %v1716 = vpack.c.bf16 %v1420, %v1420
        %v1717 = vpack.c.bf16 %v1423, %v1423
        %v1718 = vpack.c.bf16 %v1425, %v1425
        %v1719 = vpack.c.bf16 %v1428, %v1428
        %v1720 = vpack.c.bf16 %v1430, %v1430
        %v1721 = vpack.c.bf16 %v1433, %v1433
        %v1722 = vpack.c.bf16 %v1435, %v1435
        %v1723 = vpack.c.bf16 %v1438, %v1438
        %v1724 = vpack.c.bf16 %v1440, %v1440
        %v1725 = vpack.c.bf16 %v1443, %v1443
        %v1726 = vpack.c.bf16 %v1445, %v1445
        %v1727 = vpack.c.bf16 %v1448, %v1448
        %v1728 = vpack.c.bf16 %v1450, %v1450
        %v1729 = vpack.c.bf16 %v1453, %v1453
        %v1730 = vpack.c.bf16 %v1455, %v1455
        %v1731 = vpack.c.bf16 %v1458, %v1458
        %v1732 = vpack.c.bf16 %v1460, %v1460
        %v1733 = vpack.c.bf16 %v1463, %v1463
        %v1734 = vpack.c.bf16 %v1465, %v1465
        %v1735 = vpack.c.bf16 %v1468, %v1468
        %v1736 = vpack.c.bf16 %v1470, %v1470
        %v1737 = vpack.c.bf16 %v1473, %v1473
        %v1738 = vpack.c.bf16 %v1475, %v1475
        %v1739 = vpack.c.bf16 %v1478, %v1478
        %v1740 = vpack.c.bf16 %v1480, %v1480
        %v1741 = vpack.c.bf16 %v1483, %v1483
        %v1742 = vpack.c.bf16 %v1485, %v1485
        %s1743 = scalar_lea.vmem %s357, 128 [#allocation3]
        %1744 = vst.msk [vmem:[%s1743] sm:$0xf] %vm1008, %v1711
        %1745 = vst.msk [vmem:[%s1743 + $0x4] sm:$0xf] %vm1008, %v1712
        %1746 = vst.msk [vmem:[%s1743 + $0x8] sm:$0xf] %vm1008, %v1713
        %1747 = vst.msk [vmem:[%s1743 + $0xc] sm:$0xf] %vm1008, %v1714
        %1748 = vst.msk [vmem:[%s1743 + $0x10] sm:$0xf] %vm1008, %v1715
        %1749 = vst.msk [vmem:[%s1743 + $0x14] sm:$0xf] %vm1008, %v1716
        %1750 = vst.msk [vmem:[%s1743 + $0x18] sm:$0xf] %vm1008, %v1717
        %1751 = vst.msk [vmem:[%s1743 + $0x1c] sm:$0xf] %vm1008, %v1718
        %1752 = vst.msk [vmem:[%s1743 + $0x20] sm:$0xf] %vm1008, %v1719
        %1753 = vst.msk [vmem:[%s1743 + $0x24] sm:$0xf] %vm1008, %v1720
        %1754 = vst.msk [vmem:[%s1743 + $0x28] sm:$0xf] %vm1008, %v1721
        %1755 = vst.msk [vmem:[%s1743 + $0x2c] sm:$0xf] %vm1008, %v1722
        %1756 = vst.msk [vmem:[%s1743 + $0x30] sm:$0xf] %vm1008, %v1723
        %1757 = vst.msk [vmem:[%s1743 + $0x34] sm:$0xf] %vm1008, %v1724
        %1758 = vst.msk [vmem:[%s1743 + $0x38] sm:$0xf] %vm1008, %v1725
        %1759 = vst.msk [vmem:[%s1743 + $0x3c] sm:$0xf] %vm1008, %v1726
        %1760 = vst.msk [vmem:[%s1743 + $0x40] sm:$0xf] %vm1008, %v1727
        %1761 = vst.msk [vmem:[%s1743 + $0x44] sm:$0xf] %vm1008, %v1728
        %1762 = vst.msk [vmem:[%s1743 + $0x48] sm:$0xf] %vm1008, %v1729
        %1763 = vst.msk [vmem:[%s1743 + $0x4c] sm:$0xf] %vm1008, %v1730
        %1764 = vst.msk [vmem:[%s1743 + $0x50] sm:$0xf] %vm1008, %v1731
        %1765 = vst.msk [vmem:[%s1743 + $0x54] sm:$0xf] %vm1008, %v1732
        %1766 = vst.msk [vmem:[%s1743 + $0x58] sm:$0xf] %vm1008, %v1733
        %1767 = vst.msk [vmem:[%s1743 + $0x5c] sm:$0xf] %vm1008, %v1734
        %1768 = vst.msk [vmem:[%s1743 + $0x60] sm:$0xf] %vm1008, %v1735
        %1769 = vst.msk [vmem:[%s1743 + $0x64] sm:$0xf] %vm1008, %v1736
        %1770 = vst.msk [vmem:[%s1743 + $0x68] sm:$0xf] %vm1008, %v1737
        %1771 = vst.msk [vmem:[%s1743 + $0x6c] sm:$0xf] %vm1008, %v1738
        %1772 = vst.msk [vmem:[%s1743 + $0x70] sm:$0xf] %vm1008, %v1739
        %1773 = vst.msk [vmem:[%s1743 + $0x74] sm:$0xf] %vm1008, %v1740
        %1774 = vst.msk [vmem:[%s1743 + $0x78] sm:$0xf] %vm1008, %v1741
        %1775 = vst.msk [vmem:[%s1743 + $0x7c] sm:$0xf] %vm1008, %v1742
        %v1776 = vpack.c.bf16 %v1567, %v1567
        %v1777 = vpack.c.bf16 %v1569, %v1569
        %v1778 = vpack.c.bf16 %v1572, %v1572
        %v1779 = vpack.c.bf16 %v1574, %v1574
        %v1780 = vpack.c.bf16 %v1577, %v1577
        %v1781 = vpack.c.bf16 %v1579, %v1579
        %v1782 = vpack.c.bf16 %v1582, %v1582
        %v1783 = vpack.c.bf16 %v1584, %v1584
        %v1784 = vpack.c.bf16 %v1587, %v1587
        %v1785 = vpack.c.bf16 %v1589, %v1589
        %v1786 = vpack.c.bf16 %v1592, %v1592
        %v1787 = vpack.c.bf16 %v1594, %v1594
        %v1788 = vpack.c.bf16 %v1597, %v1597
        %v1789 = vpack.c.bf16 %v1599, %v1599
        %v1790 = vpack.c.bf16 %v1602, %v1602
        %v1791 = vpack.c.bf16 %v1604, %v1604
        %v1792 = vpack.c.bf16 %v1607, %v1607
        %v1793 = vpack.c.bf16 %v1609, %v1609
        %v1794 = vpack.c.bf16 %v1612, %v1612
        %v1795 = vpack.c.bf16 %v1614, %v1614
        %v1796 = vpack.c.bf16 %v1617, %v1617
        %v1797 = vpack.c.bf16 %v1619, %v1619
        %v1798 = vpack.c.bf16 %v1622, %v1622
        %v1799 = vpack.c.bf16 %v1624, %v1624
        %v1800 = vpack.c.bf16 %v1627, %v1627
        %v1801 = vpack.c.bf16 %v1629, %v1629
        %v1802 = vpack.c.bf16 %v1632, %v1632
        %v1803 = vpack.c.bf16 %v1634, %v1634
        %v1804 = vpack.c.bf16 %v1637, %v1637
        %v1805 = vpack.c.bf16 %v1639, %v1639
        %v1806 = vpack.c.bf16 %v1642, %v1642
        %v1807 = vpack.c.bf16 %v1644, %v1644
        %s1808 = scalar_lea.vmem %s363, 128 [#allocation4]
        %1809 = vst.msk [vmem:[%s1808] sm:$0xf] %vm1008, %v1776
        %1810 = vst.msk [vmem:[%s1808 + $0x4] sm:$0xf] %vm1008, %v1777
        %1811 = vst.msk [vmem:[%s1808 + $0x8] sm:$0xf] %vm1008, %v1778
        %1812 = vst.msk [vmem:[%s1808 + $0xc] sm:$0xf] %vm1008, %v1779
        %1813 = vst.msk [vmem:[%s1808 + $0x10] sm:$0xf] %vm1008, %v1780
        %1814 = vst.msk [vmem:[%s1808 + $0x14] sm:$0xf] %vm1008, %v1781
        %1815 = vst.msk [vmem:[%s1808 + $0x18] sm:$0xf] %vm1008, %v1782
        %1816 = vst.msk [vmem:[%s1808 + $0x1c] sm:$0xf] %vm1008, %v1783
        %1817 = vst.msk [vmem:[%s1808 + $0x20] sm:$0xf] %vm1008, %v1784
        %1818 = vst.msk [vmem:[%s1808 + $0x24] sm:$0xf] %vm1008, %v1785
        %1819 = vst.msk [vmem:[%s1808 + $0x28] sm:$0xf] %vm1008, %v1786
        %1820 = vst.msk [vmem:[%s1808 + $0x2c] sm:$0xf] %vm1008, %v1787
        %1821 = vst.msk [vmem:[%s1808 + $0x30] sm:$0xf] %vm1008, %v1788
        %1822 = vst.msk [vmem:[%s1808 + $0x34] sm:$0xf] %vm1008, %v1789
        %1823 = vst.msk [vmem:[%s1808 + $0x38] sm:$0xf] %vm1008, %v1790
        %1824 = vst.msk [vmem:[%s1808 + $0x3c] sm:$0xf] %vm1008, %v1791
        %1825 = vst.msk [vmem:[%s1808 + $0x40] sm:$0xf] %vm1008, %v1792
        %1826 = vst.msk [vmem:[%s1808 + $0x44] sm:$0xf] %vm1008, %v1793
        %1827 = vst.msk [vmem:[%s1808 + $0x48] sm:$0xf] %vm1008, %v1794
        %1828 = vst.msk [vmem:[%s1808 + $0x4c] sm:$0xf] %vm1008, %v1795
        %1829 = vst.msk [vmem:[%s1808 + $0x50] sm:$0xf] %vm1008, %v1796
        %1830 = vst.msk [vmem:[%s1808 + $0x54] sm:$0xf] %vm1008, %v1797
        %1831 = vst.msk [vmem:[%s1808 + $0x58] sm:$0xf] %vm1008, %v1798
        %1832 = vst.msk [vmem:[%s1808 + $0x5c] sm:$0xf] %vm1008, %v1799
        %1833 = vst.msk [vmem:[%s1808 + $0x60] sm:$0xf] %vm1008, %v1800
        %1834 = vst.msk [vmem:[%s1808 + $0x64] sm:$0xf] %vm1008, %v1801
        %1835 = vst.msk [vmem:[%s1808 + $0x68] sm:$0xf] %vm1008, %v1802
        %1836 = vst.msk [vmem:[%s1808 + $0x6c] sm:$0xf] %vm1008, %v1803
        %1837 = vst.msk [vmem:[%s1808 + $0x70] sm:$0xf] %vm1008, %v1804
        %1838 = vst.msk [vmem:[%s1808 + $0x74] sm:$0xf] %vm1008, %v1805
        %1839 = vst.msk [vmem:[%s1808 + $0x78] sm:$0xf] %vm1008, %v1806
        %1840 = vst.msk [vmem:[%s1808 + $0x7c] sm:$0xf] %vm1008, %v1807
        %s1841 = scalar_lea.vmem %s1, 128
        %v1842 = vld [vmem:[%s1841] sm:$0xf]
        %v1843 = vld [vmem:[%s1841 + $0x4] sm:$0xf]
        %v1844 = vld [vmem:[%s1841 + $0x8] sm:$0xf]
        %v1845 = vld [vmem:[%s1841 + $0xc] sm:$0xf]
        %v1846 = vld [vmem:[%s1841 + $0x10] sm:$0xf]
        %v1847 = vld [vmem:[%s1841 + $0x14] sm:$0xf]
        %v1848 = vld [vmem:[%s1841 + $0x18] sm:$0xf]
        %v1849 = vld [vmem:[%s1841 + $0x1c] sm:$0xf]
        %v1850 = vld [vmem:[%s1841 + $0x20] sm:$0xf]
        %v1851 = vld [vmem:[%s1841 + $0x24] sm:$0xf]
        %v1852 = vld [vmem:[%s1841 + $0x28] sm:$0xf]
        %v1853 = vld [vmem:[%s1841 + $0x2c] sm:$0xf]
        %v1854 = vld [vmem:[%s1841 + $0x30] sm:$0xf]
        %v1855 = vld [vmem:[%s1841 + $0x34] sm:$0xf]
        %v1856 = vld [vmem:[%s1841 + $0x38] sm:$0xf]
        %v1857 = vld [vmem:[%s1841 + $0x3c] sm:$0xf]
        %s1858 = scalar_lea.vmem %s2, 2
        %v1859 = vld [vmem:[%s1858] sm:$0x1]
        %v1861 = vperm.slane %v1859, 0
        %v1879 = vunpack.c.l.b16 %v1842
        %v1880 = vunpack.c.l.b16 %v1843
        %v1881 = vunpack.c.l.b16 %v1844
        %v1882 = vunpack.c.l.b16 %v1845
        %v1883 = vunpack.c.l.b16 %v1846
        %v1884 = vunpack.c.l.b16 %v1847
        %v1885 = vunpack.c.l.b16 %v1848
        %v1886 = vunpack.c.l.b16 %v1849
        %v1887 = vunpack.c.l.b16 %v1850
        %v1888 = vunpack.c.l.b16 %v1851
        %v1889 = vunpack.c.l.b16 %v1852
        %v1890 = vunpack.c.l.b16 %v1853
        %v1891 = vunpack.c.l.b16 %v1854
        %v1892 = vunpack.c.l.b16 %v1855
        %v1893 = vunpack.c.l.b16 %v1856
        %v1894 = vunpack.c.l.b16 %v1857
        %v1895 = vpack.c.b16 %v1880, %v1879
        %v1896 = vpack.c.b16 %v1882, %v1881
        %v1897 = vpack.c.b16 %v1884, %v1883
        %v1898 = vpack.c.b16 %v1886, %v1885
        %v1899 = vpack.c.b16 %v1888, %v1887
        %v1900 = vpack.c.b16 %v1890, %v1889
        %v1901 = vpack.c.b16 %v1892, %v1891
        %v1902 = vpack.c.b16 %v1894, %v1893
        %1911 = vmatpush.bf16.msra.mxu0 %v1902
        %1912 = vmatpush.bf16.msra.mxu0 %v1901
        %1913 = vmatpush.bf16.msra.mxu0 %v1900
        %1914 = vmatpush.bf16.msra.mxu0 %v1899
        %1915 = vmatpush.bf16.msra.mxu0 %v1898
        %1916 = vmatpush.bf16.msra.mxu0 %v1897
        %1917 = vmatpush.bf16.msra.mxu0 %v1896
        %1918 = vmatpush.bf16.msra.mxu0 %v1895
        %1919 = vmatmul.bf16.gmra.mxu0 %v493
        %v1920 = vpop.f32.mrf.mxu0
        %v1921 = vadd.f32 %v1861, %v1920
        %v1922 = vpop.f32.mrf.mxu0
        %v1923 = vadd.f32 %v1861, %v1922
        %1924 = vmatmul.bf16.gmra.mxu0 %v494
        %v1925 = vpop.f32.mrf.mxu0
        %v1926 = vadd.f32 %v1861, %v1925
        %v1927 = vpop.f32.mrf.mxu0
        %v1928 = vadd.f32 %v1861, %v1927
        %1929 = vmatmul.bf16.gmra.mxu0 %v495
        %v1930 = vpop.f32.mrf.mxu0
        %v1931 = vadd.f32 %v1861, %v1930
        %v1932 = vpop.f32.mrf.mxu0
        %v1933 = vadd.f32 %v1861, %v1932
        %1934 = vmatmul.bf16.gmra.mxu0 %v496
        %v1935 = vpop.f32.mrf.mxu0
        %v1936 = vadd.f32 %v1861, %v1935
        %v1937 = vpop.f32.mrf.mxu0
        %v1938 = vadd.f32 %v1861, %v1937
        %1939 = vmatmul.bf16.gmra.mxu0 %v497
        %v1940 = vpop.f32.mrf.mxu0
        %v1941 = vadd.f32 %v1861, %v1940
        %v1942 = vpop.f32.mrf.mxu0
        %v1943 = vadd.f32 %v1861, %v1942
        %1944 = vmatmul.bf16.gmra.mxu0 %v498
        %v1945 = vpop.f32.mrf.mxu0
        %v1946 = vadd.f32 %v1861, %v1945
        %v1947 = vpop.f32.mrf.mxu0
        %v1948 = vadd.f32 %v1861, %v1947
        %1949 = vmatmul.bf16.gmra.mxu0 %v499
        %v1950 = vpop.f32.mrf.mxu0
        %v1951 = vadd.f32 %v1861, %v1950
        %v1952 = vpop.f32.mrf.mxu0
        %v1953 = vadd.f32 %v1861, %v1952
        %1954 = vmatmul.bf16.gmra.mxu0 %v500
        %v1955 = vpop.f32.mrf.mxu0
        %v1956 = vadd.f32 %v1861, %v1955
        %v1957 = vpop.f32.mrf.mxu0
        %v1958 = vadd.f32 %v1861, %v1957
        %1959 = vmatmul.bf16.gmra.mxu0 %v501
        %v1960 = vpop.f32.mrf.mxu0
        %v1961 = vadd.f32 %v1861, %v1960
        %v1962 = vpop.f32.mrf.mxu0
        %v1963 = vadd.f32 %v1861, %v1962
        %1964 = vmatmul.bf16.gmra.mxu0 %v502
        %v1965 = vpop.f32.mrf.mxu0
        %v1966 = vadd.f32 %v1861, %v1965
        %v1967 = vpop.f32.mrf.mxu0
        %v1968 = vadd.f32 %v1861, %v1967
        %1969 = vmatmul.bf16.gmra.mxu0 %v503
        %v1970 = vpop.f32.mrf.mxu0
        %v1971 = vadd.f32 %v1861, %v1970
        %v1972 = vpop.f32.mrf.mxu0
        %v1973 = vadd.f32 %v1861, %v1972
        %1974 = vmatmul.bf16.gmra.mxu0 %v504
        %v1975 = vpop.f32.mrf.mxu0
        %v1976 = vadd.f32 %v1861, %v1975
        %v1977 = vpop.f32.mrf.mxu0
        %v1978 = vadd.f32 %v1861, %v1977
        %1979 = vmatmul.bf16.gmra.mxu0 %v505
        %v1980 = vpop.f32.mrf.mxu0
        %v1981 = vadd.f32 %v1861, %v1980
        %v1982 = vpop.f32.mrf.mxu0
        %v1983 = vadd.f32 %v1861, %v1982
        %1984 = vmatmul.bf16.gmra.mxu0 %v506
        %v1985 = vpop.f32.mrf.mxu0
        %v1986 = vadd.f32 %v1861, %v1985
        %v1987 = vpop.f32.mrf.mxu0
        %v1988 = vadd.f32 %v1861, %v1987
        %1989 = vmatmul.bf16.gmra.mxu0 %v507
        %v1990 = vpop.f32.mrf.mxu0
        %v1991 = vadd.f32 %v1861, %v1990
        %v1992 = vpop.f32.mrf.mxu0
        %v1993 = vadd.f32 %v1861, %v1992
        %1994 = vmatmul.bf16.gmra.mxu0 %v508
        %v1995 = vpop.f32.mrf.mxu0
        %v1996 = vadd.f32 %v1861, %v1995
        %v1997 = vpop.f32.mrf.mxu0
        %v1998 = vadd.f32 %v1861, %v1997
        %1999 = vdwg.mxu0
        %s2000 = scalar_lea.vmem %s3, 128
        %v2001 = vld [vmem:[%s2000] sm:$0xf]
        %v2002 = vld [vmem:[%s2000 + $0x4] sm:$0xf]
        %v2003 = vld [vmem:[%s2000 + $0x8] sm:$0xf]
        %v2004 = vld [vmem:[%s2000 + $0xc] sm:$0xf]
        %v2005 = vld [vmem:[%s2000 + $0x10] sm:$0xf]
        %v2006 = vld [vmem:[%s2000 + $0x14] sm:$0xf]
        %v2007 = vld [vmem:[%s2000 + $0x18] sm:$0xf]
        %v2008 = vld [vmem:[%s2000 + $0x1c] sm:$0xf]
        %v2009 = vld [vmem:[%s2000 + $0x20] sm:$0xf]
        %v2010 = vld [vmem:[%s2000 + $0x24] sm:$0xf]
        %v2011 = vld [vmem:[%s2000 + $0x28] sm:$0xf]
        %v2012 = vld [vmem:[%s2000 + $0x2c] sm:$0xf]
        %v2013 = vld [vmem:[%s2000 + $0x30] sm:$0xf]
        %v2014 = vld [vmem:[%s2000 + $0x34] sm:$0xf]
        %v2015 = vld [vmem:[%s2000 + $0x38] sm:$0xf]
        %v2016 = vld [vmem:[%s2000 + $0x3c] sm:$0xf]
        %s2017 = scalar_lea.vmem %s4, 2
        %v2018 = vld [vmem:[%s2017] sm:$0x1]
        %v2020 = vperm.slane %v2018, 0
        %v2038 = vunpack.c.l.b16 %v2001
        %v2039 = vunpack.c.l.b16 %v2002
        %v2040 = vunpack.c.l.b16 %v2003
        %v2041 = vunpack.c.l.b16 %v2004
        %v2042 = vunpack.c.l.b16 %v2005
        %v2043 = vunpack.c.l.b16 %v2006
        %v2044 = vunpack.c.l.b16 %v2007
        %v2045 = vunpack.c.l.b16 %v2008
        %v2046 = vunpack.c.l.b16 %v2009
        %v2047 = vunpack.c.l.b16 %v2010
        %v2048 = vunpack.c.l.b16 %v2011
        %v2049 = vunpack.c.l.b16 %v2012
        %v2050 = vunpack.c.l.b16 %v2013
        %v2051 = vunpack.c.l.b16 %v2014
        %v2052 = vunpack.c.l.b16 %v2015
        %v2053 = vunpack.c.l.b16 %v2016
        %v2054 = vpack.c.b16 %v2039, %v2038
        %v2055 = vpack.c.b16 %v2041, %v2040
        %v2056 = vpack.c.b16 %v2043, %v2042
        %v2057 = vpack.c.b16 %v2045, %v2044
        %v2058 = vpack.c.b16 %v2047, %v2046
        %v2059 = vpack.c.b16 %v2049, %v2048
        %v2060 = vpack.c.b16 %v2051, %v2050
        %v2061 = vpack.c.b16 %v2053, %v2052
        %2070 = vmatpush.bf16.msra.mxu0 %v2061
        %2071 = vmatpush.bf16.msra.mxu0 %v2060
        %2072 = vmatpush.bf16.msra.mxu0 %v2059
        %2073 = vmatpush.bf16.msra.mxu0 %v2058
        %2074 = vmatpush.bf16.msra.mxu0 %v2057
        %2075 = vmatpush.bf16.msra.mxu0 %v2056
        %2076 = vmatpush.bf16.msra.mxu0 %v2055
        %2077 = vmatpush.bf16.msra.mxu0 %v2054
        %2078 = vmatmul.bf16.gmra.mxu0 %v493
        %v2079 = vpop.f32.mrf.mxu0
        %v2080 = vadd.f32 %v2020, %v2079
        %v2081 = vpop.f32.mrf.mxu0
        %v2082 = vadd.f32 %v2020, %v2081
        %2083 = vmatmul.bf16.gmra.mxu0 %v494
        %v2084 = vpop.f32.mrf.mxu0
        %v2085 = vadd.f32 %v2020, %v2084
        %v2086 = vpop.f32.mrf.mxu0
        %v2087 = vadd.f32 %v2020, %v2086
        %2088 = vmatmul.bf16.gmra.mxu0 %v495
        %v2089 = vpop.f32.mrf.mxu0
        %v2090 = vadd.f32 %v2020, %v2089
        %v2091 = vpop.f32.mrf.mxu0
        %v2092 = vadd.f32 %v2020, %v2091
        %2093 = vmatmul.bf16.gmra.mxu0 %v496
        %v2094 = vpop.f32.mrf.mxu0
        %v2095 = vadd.f32 %v2020, %v2094
        %v2096 = vpop.f32.mrf.mxu0
        %v2097 = vadd.f32 %v2020, %v2096
        %2098 = vmatmul.bf16.gmra.mxu0 %v497
        %v2099 = vpop.f32.mrf.mxu0
        %v2100 = vadd.f32 %v2020, %v2099
        %v2101 = vpop.f32.mrf.mxu0
        %v2102 = vadd.f32 %v2020, %v2101
        %2103 = vmatmul.bf16.gmra.mxu0 %v498
        %v2104 = vpop.f32.mrf.mxu0
        %v2105 = vadd.f32 %v2020, %v2104
        %v2106 = vpop.f32.mrf.mxu0
        %v2107 = vadd.f32 %v2020, %v2106
        %2108 = vmatmul.bf16.gmra.mxu0 %v499
        %v2109 = vpop.f32.mrf.mxu0
        %v2110 = vadd.f32 %v2020, %v2109
        %v2111 = vpop.f32.mrf.mxu0
        %v2112 = vadd.f32 %v2020, %v2111
        %2113 = vmatmul.bf16.gmra.mxu0 %v500
        %v2114 = vpop.f32.mrf.mxu0
        %v2115 = vadd.f32 %v2020, %v2114
        %v2116 = vpop.f32.mrf.mxu0
        %v2117 = vadd.f32 %v2020, %v2116
        %2118 = vmatmul.bf16.gmra.mxu0 %v501
        %v2119 = vpop.f32.mrf.mxu0
        %v2120 = vadd.f32 %v2020, %v2119
        %v2121 = vpop.f32.mrf.mxu0
        %v2122 = vadd.f32 %v2020, %v2121
        %2123 = vmatmul.bf16.gmra.mxu0 %v502
        %v2124 = vpop.f32.mrf.mxu0
        %v2125 = vadd.f32 %v2020, %v2124
        %v2126 = vpop.f32.mrf.mxu0
        %v2127 = vadd.f32 %v2020, %v2126
        %2128 = vmatmul.bf16.gmra.mxu0 %v503
        %v2129 = vpop.f32.mrf.mxu0
        %v2130 = vadd.f32 %v2020, %v2129
        %v2131 = vpop.f32.mrf.mxu0
        %v2132 = vadd.f32 %v2020, %v2131
        %2133 = vmatmul.bf16.gmra.mxu0 %v504
        %v2134 = vpop.f32.mrf.mxu0
        %v2135 = vadd.f32 %v2020, %v2134
        %v2136 = vpop.f32.mrf.mxu0
        %v2137 = vadd.f32 %v2020, %v2136
        %2138 = vmatmul.bf16.gmra.mxu0 %v505
        %v2139 = vpop.f32.mrf.mxu0
        %v2140 = vadd.f32 %v2020, %v2139
        %v2141 = vpop.f32.mrf.mxu0
        %v2142 = vadd.f32 %v2020, %v2141
        %2143 = vmatmul.bf16.gmra.mxu0 %v506
        %v2144 = vpop.f32.mrf.mxu0
        %v2145 = vadd.f32 %v2020, %v2144
        %v2146 = vpop.f32.mrf.mxu0
        %v2147 = vadd.f32 %v2020, %v2146
        %2148 = vmatmul.bf16.gmra.mxu0 %v507
        %v2149 = vpop.f32.mrf.mxu0
        %v2150 = vadd.f32 %v2020, %v2149
        %v2151 = vpop.f32.mrf.mxu0
        %v2152 = vadd.f32 %v2020, %v2151
        %2153 = vmatmul.bf16.gmra.mxu0 %v508
        %v2154 = vpop.f32.mrf.mxu0
        %v2155 = vadd.f32 %v2020, %v2154
        %v2156 = vpop.f32.mrf.mxu0
        %v2157 = vadd.f32 %v2020, %v2156
        %2158 = vdwg.mxu0
        %s2159 = scalar_lea.vmem %s5, 128
        %v2160 = vld [vmem:[%s2159] sm:$0xf]
        %v2161 = vld [vmem:[%s2159 + $0x4] sm:$0xf]
        %v2162 = vld [vmem:[%s2159 + $0x8] sm:$0xf]
        %v2163 = vld [vmem:[%s2159 + $0xc] sm:$0xf]
        %v2164 = vld [vmem:[%s2159 + $0x10] sm:$0xf]
        %v2165 = vld [vmem:[%s2159 + $0x14] sm:$0xf]
        %v2166 = vld [vmem:[%s2159 + $0x18] sm:$0xf]
        %v2167 = vld [vmem:[%s2159 + $0x1c] sm:$0xf]
        %v2168 = vld [vmem:[%s2159 + $0x20] sm:$0xf]
        %v2169 = vld [vmem:[%s2159 + $0x24] sm:$0xf]
        %v2170 = vld [vmem:[%s2159 + $0x28] sm:$0xf]
        %v2171 = vld [vmem:[%s2159 + $0x2c] sm:$0xf]
        %v2172 = vld [vmem:[%s2159 + $0x30] sm:$0xf]
        %v2173 = vld [vmem:[%s2159 + $0x34] sm:$0xf]
        %v2174 = vld [vmem:[%s2159 + $0x38] sm:$0xf]
        %v2175 = vld [vmem:[%s2159 + $0x3c] sm:$0xf]
        %s2176 = scalar_lea.vmem %s6, 2
        %v2177 = vld [vmem:[%s2176] sm:$0x1]
        %v2179 = vperm.slane %v2177, 0
        %v2197 = vunpack.c.l.b16 %v2160
        %v2198 = vunpack.c.l.b16 %v2161
        %v2199 = vunpack.c.l.b16 %v2162
        %v2200 = vunpack.c.l.b16 %v2163
        %v2201 = vunpack.c.l.b16 %v2164
        %v2202 = vunpack.c.l.b16 %v2165
        %v2203 = vunpack.c.l.b16 %v2166
        %v2204 = vunpack.c.l.b16 %v2167
        %v2205 = vunpack.c.l.b16 %v2168
        %v2206 = vunpack.c.l.b16 %v2169
        %v2207 = vunpack.c.l.b16 %v2170
        %v2208 = vunpack.c.l.b16 %v2171
        %v2209 = vunpack.c.l.b16 %v2172
        %v2210 = vunpack.c.l.b16 %v2173
        %v2211 = vunpack.c.l.b16 %v2174
        %v2212 = vunpack.c.l.b16 %v2175
        %v2213 = vpack.c.b16 %v2198, %v2197
        %v2214 = vpack.c.b16 %v2200, %v2199
        %v2215 = vpack.c.b16 %v2202, %v2201
        %v2216 = vpack.c.b16 %v2204, %v2203
        %v2217 = vpack.c.b16 %v2206, %v2205
        %v2218 = vpack.c.b16 %v2208, %v2207
        %v2219 = vpack.c.b16 %v2210, %v2209
        %v2220 = vpack.c.b16 %v2212, %v2211
        %2229 = vmatpush.bf16.msra.mxu0 %v2220
        %2230 = vmatpush.bf16.msra.mxu0 %v2219
        %2231 = vmatpush.bf16.msra.mxu0 %v2218
        %2232 = vmatpush.bf16.msra.mxu0 %v2217
        %2233 = vmatpush.bf16.msra.mxu0 %v2216
        %2234 = vmatpush.bf16.msra.mxu0 %v2215
        %2235 = vmatpush.bf16.msra.mxu0 %v2214
        %2236 = vmatpush.bf16.msra.mxu0 %v2213
        %2237 = vmatmul.bf16.gmra.mxu0 %v493
        %v2238 = vpop.f32.mrf.mxu0
        %v2239 = vadd.f32 %v2179, %v2238
        %v2240 = vpop.f32.mrf.mxu0
        %v2241 = vadd.f32 %v2179, %v2240
        %2242 = vmatmul.bf16.gmra.mxu0 %v494
        %v2243 = vpop.f32.mrf.mxu0
        %v2244 = vadd.f32 %v2179, %v2243
        %v2245 = vpop.f32.mrf.mxu0
        %v2246 = vadd.f32 %v2179, %v2245
        %2247 = vmatmul.bf16.gmra.mxu0 %v495
        %v2248 = vpop.f32.mrf.mxu0
        %v2249 = vadd.f32 %v2179, %v2248
        %v2250 = vpop.f32.mrf.mxu0
        %v2251 = vadd.f32 %v2179, %v2250
        %2252 = vmatmul.bf16.gmra.mxu0 %v496
        %v2253 = vpop.f32.mrf.mxu0
        %v2254 = vadd.f32 %v2179, %v2253
        %v2255 = vpop.f32.mrf.mxu0
        %v2256 = vadd.f32 %v2179, %v2255
        %2257 = vmatmul.bf16.gmra.mxu0 %v497
        %v2258 = vpop.f32.mrf.mxu0
        %v2259 = vadd.f32 %v2179, %v2258
        %v2260 = vpop.f32.mrf.mxu0
        %v2261 = vadd.f32 %v2179, %v2260
        %2262 = vmatmul.bf16.gmra.mxu0 %v498
        %v2263 = vpop.f32.mrf.mxu0
        %v2264 = vadd.f32 %v2179, %v2263
        %v2265 = vpop.f32.mrf.mxu0
        %v2266 = vadd.f32 %v2179, %v2265
        %2267 = vmatmul.bf16.gmra.mxu0 %v499
        %v2268 = vpop.f32.mrf.mxu0
        %v2269 = vadd.f32 %v2179, %v2268
        %v2270 = vpop.f32.mrf.mxu0
        %v2271 = vadd.f32 %v2179, %v2270
        %2272 = vmatmul.bf16.gmra.mxu0 %v500
        %v2273 = vpop.f32.mrf.mxu0
        %v2274 = vadd.f32 %v2179, %v2273
        %v2275 = vpop.f32.mrf.mxu0
        %v2276 = vadd.f32 %v2179, %v2275
        %2277 = vmatmul.bf16.gmra.mxu0 %v501
        %v2278 = vpop.f32.mrf.mxu0
        %v2279 = vadd.f32 %v2179, %v2278
        %v2280 = vpop.f32.mrf.mxu0
        %v2281 = vadd.f32 %v2179, %v2280
        %2282 = vmatmul.bf16.gmra.mxu0 %v502
        %v2283 = vpop.f32.mrf.mxu0
        %v2284 = vadd.f32 %v2179, %v2283
        %v2285 = vpop.f32.mrf.mxu0
        %v2286 = vadd.f32 %v2179, %v2285
        %2287 = vmatmul.bf16.gmra.mxu0 %v503
        %v2288 = vpop.f32.mrf.mxu0
        %v2289 = vadd.f32 %v2179, %v2288
        %v2290 = vpop.f32.mrf.mxu0
        %v2291 = vadd.f32 %v2179, %v2290
        %2292 = vmatmul.bf16.gmra.mxu0 %v504
        %v2293 = vpop.f32.mrf.mxu0
        %v2294 = vadd.f32 %v2179, %v2293
        %v2295 = vpop.f32.mrf.mxu0
        %v2296 = vadd.f32 %v2179, %v2295
        %2297 = vmatmul.bf16.gmra.mxu0 %v505
        %v2298 = vpop.f32.mrf.mxu0
        %v2299 = vadd.f32 %v2179, %v2298
        %v2300 = vpop.f32.mrf.mxu0
        %v2301 = vadd.f32 %v2179, %v2300
        %2302 = vmatmul.bf16.gmra.mxu0 %v506
        %v2303 = vpop.f32.mrf.mxu0
        %v2304 = vadd.f32 %v2179, %v2303
        %v2305 = vpop.f32.mrf.mxu0
        %v2306 = vadd.f32 %v2179, %v2305
        %2307 = vmatmul.bf16.gmra.mxu0 %v507
        %v2308 = vpop.f32.mrf.mxu0
        %v2309 = vadd.f32 %v2179, %v2308
        %v2310 = vpop.f32.mrf.mxu0
        %v2311 = vadd.f32 %v2179, %v2310
        %2312 = vmatmul.bf16.gmra.mxu0 %v508
        %v2313 = vpop.f32.mrf.mxu0
        %v2314 = vadd.f32 %v2179, %v2313
        %v2315 = vpop.f32.mrf.mxu0
        %v2316 = vadd.f32 %v2179, %v2315
        %2317 = vdwg.mxu0
        %v2318 = vpack.c.bf16 %v1921, %v1921
        %v2319 = vpack.c.bf16 %v1923, %v1923
        %v2320 = vpack.c.bf16 %v1926, %v1926
        %v2321 = vpack.c.bf16 %v1928, %v1928
        %v2322 = vpack.c.bf16 %v1931, %v1931
        %v2323 = vpack.c.bf16 %v1933, %v1933
        %v2324 = vpack.c.bf16 %v1936, %v1936
        %v2325 = vpack.c.bf16 %v1938, %v1938
        %v2326 = vpack.c.bf16 %v1941, %v1941
        %v2327 = vpack.c.bf16 %v1943, %v1943
        %v2328 = vpack.c.bf16 %v1946, %v1946
        %v2329 = vpack.c.bf16 %v1948, %v1948
        %v2330 = vpack.c.bf16 %v1951, %v1951
        %v2331 = vpack.c.bf16 %v1953, %v1953
        %v2332 = vpack.c.bf16 %v1956, %v1956
        %v2333 = vpack.c.bf16 %v1958, %v1958
        %v2334 = vpack.c.bf16 %v1961, %v1961
        %v2335 = vpack.c.bf16 %v1963, %v1963
        %v2336 = vpack.c.bf16 %v1966, %v1966
        %v2337 = vpack.c.bf16 %v1968, %v1968
        %v2338 = vpack.c.bf16 %v1971, %v1971
        %v2339 = vpack.c.bf16 %v1973, %v1973
        %v2340 = vpack.c.bf16 %v1976, %v1976
        %v2341 = vpack.c.bf16 %v1978, %v1978
        %v2342 = vpack.c.bf16 %v1981, %v1981
        %v2343 = vpack.c.bf16 %v1983, %v1983
        %v2344 = vpack.c.bf16 %v1986, %v1986
        %v2345 = vpack.c.bf16 %v1988, %v1988
        %v2346 = vpack.c.bf16 %v1991, %v1991
        %v2347 = vpack.c.bf16 %v1993, %v1993
        %v2348 = vpack.c.bf16 %v1996, %v1996
        %v2349 = vpack.c.bf16 %v1998, %v1998
        %s2350 = scalar_lea.vmem %s351, 256 [#allocation2]
        %2351 = vst.msk [vmem:[%s2350] sm:$0xf] %vm1008, %v2318
        %2352 = vst.msk [vmem:[%s2350 + $0x4] sm:$0xf] %vm1008, %v2319
        %2353 = vst.msk [vmem:[%s2350 + $0x8] sm:$0xf] %vm1008, %v2320
        %2354 = vst.msk [vmem:[%s2350 + $0xc] sm:$0xf] %vm1008, %v2321
        %2355 = vst.msk [vmem:[%s2350 + $0x10] sm:$0xf] %vm1008, %v2322
        %2356 = vst.msk [vmem:[%s2350 + $0x14] sm:$0xf] %vm1008, %v2323
        %2357 = vst.msk [vmem:[%s2350 + $0x18] sm:$0xf] %vm1008, %v2324
        %2358 = vst.msk [vmem:[%s2350 + $0x1c] sm:$0xf] %vm1008, %v2325
        %2359 = vst.msk [vmem:[%s2350 + $0x20] sm:$0xf] %vm1008, %v2326
        %2360 = vst.msk [vmem:[%s2350 + $0x24] sm:$0xf] %vm1008, %v2327
        %2361 = vst.msk [vmem:[%s2350 + $0x28] sm:$0xf] %vm1008, %v2328
        %2362 = vst.msk [vmem:[%s2350 + $0x2c] sm:$0xf] %vm1008, %v2329
        %2363 = vst.msk [vmem:[%s2350 + $0x30] sm:$0xf] %vm1008, %v2330
        %2364 = vst.msk [vmem:[%s2350 + $0x34] sm:$0xf] %vm1008, %v2331
        %2365 = vst.msk [vmem:[%s2350 + $0x38] sm:$0xf] %vm1008, %v2332
        %2366 = vst.msk [vmem:[%s2350 + $0x3c] sm:$0xf] %vm1008, %v2333
        %2367 = vst.msk [vmem:[%s2350 + $0x40] sm:$0xf] %vm1008, %v2334
        %2368 = vst.msk [vmem:[%s2350 + $0x44] sm:$0xf] %vm1008, %v2335
        %2369 = vst.msk [vmem:[%s2350 + $0x48] sm:$0xf] %vm1008, %v2336
        %2370 = vst.msk [vmem:[%s2350 + $0x4c] sm:$0xf] %vm1008, %v2337
        %2371 = vst.msk [vmem:[%s2350 + $0x50] sm:$0xf] %vm1008, %v2338
        %2372 = vst.msk [vmem:[%s2350 + $0x54] sm:$0xf] %vm1008, %v2339
        %2373 = vst.msk [vmem:[%s2350 + $0x58] sm:$0xf] %vm1008, %v2340
        %2374 = vst.msk [vmem:[%s2350 + $0x5c] sm:$0xf] %vm1008, %v2341
        %2375 = vst.msk [vmem:[%s2350 + $0x60] sm:$0xf] %vm1008, %v2342
        %2376 = vst.msk [vmem:[%s2350 + $0x64] sm:$0xf] %vm1008, %v2343
        %2377 = vst.msk [vmem:[%s2350 + $0x68] sm:$0xf] %vm1008, %v2344
        %2378 = vst.msk [vmem:[%s2350 + $0x6c] sm:$0xf] %vm1008, %v2345
        %2379 = vst.msk [vmem:[%s2350 + $0x70] sm:$0xf] %vm1008, %v2346
        %2380 = vst.msk [vmem:[%s2350 + $0x74] sm:$0xf] %vm1008, %v2347
        %2381 = vst.msk [vmem:[%s2350 + $0x78] sm:$0xf] %vm1008, %v2348
        %2382 = vst.msk [vmem:[%s2350 + $0x7c] sm:$0xf] %vm1008, %v2349
        %v2383 = vpack.c.bf16 %v2080, %v2080
        %v2384 = vpack.c.bf16 %v2082, %v2082
        %v2385 = vpack.c.bf16 %v2085, %v2085
        %v2386 = vpack.c.bf16 %v2087, %v2087
        %v2387 = vpack.c.bf16 %v2090, %v2090
        %v2388 = vpack.c.bf16 %v2092, %v2092
        %v2389 = vpack.c.bf16 %v2095, %v2095
        %v2390 = vpack.c.bf16 %v2097, %v2097
        %v2391 = vpack.c.bf16 %v2100, %v2100
        %v2392 = vpack.c.bf16 %v2102, %v2102
        %v2393 = vpack.c.bf16 %v2105, %v2105
        %v2394 = vpack.c.bf16 %v2107, %v2107
        %v2395 = vpack.c.bf16 %v2110, %v2110
        %v2396 = vpack.c.bf16 %v2112, %v2112
        %v2397 = vpack.c.bf16 %v2115, %v2115
        %v2398 = vpack.c.bf16 %v2117, %v2117
        %v2399 = vpack.c.bf16 %v2120, %v2120
        %v2400 = vpack.c.bf16 %v2122, %v2122
        %v2401 = vpack.c.bf16 %v2125, %v2125
        %v2402 = vpack.c.bf16 %v2127, %v2127
        %v2403 = vpack.c.bf16 %v2130, %v2130
        %v2404 = vpack.c.bf16 %v2132, %v2132
        %v2405 = vpack.c.bf16 %v2135, %v2135
        %v2406 = vpack.c.bf16 %v2137, %v2137
        %v2407 = vpack.c.bf16 %v2140, %v2140
        %v2408 = vpack.c.bf16 %v2142, %v2142
        %v2409 = vpack.c.bf16 %v2145, %v2145
        %v2410 = vpack.c.bf16 %v2147, %v2147
        %v2411 = vpack.c.bf16 %v2150, %v2150
        %v2412 = vpack.c.bf16 %v2152, %v2152
        %v2413 = vpack.c.bf16 %v2155, %v2155
        %v2414 = vpack.c.bf16 %v2157, %v2157
        %s2415 = scalar_lea.vmem %s357, 256 [#allocation3]
        %2416 = vst.msk [vmem:[%s2415] sm:$0xf] %vm1008, %v2383
        %2417 = vst.msk [vmem:[%s2415 + $0x4] sm:$0xf] %vm1008, %v2384
        %2418 = vst.msk [vmem:[%s2415 + $0x8] sm:$0xf] %vm1008, %v2385
        %2419 = vst.msk [vmem:[%s2415 + $0xc] sm:$0xf] %vm1008, %v2386
        %2420 = vst.msk [vmem:[%s2415 + $0x10] sm:$0xf] %vm1008, %v2387
        %2421 = vst.msk [vmem:[%s2415 + $0x14] sm:$0xf] %vm1008, %v2388
        %2422 = vst.msk [vmem:[%s2415 + $0x18] sm:$0xf] %vm1008, %v2389
        %2423 = vst.msk [vmem:[%s2415 + $0x1c] sm:$0xf] %vm1008, %v2390
        %2424 = vst.msk [vmem:[%s2415 + $0x20] sm:$0xf] %vm1008, %v2391
        %2425 = vst.msk [vmem:[%s2415 + $0x24] sm:$0xf] %vm1008, %v2392
        %2426 = vst.msk [vmem:[%s2415 + $0x28] sm:$0xf] %vm1008, %v2393
        %2427 = vst.msk [vmem:[%s2415 + $0x2c] sm:$0xf] %vm1008, %v2394
        %2428 = vst.msk [vmem:[%s2415 + $0x30] sm:$0xf] %vm1008, %v2395
        %2429 = vst.msk [vmem:[%s2415 + $0x34] sm:$0xf] %vm1008, %v2396
        %2430 = vst.msk [vmem:[%s2415 + $0x38] sm:$0xf] %vm1008, %v2397
        %2431 = vst.msk [vmem:[%s2415 + $0x3c] sm:$0xf] %vm1008, %v2398
        %2432 = vst.msk [vmem:[%s2415 + $0x40] sm:$0xf] %vm1008, %v2399
        %2433 = vst.msk [vmem:[%s2415 + $0x44] sm:$0xf] %vm1008, %v2400
        %2434 = vst.msk [vmem:[%s2415 + $0x48] sm:$0xf] %vm1008, %v2401
        %2435 = vst.msk [vmem:[%s2415 + $0x4c] sm:$0xf] %vm1008, %v2402
        %2436 = vst.msk [vmem:[%s2415 + $0x50] sm:$0xf] %vm1008, %v2403
        %2437 = vst.msk [vmem:[%s2415 + $0x54] sm:$0xf] %vm1008, %v2404
        %2438 = vst.msk [vmem:[%s2415 + $0x58] sm:$0xf] %vm1008, %v2405
        %2439 = vst.msk [vmem:[%s2415 + $0x5c] sm:$0xf] %vm1008, %v2406
        %2440 = vst.msk [vmem:[%s2415 + $0x60] sm:$0xf] %vm1008, %v2407
        %2441 = vst.msk [vmem:[%s2415 + $0x64] sm:$0xf] %vm1008, %v2408
        %2442 = vst.msk [vmem:[%s2415 + $0x68] sm:$0xf] %vm1008, %v2409
        %2443 = vst.msk [vmem:[%s2415 + $0x6c] sm:$0xf] %vm1008, %v2410
        %2444 = vst.msk [vmem:[%s2415 + $0x70] sm:$0xf] %vm1008, %v2411
        %2445 = vst.msk [vmem:[%s2415 + $0x74] sm:$0xf] %vm1008, %v2412
        %2446 = vst.msk [vmem:[%s2415 + $0x78] sm:$0xf] %vm1008, %v2413
        %2447 = vst.msk [vmem:[%s2415 + $0x7c] sm:$0xf] %vm1008, %v2414
        %v2448 = vpack.c.bf16 %v2239, %v2239
        %v2449 = vpack.c.bf16 %v2241, %v2241
        %v2450 = vpack.c.bf16 %v2244, %v2244
        %v2451 = vpack.c.bf16 %v2246, %v2246
        %v2452 = vpack.c.bf16 %v2249, %v2249
        %v2453 = vpack.c.bf16 %v2251, %v2251
        %v2454 = vpack.c.bf16 %v2254, %v2254
        %v2455 = vpack.c.bf16 %v2256, %v2256
        %v2456 = vpack.c.bf16 %v2259, %v2259
        %v2457 = vpack.c.bf16 %v2261, %v2261
        %v2458 = vpack.c.bf16 %v2264, %v2264
        %v2459 = vpack.c.bf16 %v2266, %v2266
        %v2460 = vpack.c.bf16 %v2269, %v2269
        %v2461 = vpack.c.bf16 %v2271, %v2271
        %v2462 = vpack.c.bf16 %v2274, %v2274
        %v2463 = vpack.c.bf16 %v2276, %v2276
        %v2464 = vpack.c.bf16 %v2279, %v2279
        %v2465 = vpack.c.bf16 %v2281, %v2281
        %v2466 = vpack.c.bf16 %v2284, %v2284
        %v2467 = vpack.c.bf16 %v2286, %v2286
        %v2468 = vpack.c.bf16 %v2289, %v2289
        %v2469 = vpack.c.bf16 %v2291, %v2291
        %v2470 = vpack.c.bf16 %v2294, %v2294
        %v2471 = vpack.c.bf16 %v2296, %v2296
        %v2472 = vpack.c.bf16 %v2299, %v2299
        %v2473 = vpack.c.bf16 %v2301, %v2301
        %v2474 = vpack.c.bf16 %v2304, %v2304
        %v2475 = vpack.c.bf16 %v2306, %v2306
        %v2476 = vpack.c.bf16 %v2309, %v2309
        %v2477 = vpack.c.bf16 %v2311, %v2311
        %v2478 = vpack.c.bf16 %v2314, %v2314
        %v2479 = vpack.c.bf16 %v2316, %v2316
        %s2480 = scalar_lea.vmem %s363, 256 [#allocation4]
        %2481 = vst.msk [vmem:[%s2480] sm:$0xf] %vm1008, %v2448
        %2482 = vst.msk [vmem:[%s2480 + $0x4] sm:$0xf] %vm1008, %v2449
        %2483 = vst.msk [vmem:[%s2480 + $0x8] sm:$0xf] %vm1008, %v2450
        %2484 = vst.msk [vmem:[%s2480 + $0xc] sm:$0xf] %vm1008, %v2451
        %2485 = vst.msk [vmem:[%s2480 + $0x10] sm:$0xf] %vm1008, %v2452
        %2486 = vst.msk [vmem:[%s2480 + $0x14] sm:$0xf] %vm1008, %v2453
        %2487 = vst.msk [vmem:[%s2480 + $0x18] sm:$0xf] %vm1008, %v2454
        %2488 = vst.msk [vmem:[%s2480 + $0x1c] sm:$0xf] %vm1008, %v2455
        %2489 = vst.msk [vmem:[%s2480 + $0x20] sm:$0xf] %vm1008, %v2456
        %2490 = vst.msk [vmem:[%s2480 + $0x24] sm:$0xf] %vm1008, %v2457
        %2491 = vst.msk [vmem:[%s2480 + $0x28] sm:$0xf] %vm1008, %v2458
        %2492 = vst.msk [vmem:[%s2480 + $0x2c] sm:$0xf] %vm1008, %v2459
        %2493 = vst.msk [vmem:[%s2480 + $0x30] sm:$0xf] %vm1008, %v2460
        %2494 = vst.msk [vmem:[%s2480 + $0x34] sm:$0xf] %vm1008, %v2461
        %2495 = vst.msk [vmem:[%s2480 + $0x38] sm:$0xf] %vm1008, %v2462
        %2496 = vst.msk [vmem:[%s2480 + $0x3c] sm:$0xf] %vm1008, %v2463
        %2497 = vst.msk [vmem:[%s2480 + $0x40] sm:$0xf] %vm1008, %v2464
        %2498 = vst.msk [vmem:[%s2480 + $0x44] sm:$0xf] %vm1008, %v2465
        %2499 = vst.msk [vmem:[%s2480 + $0x48] sm:$0xf] %vm1008, %v2466
        %2500 = vst.msk [vmem:[%s2480 + $0x4c] sm:$0xf] %vm1008, %v2467
        %2501 = vst.msk [vmem:[%s2480 + $0x50] sm:$0xf] %vm1008, %v2468
        %2502 = vst.msk [vmem:[%s2480 + $0x54] sm:$0xf] %vm1008, %v2469
        %2503 = vst.msk [vmem:[%s2480 + $0x58] sm:$0xf] %vm1008, %v2470
        %2504 = vst.msk [vmem:[%s2480 + $0x5c] sm:$0xf] %vm1008, %v2471
        %2505 = vst.msk [vmem:[%s2480 + $0x60] sm:$0xf] %vm1008, %v2472
        %2506 = vst.msk [vmem:[%s2480 + $0x64] sm:$0xf] %vm1008, %v2473
        %2507 = vst.msk [vmem:[%s2480 + $0x68] sm:$0xf] %vm1008, %v2474
        %2508 = vst.msk [vmem:[%s2480 + $0x6c] sm:$0xf] %vm1008, %v2475
        %2509 = vst.msk [vmem:[%s2480 + $0x70] sm:$0xf] %vm1008, %v2476
        %2510 = vst.msk [vmem:[%s2480 + $0x74] sm:$0xf] %vm1008, %v2477
        %2511 = vst.msk [vmem:[%s2480 + $0x78] sm:$0xf] %vm1008, %v2478
        %2512 = vst.msk [vmem:[%s2480 + $0x7c] sm:$0xf] %vm1008, %v2479
        %s2513 = scalar_lea.vmem %s1, 192
        %v2514 = vld [vmem:[%s2513] sm:$0xf]
        %v2515 = vld [vmem:[%s2513 + $0x4] sm:$0xf]
        %v2516 = vld [vmem:[%s2513 + $0x8] sm:$0xf]
        %v2517 = vld [vmem:[%s2513 + $0xc] sm:$0xf]
        %v2518 = vld [vmem:[%s2513 + $0x10] sm:$0xf]
        %v2519 = vld [vmem:[%s2513 + $0x14] sm:$0xf]
        %v2520 = vld [vmem:[%s2513 + $0x18] sm:$0xf]
        %v2521 = vld [vmem:[%s2513 + $0x1c] sm:$0xf]
        %v2522 = vld [vmem:[%s2513 + $0x20] sm:$0xf]
        %v2523 = vld [vmem:[%s2513 + $0x24] sm:$0xf]
        %v2524 = vld [vmem:[%s2513 + $0x28] sm:$0xf]
        %v2525 = vld [vmem:[%s2513 + $0x2c] sm:$0xf]
        %v2526 = vld [vmem:[%s2513 + $0x30] sm:$0xf]
        %v2527 = vld [vmem:[%s2513 + $0x34] sm:$0xf]
        %v2528 = vld [vmem:[%s2513 + $0x38] sm:$0xf]
        %v2529 = vld [vmem:[%s2513 + $0x3c] sm:$0xf]
        %s2530 = scalar_lea.vmem %s2, 3
        %v2531 = vld [vmem:[%s2530] sm:$0x1]
        %v2533 = vperm.slane %v2531, 0
        %v2551 = vunpack.c.l.b16 %v2514
        %v2552 = vunpack.c.l.b16 %v2515
        %v2553 = vunpack.c.l.b16 %v2516
        %v2554 = vunpack.c.l.b16 %v2517
        %v2555 = vunpack.c.l.b16 %v2518
        %v2556 = vunpack.c.l.b16 %v2519
        %v2557 = vunpack.c.l.b16 %v2520
        %v2558 = vunpack.c.l.b16 %v2521
        %v2559 = vunpack.c.l.b16 %v2522
        %v2560 = vunpack.c.l.b16 %v2523
        %v2561 = vunpack.c.l.b16 %v2524
        %v2562 = vunpack.c.l.b16 %v2525
        %v2563 = vunpack.c.l.b16 %v2526
        %v2564 = vunpack.c.l.b16 %v2527
        %v2565 = vunpack.c.l.b16 %v2528
        %v2566 = vunpack.c.l.b16 %v2529
        %v2567 = vpack.c.b16 %v2552, %v2551
        %v2568 = vpack.c.b16 %v2554, %v2553
        %v2569 = vpack.c.b16 %v2556, %v2555
        %v2570 = vpack.c.b16 %v2558, %v2557
        %v2571 = vpack.c.b16 %v2560, %v2559
        %v2572 = vpack.c.b16 %v2562, %v2561
        %v2573 = vpack.c.b16 %v2564, %v2563
        %v2574 = vpack.c.b16 %v2566, %v2565
        %2583 = vmatpush.bf16.msra.mxu0 %v2574
        %2584 = vmatpush.bf16.msra.mxu0 %v2573
        %2585 = vmatpush.bf16.msra.mxu0 %v2572
        %2586 = vmatpush.bf16.msra.mxu0 %v2571
        %2587 = vmatpush.bf16.msra.mxu0 %v2570
        %2588 = vmatpush.bf16.msra.mxu0 %v2569
        %2589 = vmatpush.bf16.msra.mxu0 %v2568
        %2590 = vmatpush.bf16.msra.mxu0 %v2567
        %2591 = vmatmul.bf16.gmra.mxu0 %v493
        %v2592 = vpop.f32.mrf.mxu0
        %v2593 = vadd.f32 %v2533, %v2592
        %v2594 = vpop.f32.mrf.mxu0
        %v2595 = vadd.f32 %v2533, %v2594
        %2596 = vmatmul.bf16.gmra.mxu0 %v494
        %v2597 = vpop.f32.mrf.mxu0
        %v2598 = vadd.f32 %v2533, %v2597
        %v2599 = vpop.f32.mrf.mxu0
        %v2600 = vadd.f32 %v2533, %v2599
        %2601 = vmatmul.bf16.gmra.mxu0 %v495
        %v2602 = vpop.f32.mrf.mxu0
        %v2603 = vadd.f32 %v2533, %v2602
        %v2604 = vpop.f32.mrf.mxu0
        %v2605 = vadd.f32 %v2533, %v2604
        %2606 = vmatmul.bf16.gmra.mxu0 %v496
        %v2607 = vpop.f32.mrf.mxu0
        %v2608 = vadd.f32 %v2533, %v2607
        %v2609 = vpop.f32.mrf.mxu0
        %v2610 = vadd.f32 %v2533, %v2609
        %2611 = vmatmul.bf16.gmra.mxu0 %v497
        %v2612 = vpop.f32.mrf.mxu0
        %v2613 = vadd.f32 %v2533, %v2612
        %v2614 = vpop.f32.mrf.mxu0
        %v2615 = vadd.f32 %v2533, %v2614
        %2616 = vmatmul.bf16.gmra.mxu0 %v498
        %v2617 = vpop.f32.mrf.mxu0
        %v2618 = vadd.f32 %v2533, %v2617
        %v2619 = vpop.f32.mrf.mxu0
        %v2620 = vadd.f32 %v2533, %v2619
        %2621 = vmatmul.bf16.gmra.mxu0 %v499
        %v2622 = vpop.f32.mrf.mxu0
        %v2623 = vadd.f32 %v2533, %v2622
        %v2624 = vpop.f32.mrf.mxu0
        %v2625 = vadd.f32 %v2533, %v2624
        %2626 = vmatmul.bf16.gmra.mxu0 %v500
        %v2627 = vpop.f32.mrf.mxu0
        %v2628 = vadd.f32 %v2533, %v2627
        %v2629 = vpop.f32.mrf.mxu0
        %v2630 = vadd.f32 %v2533, %v2629
        %2631 = vmatmul.bf16.gmra.mxu0 %v501
        %v2632 = vpop.f32.mrf.mxu0
        %v2633 = vadd.f32 %v2533, %v2632
        %v2634 = vpop.f32.mrf.mxu0
        %v2635 = vadd.f32 %v2533, %v2634
        %2636 = vmatmul.bf16.gmra.mxu0 %v502
        %v2637 = vpop.f32.mrf.mxu0
        %v2638 = vadd.f32 %v2533, %v2637
        %v2639 = vpop.f32.mrf.mxu0
        %v2640 = vadd.f32 %v2533, %v2639
        %2641 = vmatmul.bf16.gmra.mxu0 %v503
        %v2642 = vpop.f32.mrf.mxu0
        %v2643 = vadd.f32 %v2533, %v2642
        %v2644 = vpop.f32.mrf.mxu0
        %v2645 = vadd.f32 %v2533, %v2644
        %2646 = vmatmul.bf16.gmra.mxu0 %v504
        %v2647 = vpop.f32.mrf.mxu0
        %v2648 = vadd.f32 %v2533, %v2647
        %v2649 = vpop.f32.mrf.mxu0
        %v2650 = vadd.f32 %v2533, %v2649
        %2651 = vmatmul.bf16.gmra.mxu0 %v505
        %v2652 = vpop.f32.mrf.mxu0
        %v2653 = vadd.f32 %v2533, %v2652
        %v2654 = vpop.f32.mrf.mxu0
        %v2655 = vadd.f32 %v2533, %v2654
        %2656 = vmatmul.bf16.gmra.mxu0 %v506
        %v2657 = vpop.f32.mrf.mxu0
        %v2658 = vadd.f32 %v2533, %v2657
        %v2659 = vpop.f32.mrf.mxu0
        %v2660 = vadd.f32 %v2533, %v2659
        %2661 = vmatmul.bf16.gmra.mxu0 %v507
        %v2662 = vpop.f32.mrf.mxu0
        %v2663 = vadd.f32 %v2533, %v2662
        %v2664 = vpop.f32.mrf.mxu0
        %v2665 = vadd.f32 %v2533, %v2664
        %2666 = vmatmul.bf16.gmra.mxu0 %v508
        %v2667 = vpop.f32.mrf.mxu0
        %v2668 = vadd.f32 %v2533, %v2667
        %v2669 = vpop.f32.mrf.mxu0
        %v2670 = vadd.f32 %v2533, %v2669
        %2671 = vdwg.mxu0
        %s2672 = scalar_lea.vmem %s3, 192
        %v2673 = vld [vmem:[%s2672] sm:$0xf]
        %v2674 = vld [vmem:[%s2672 + $0x4] sm:$0xf]
        %v2675 = vld [vmem:[%s2672 + $0x8] sm:$0xf]
        %v2676 = vld [vmem:[%s2672 + $0xc] sm:$0xf]
        %v2677 = vld [vmem:[%s2672 + $0x10] sm:$0xf]
        %v2678 = vld [vmem:[%s2672 + $0x14] sm:$0xf]
        %v2679 = vld [vmem:[%s2672 + $0x18] sm:$0xf]
        %v2680 = vld [vmem:[%s2672 + $0x1c] sm:$0xf]
        %v2681 = vld [vmem:[%s2672 + $0x20] sm:$0xf]
        %v2682 = vld [vmem:[%s2672 + $0x24] sm:$0xf]
        %v2683 = vld [vmem:[%s2672 + $0x28] sm:$0xf]
        %v2684 = vld [vmem:[%s2672 + $0x2c] sm:$0xf]
        %v2685 = vld [vmem:[%s2672 + $0x30] sm:$0xf]
        %v2686 = vld [vmem:[%s2672 + $0x34] sm:$0xf]
        %v2687 = vld [vmem:[%s2672 + $0x38] sm:$0xf]
        %v2688 = vld [vmem:[%s2672 + $0x3c] sm:$0xf]
        %s2689 = scalar_lea.vmem %s4, 3
        %v2690 = vld [vmem:[%s2689] sm:$0x1]
        %v2692 = vperm.slane %v2690, 0
        %v2710 = vunpack.c.l.b16 %v2673
        %v2711 = vunpack.c.l.b16 %v2674
        %v2712 = vunpack.c.l.b16 %v2675
        %v2713 = vunpack.c.l.b16 %v2676
        %v2714 = vunpack.c.l.b16 %v2677
        %v2715 = vunpack.c.l.b16 %v2678
        %v2716 = vunpack.c.l.b16 %v2679
        %v2717 = vunpack.c.l.b16 %v2680
        %v2718 = vunpack.c.l.b16 %v2681
        %v2719 = vunpack.c.l.b16 %v2682
        %v2720 = vunpack.c.l.b16 %v2683
        %v2721 = vunpack.c.l.b16 %v2684
        %v2722 = vunpack.c.l.b16 %v2685
        %v2723 = vunpack.c.l.b16 %v2686
        %v2724 = vunpack.c.l.b16 %v2687
        %v2725 = vunpack.c.l.b16 %v2688
        %v2726 = vpack.c.b16 %v2711, %v2710
        %v2727 = vpack.c.b16 %v2713, %v2712
        %v2728 = vpack.c.b16 %v2715, %v2714
        %v2729 = vpack.c.b16 %v2717, %v2716
        %v2730 = vpack.c.b16 %v2719, %v2718
        %v2731 = vpack.c.b16 %v2721, %v2720
        %v2732 = vpack.c.b16 %v2723, %v2722
        %v2733 = vpack.c.b16 %v2725, %v2724
        %2742 = vmatpush.bf16.msra.mxu0 %v2733
        %2743 = vmatpush.bf16.msra.mxu0 %v2732
        %2744 = vmatpush.bf16.msra.mxu0 %v2731
        %2745 = vmatpush.bf16.msra.mxu0 %v2730
        %2746 = vmatpush.bf16.msra.mxu0 %v2729
        %2747 = vmatpush.bf16.msra.mxu0 %v2728
        %2748 = vmatpush.bf16.msra.mxu0 %v2727
        %2749 = vmatpush.bf16.msra.mxu0 %v2726
        %2750 = vmatmul.bf16.gmra.mxu0 %v493
        %v2751 = vpop.f32.mrf.mxu0
        %v2752 = vadd.f32 %v2692, %v2751
        %v2753 = vpop.f32.mrf.mxu0
        %v2754 = vadd.f32 %v2692, %v2753
        %2755 = vmatmul.bf16.gmra.mxu0 %v494
        %v2756 = vpop.f32.mrf.mxu0
        %v2757 = vadd.f32 %v2692, %v2756
        %v2758 = vpop.f32.mrf.mxu0
        %v2759 = vadd.f32 %v2692, %v2758
        %2760 = vmatmul.bf16.gmra.mxu0 %v495
        %v2761 = vpop.f32.mrf.mxu0
        %v2762 = vadd.f32 %v2692, %v2761
        %v2763 = vpop.f32.mrf.mxu0
        %v2764 = vadd.f32 %v2692, %v2763
        %2765 = vmatmul.bf16.gmra.mxu0 %v496
        %v2766 = vpop.f32.mrf.mxu0
        %v2767 = vadd.f32 %v2692, %v2766
        %v2768 = vpop.f32.mrf.mxu0
        %v2769 = vadd.f32 %v2692, %v2768
        %2770 = vmatmul.bf16.gmra.mxu0 %v497
        %v2771 = vpop.f32.mrf.mxu0
        %v2772 = vadd.f32 %v2692, %v2771
        %v2773 = vpop.f32.mrf.mxu0
        %v2774 = vadd.f32 %v2692, %v2773
        %2775 = vmatmul.bf16.gmra.mxu0 %v498
        %v2776 = vpop.f32.mrf.mxu0
        %v2777 = vadd.f32 %v2692, %v2776
        %v2778 = vpop.f32.mrf.mxu0
        %v2779 = vadd.f32 %v2692, %v2778
        %2780 = vmatmul.bf16.gmra.mxu0 %v499
        %v2781 = vpop.f32.mrf.mxu0
        %v2782 = vadd.f32 %v2692, %v2781
        %v2783 = vpop.f32.mrf.mxu0
        %v2784 = vadd.f32 %v2692, %v2783
        %2785 = vmatmul.bf16.gmra.mxu0 %v500
        %v2786 = vpop.f32.mrf.mxu0
        %v2787 = vadd.f32 %v2692, %v2786
        %v2788 = vpop.f32.mrf.mxu0
        %v2789 = vadd.f32 %v2692, %v2788
        %2790 = vmatmul.bf16.gmra.mxu0 %v501
        %v2791 = vpop.f32.mrf.mxu0
        %v2792 = vadd.f32 %v2692, %v2791
        %v2793 = vpop.f32.mrf.mxu0
        %v2794 = vadd.f32 %v2692, %v2793
        %2795 = vmatmul.bf16.gmra.mxu0 %v502
        %v2796 = vpop.f32.mrf.mxu0
        %v2797 = vadd.f32 %v2692, %v2796
        %v2798 = vpop.f32.mrf.mxu0
        %v2799 = vadd.f32 %v2692, %v2798
        %2800 = vmatmul.bf16.gmra.mxu0 %v503
        %v2801 = vpop.f32.mrf.mxu0
        %v2802 = vadd.f32 %v2692, %v2801
        %v2803 = vpop.f32.mrf.mxu0
        %v2804 = vadd.f32 %v2692, %v2803
        %2805 = vmatmul.bf16.gmra.mxu0 %v504
        %v2806 = vpop.f32.mrf.mxu0
        %v2807 = vadd.f32 %v2692, %v2806
        %v2808 = vpop.f32.mrf.mxu0
        %v2809 = vadd.f32 %v2692, %v2808
        %2810 = vmatmul.bf16.gmra.mxu0 %v505
        %v2811 = vpop.f32.mrf.mxu0
        %v2812 = vadd.f32 %v2692, %v2811
        %v2813 = vpop.f32.mrf.mxu0
        %v2814 = vadd.f32 %v2692, %v2813
        %2815 = vmatmul.bf16.gmra.mxu0 %v506
        %v2816 = vpop.f32.mrf.mxu0
        %v2817 = vadd.f32 %v2692, %v2816
        %v2818 = vpop.f32.mrf.mxu0
        %v2819 = vadd.f32 %v2692, %v2818
        %2820 = vmatmul.bf16.gmra.mxu0 %v507
        %v2821 = vpop.f32.mrf.mxu0
        %v2822 = vadd.f32 %v2692, %v2821
        %v2823 = vpop.f32.mrf.mxu0
        %v2824 = vadd.f32 %v2692, %v2823
        %2825 = vmatmul.bf16.gmra.mxu0 %v508
        %v2826 = vpop.f32.mrf.mxu0
        %v2827 = vadd.f32 %v2692, %v2826
        %v2828 = vpop.f32.mrf.mxu0
        %v2829 = vadd.f32 %v2692, %v2828
        %2830 = vdwg.mxu0
        %s2831 = scalar_lea.vmem %s5, 192
        %v2832 = vld [vmem:[%s2831] sm:$0xf]
        %v2833 = vld [vmem:[%s2831 + $0x4] sm:$0xf]
        %v2834 = vld [vmem:[%s2831 + $0x8] sm:$0xf]
        %v2835 = vld [vmem:[%s2831 + $0xc] sm:$0xf]
        %v2836 = vld [vmem:[%s2831 + $0x10] sm:$0xf]
        %v2837 = vld [vmem:[%s2831 + $0x14] sm:$0xf]
        %v2838 = vld [vmem:[%s2831 + $0x18] sm:$0xf]
        %v2839 = vld [vmem:[%s2831 + $0x1c] sm:$0xf]
        %v2840 = vld [vmem:[%s2831 + $0x20] sm:$0xf]
        %v2841 = vld [vmem:[%s2831 + $0x24] sm:$0xf]
        %v2842 = vld [vmem:[%s2831 + $0x28] sm:$0xf]
        %v2843 = vld [vmem:[%s2831 + $0x2c] sm:$0xf]
        %v2844 = vld [vmem:[%s2831 + $0x30] sm:$0xf]
        %v2845 = vld [vmem:[%s2831 + $0x34] sm:$0xf]
        %v2846 = vld [vmem:[%s2831 + $0x38] sm:$0xf]
        %v2847 = vld [vmem:[%s2831 + $0x3c] sm:$0xf]
        %s2848 = scalar_lea.vmem %s6, 3
        %v2849 = vld [vmem:[%s2848] sm:$0x1]
        %v2851 = vperm.slane %v2849, 0
        %v2869 = vunpack.c.l.b16 %v2832
        %v2870 = vunpack.c.l.b16 %v2833
        %v2871 = vunpack.c.l.b16 %v2834
        %v2872 = vunpack.c.l.b16 %v2835
        %v2873 = vunpack.c.l.b16 %v2836
        %v2874 = vunpack.c.l.b16 %v2837
        %v2875 = vunpack.c.l.b16 %v2838
        %v2876 = vunpack.c.l.b16 %v2839
        %v2877 = vunpack.c.l.b16 %v2840
        %v2878 = vunpack.c.l.b16 %v2841
        %v2879 = vunpack.c.l.b16 %v2842
        %v2880 = vunpack.c.l.b16 %v2843
        %v2881 = vunpack.c.l.b16 %v2844
        %v2882 = vunpack.c.l.b16 %v2845
        %v2883 = vunpack.c.l.b16 %v2846
        %v2884 = vunpack.c.l.b16 %v2847
        %v2885 = vpack.c.b16 %v2870, %v2869
        %v2886 = vpack.c.b16 %v2872, %v2871
        %v2887 = vpack.c.b16 %v2874, %v2873
        %v2888 = vpack.c.b16 %v2876, %v2875
        %v2889 = vpack.c.b16 %v2878, %v2877
        %v2890 = vpack.c.b16 %v2880, %v2879
        %v2891 = vpack.c.b16 %v2882, %v2881
        %v2892 = vpack.c.b16 %v2884, %v2883
        %2901 = vmatpush.bf16.msra.mxu0 %v2892
        %2902 = vmatpush.bf16.msra.mxu0 %v2891
        %2903 = vmatpush.bf16.msra.mxu0 %v2890
        %2904 = vmatpush.bf16.msra.mxu0 %v2889
        %2905 = vmatpush.bf16.msra.mxu0 %v2888
        %2906 = vmatpush.bf16.msra.mxu0 %v2887
        %2907 = vmatpush.bf16.msra.mxu0 %v2886
        %2908 = vmatpush.bf16.msra.mxu0 %v2885
        %2909 = vmatmul.bf16.gmra.mxu0 %v493
        %v2910 = vpop.f32.mrf.mxu0
        %v2911 = vadd.f32 %v2851, %v2910
        %v2912 = vpop.f32.mrf.mxu0
        %v2913 = vadd.f32 %v2851, %v2912
        %2914 = vmatmul.bf16.gmra.mxu0 %v494
        %v2915 = vpop.f32.mrf.mxu0
        %v2916 = vadd.f32 %v2851, %v2915
        %v2917 = vpop.f32.mrf.mxu0
        %v2918 = vadd.f32 %v2851, %v2917
        %2919 = vmatmul.bf16.gmra.mxu0 %v495
        %v2920 = vpop.f32.mrf.mxu0
        %v2921 = vadd.f32 %v2851, %v2920
        %v2922 = vpop.f32.mrf.mxu0
        %v2923 = vadd.f32 %v2851, %v2922
        %2924 = vmatmul.bf16.gmra.mxu0 %v496
        %v2925 = vpop.f32.mrf.mxu0
        %v2926 = vadd.f32 %v2851, %v2925
        %v2927 = vpop.f32.mrf.mxu0
        %v2928 = vadd.f32 %v2851, %v2927
        %2929 = vmatmul.bf16.gmra.mxu0 %v497
        %v2930 = vpop.f32.mrf.mxu0
        %v2931 = vadd.f32 %v2851, %v2930
        %v2932 = vpop.f32.mrf.mxu0
        %v2933 = vadd.f32 %v2851, %v2932
        %2934 = vmatmul.bf16.gmra.mxu0 %v498
        %v2935 = vpop.f32.mrf.mxu0
        %v2936 = vadd.f32 %v2851, %v2935
        %v2937 = vpop.f32.mrf.mxu0
        %v2938 = vadd.f32 %v2851, %v2937
        %2939 = vmatmul.bf16.gmra.mxu0 %v499
        %v2940 = vpop.f32.mrf.mxu0
        %v2941 = vadd.f32 %v2851, %v2940
        %v2942 = vpop.f32.mrf.mxu0
        %v2943 = vadd.f32 %v2851, %v2942
        %2944 = vmatmul.bf16.gmra.mxu0 %v500
        %v2945 = vpop.f32.mrf.mxu0
        %v2946 = vadd.f32 %v2851, %v2945
        %v2947 = vpop.f32.mrf.mxu0
        %v2948 = vadd.f32 %v2851, %v2947
        %2949 = vmatmul.bf16.gmra.mxu0 %v501
        %v2950 = vpop.f32.mrf.mxu0
        %v2951 = vadd.f32 %v2851, %v2950
        %v2952 = vpop.f32.mrf.mxu0
        %v2953 = vadd.f32 %v2851, %v2952
        %2954 = vmatmul.bf16.gmra.mxu0 %v502
        %v2955 = vpop.f32.mrf.mxu0
        %v2956 = vadd.f32 %v2851, %v2955
        %v2957 = vpop.f32.mrf.mxu0
        %v2958 = vadd.f32 %v2851, %v2957
        %2959 = vmatmul.bf16.gmra.mxu0 %v503
        %v2960 = vpop.f32.mrf.mxu0
        %v2961 = vadd.f32 %v2851, %v2960
        %v2962 = vpop.f32.mrf.mxu0
        %v2963 = vadd.f32 %v2851, %v2962
        %2964 = vmatmul.bf16.gmra.mxu0 %v504
        %v2965 = vpop.f32.mrf.mxu0
        %v2966 = vadd.f32 %v2851, %v2965
        %v2967 = vpop.f32.mrf.mxu0
        %v2968 = vadd.f32 %v2851, %v2967
        %2969 = vmatmul.bf16.gmra.mxu0 %v505
        %v2970 = vpop.f32.mrf.mxu0
        %v2971 = vadd.f32 %v2851, %v2970
        %v2972 = vpop.f32.mrf.mxu0
        %v2973 = vadd.f32 %v2851, %v2972
        %2974 = vmatmul.bf16.gmra.mxu0 %v506
        %v2975 = vpop.f32.mrf.mxu0
        %v2976 = vadd.f32 %v2851, %v2975
        %v2977 = vpop.f32.mrf.mxu0
        %v2978 = vadd.f32 %v2851, %v2977
        %2979 = vmatmul.bf16.gmra.mxu0 %v507
        %v2980 = vpop.f32.mrf.mxu0
        %v2981 = vadd.f32 %v2851, %v2980
        %v2982 = vpop.f32.mrf.mxu0
        %v2983 = vadd.f32 %v2851, %v2982
        %2984 = vmatmul.bf16.gmra.mxu0 %v508
        %v2985 = vpop.f32.mrf.mxu0
        %v2986 = vadd.f32 %v2851, %v2985
        %v2987 = vpop.f32.mrf.mxu0
        %v2988 = vadd.f32 %v2851, %v2987
        %2989 = vdwg.mxu0
        %v2990 = vpack.c.bf16 %v2593, %v2593
        %v2991 = vpack.c.bf16 %v2595, %v2595
        %v2992 = vpack.c.bf16 %v2598, %v2598
        %v2993 = vpack.c.bf16 %v2600, %v2600
        %v2994 = vpack.c.bf16 %v2603, %v2603
        %v2995 = vpack.c.bf16 %v2605, %v2605
        %v2996 = vpack.c.bf16 %v2608, %v2608
        %v2997 = vpack.c.bf16 %v2610, %v2610
        %v2998 = vpack.c.bf16 %v2613, %v2613
        %v2999 = vpack.c.bf16 %v2615, %v2615
        %v3000 = vpack.c.bf16 %v2618, %v2618
        %v3001 = vpack.c.bf16 %v2620, %v2620
        %v3002 = vpack.c.bf16 %v2623, %v2623
        %v3003 = vpack.c.bf16 %v2625, %v2625
        %v3004 = vpack.c.bf16 %v2628, %v2628
        %v3005 = vpack.c.bf16 %v2630, %v2630
        %v3006 = vpack.c.bf16 %v2633, %v2633
        %v3007 = vpack.c.bf16 %v2635, %v2635
        %v3008 = vpack.c.bf16 %v2638, %v2638
        %v3009 = vpack.c.bf16 %v2640, %v2640
        %v3010 = vpack.c.bf16 %v2643, %v2643
        %v3011 = vpack.c.bf16 %v2645, %v2645
        %v3012 = vpack.c.bf16 %v2648, %v2648
        %v3013 = vpack.c.bf16 %v2650, %v2650
        %v3014 = vpack.c.bf16 %v2653, %v2653
        %v3015 = vpack.c.bf16 %v2655, %v2655
        %v3016 = vpack.c.bf16 %v2658, %v2658
        %v3017 = vpack.c.bf16 %v2660, %v2660
        %v3018 = vpack.c.bf16 %v2663, %v2663
        %v3019 = vpack.c.bf16 %v2665, %v2665
        %v3020 = vpack.c.bf16 %v2668, %v2668
        %v3021 = vpack.c.bf16 %v2670, %v2670
        %s3022 = scalar_lea.vmem %s351, 384 [#allocation2]
        %3023 = vst.msk [vmem:[%s3022] sm:$0xf] %vm1008, %v2990
        %3024 = vst.msk [vmem:[%s3022 + $0x4] sm:$0xf] %vm1008, %v2991
        %3025 = vst.msk [vmem:[%s3022 + $0x8] sm:$0xf] %vm1008, %v2992
        %3026 = vst.msk [vmem:[%s3022 + $0xc] sm:$0xf] %vm1008, %v2993
        %3027 = vst.msk [vmem:[%s3022 + $0x10] sm:$0xf] %vm1008, %v2994
        %3028 = vst.msk [vmem:[%s3022 + $0x14] sm:$0xf] %vm1008, %v2995
        %3029 = vst.msk [vmem:[%s3022 + $0x18] sm:$0xf] %vm1008, %v2996
        %3030 = vst.msk [vmem:[%s3022 + $0x1c] sm:$0xf] %vm1008, %v2997
        %3031 = vst.msk [vmem:[%s3022 + $0x20] sm:$0xf] %vm1008, %v2998
        %3032 = vst.msk [vmem:[%s3022 + $0x24] sm:$0xf] %vm1008, %v2999
        %3033 = vst.msk [vmem:[%s3022 + $0x28] sm:$0xf] %vm1008, %v3000
        %3034 = vst.msk [vmem:[%s3022 + $0x2c] sm:$0xf] %vm1008, %v3001
        %3035 = vst.msk [vmem:[%s3022 + $0x30] sm:$0xf] %vm1008, %v3002
        %3036 = vst.msk [vmem:[%s3022 + $0x34] sm:$0xf] %vm1008, %v3003
        %3037 = vst.msk [vmem:[%s3022 + $0x38] sm:$0xf] %vm1008, %v3004
        %3038 = vst.msk [vmem:[%s3022 + $0x3c] sm:$0xf] %vm1008, %v3005
        %3039 = vst.msk [vmem:[%s3022 + $0x40] sm:$0xf] %vm1008, %v3006
        %3040 = vst.msk [vmem:[%s3022 + $0x44] sm:$0xf] %vm1008, %v3007
        %3041 = vst.msk [vmem:[%s3022 + $0x48] sm:$0xf] %vm1008, %v3008
        %3042 = vst.msk [vmem:[%s3022 + $0x4c] sm:$0xf] %vm1008, %v3009
        %3043 = vst.msk [vmem:[%s3022 + $0x50] sm:$0xf] %vm1008, %v3010
        %3044 = vst.msk [vmem:[%s3022 + $0x54] sm:$0xf] %vm1008, %v3011
        %3045 = vst.msk [vmem:[%s3022 + $0x58] sm:$0xf] %vm1008, %v3012
        %3046 = vst.msk [vmem:[%s3022 + $0x5c] sm:$0xf] %vm1008, %v3013
        %3047 = vst.msk [vmem:[%s3022 + $0x60] sm:$0xf] %vm1008, %v3014
        %3048 = vst.msk [vmem:[%s3022 + $0x64] sm:$0xf] %vm1008, %v3015
        %3049 = vst.msk [vmem:[%s3022 + $0x68] sm:$0xf] %vm1008, %v3016
        %3050 = vst.msk [vmem:[%s3022 + $0x6c] sm:$0xf] %vm1008, %v3017
        %3051 = vst.msk [vmem:[%s3022 + $0x70] sm:$0xf] %vm1008, %v3018
        %3052 = vst.msk [vmem:[%s3022 + $0x74] sm:$0xf] %vm1008, %v3019
        %3053 = vst.msk [vmem:[%s3022 + $0x78] sm:$0xf] %vm1008, %v3020
        %3054 = vst.msk [vmem:[%s3022 + $0x7c] sm:$0xf] %vm1008, %v3021
        %v3055 = vpack.c.bf16 %v2752, %v2752
        %v3056 = vpack.c.bf16 %v2754, %v2754
        %v3057 = vpack.c.bf16 %v2757, %v2757
        %v3058 = vpack.c.bf16 %v2759, %v2759
        %v3059 = vpack.c.bf16 %v2762, %v2762
        %v3060 = vpack.c.bf16 %v2764, %v2764
        %v3061 = vpack.c.bf16 %v2767, %v2767
        %v3062 = vpack.c.bf16 %v2769, %v2769
        %v3063 = vpack.c.bf16 %v2772, %v2772
        %v3064 = vpack.c.bf16 %v2774, %v2774
        %v3065 = vpack.c.bf16 %v2777, %v2777
        %v3066 = vpack.c.bf16 %v2779, %v2779
        %v3067 = vpack.c.bf16 %v2782, %v2782
        %v3068 = vpack.c.bf16 %v2784, %v2784
        %v3069 = vpack.c.bf16 %v2787, %v2787
        %v3070 = vpack.c.bf16 %v2789, %v2789
        %v3071 = vpack.c.bf16 %v2792, %v2792
        %v3072 = vpack.c.bf16 %v2794, %v2794
        %v3073 = vpack.c.bf16 %v2797, %v2797
        %v3074 = vpack.c.bf16 %v2799, %v2799
        %v3075 = vpack.c.bf16 %v2802, %v2802
        %v3076 = vpack.c.bf16 %v2804, %v2804
        %v3077 = vpack.c.bf16 %v2807, %v2807
        %v3078 = vpack.c.bf16 %v2809, %v2809
        %v3079 = vpack.c.bf16 %v2812, %v2812
        %v3080 = vpack.c.bf16 %v2814, %v2814
        %v3081 = vpack.c.bf16 %v2817, %v2817
        %v3082 = vpack.c.bf16 %v2819, %v2819
        %v3083 = vpack.c.bf16 %v2822, %v2822
        %v3084 = vpack.c.bf16 %v2824, %v2824
        %v3085 = vpack.c.bf16 %v2827, %v2827
        %v3086 = vpack.c.bf16 %v2829, %v2829
        %s3087 = scalar_lea.vmem %s357, 384 [#allocation3]
        %3088 = vst.msk [vmem:[%s3087] sm:$0xf] %vm1008, %v3055
        %3089 = vst.msk [vmem:[%s3087 + $0x4] sm:$0xf] %vm1008, %v3056
        %3090 = vst.msk [vmem:[%s3087 + $0x8] sm:$0xf] %vm1008, %v3057
        %3091 = vst.msk [vmem:[%s3087 + $0xc] sm:$0xf] %vm1008, %v3058
        %3092 = vst.msk [vmem:[%s3087 + $0x10] sm:$0xf] %vm1008, %v3059
        %3093 = vst.msk [vmem:[%s3087 + $0x14] sm:$0xf] %vm1008, %v3060
        %3094 = vst.msk [vmem:[%s3087 + $0x18] sm:$0xf] %vm1008, %v3061
        %3095 = vst.msk [vmem:[%s3087 + $0x1c] sm:$0xf] %vm1008, %v3062
        %3096 = vst.msk [vmem:[%s3087 + $0x20] sm:$0xf] %vm1008, %v3063
        %3097 = vst.msk [vmem:[%s3087 + $0x24] sm:$0xf] %vm1008, %v3064
        %3098 = vst.msk [vmem:[%s3087 + $0x28] sm:$0xf] %vm1008, %v3065
        %3099 = vst.msk [vmem:[%s3087 + $0x2c] sm:$0xf] %vm1008, %v3066
        %3100 = vst.msk [vmem:[%s3087 + $0x30] sm:$0xf] %vm1008, %v3067
        %3101 = vst.msk [vmem:[%s3087 + $0x34] sm:$0xf] %vm1008, %v3068
        %3102 = vst.msk [vmem:[%s3087 + $0x38] sm:$0xf] %vm1008, %v3069
        %3103 = vst.msk [vmem:[%s3087 + $0x3c] sm:$0xf] %vm1008, %v3070
        %3104 = vst.msk [vmem:[%s3087 + $0x40] sm:$0xf] %vm1008, %v3071
        %3105 = vst.msk [vmem:[%s3087 + $0x44] sm:$0xf] %vm1008, %v3072
        %3106 = vst.msk [vmem:[%s3087 + $0x48] sm:$0xf] %vm1008, %v3073
        %3107 = vst.msk [vmem:[%s3087 + $0x4c] sm:$0xf] %vm1008, %v3074
        %3108 = vst.msk [vmem:[%s3087 + $0x50] sm:$0xf] %vm1008, %v3075
        %3109 = vst.msk [vmem:[%s3087 + $0x54] sm:$0xf] %vm1008, %v3076
        %3110 = vst.msk [vmem:[%s3087 + $0x58] sm:$0xf] %vm1008, %v3077
        %3111 = vst.msk [vmem:[%s3087 + $0x5c] sm:$0xf] %vm1008, %v3078
        %3112 = vst.msk [vmem:[%s3087 + $0x60] sm:$0xf] %vm1008, %v3079
        %3113 = vst.msk [vmem:[%s3087 + $0x64] sm:$0xf] %vm1008, %v3080
        %3114 = vst.msk [vmem:[%s3087 + $0x68] sm:$0xf] %vm1008, %v3081
        %3115 = vst.msk [vmem:[%s3087 + $0x6c] sm:$0xf] %vm1008, %v3082
        %3116 = vst.msk [vmem:[%s3087 + $0x70] sm:$0xf] %vm1008, %v3083
        %3117 = vst.msk [vmem:[%s3087 + $0x74] sm:$0xf] %vm1008, %v3084
        %3118 = vst.msk [vmem:[%s3087 + $0x78] sm:$0xf] %vm1008, %v3085
        %3119 = vst.msk [vmem:[%s3087 + $0x7c] sm:$0xf] %vm1008, %v3086
        %v3120 = vpack.c.bf16 %v2911, %v2911
        %v3121 = vpack.c.bf16 %v2913, %v2913
        %v3122 = vpack.c.bf16 %v2916, %v2916
        %v3123 = vpack.c.bf16 %v2918, %v2918
        %v3124 = vpack.c.bf16 %v2921, %v2921
        %v3125 = vpack.c.bf16 %v2923, %v2923
        %v3126 = vpack.c.bf16 %v2926, %v2926
        %v3127 = vpack.c.bf16 %v2928, %v2928
        %v3128 = vpack.c.bf16 %v2931, %v2931
        %v3129 = vpack.c.bf16 %v2933, %v2933
        %v3130 = vpack.c.bf16 %v2936, %v2936
        %v3131 = vpack.c.bf16 %v2938, %v2938
        %v3132 = vpack.c.bf16 %v2941, %v2941
        %v3133 = vpack.c.bf16 %v2943, %v2943
        %v3134 = vpack.c.bf16 %v2946, %v2946
        %v3135 = vpack.c.bf16 %v2948, %v2948
        %v3136 = vpack.c.bf16 %v2951, %v2951
        %v3137 = vpack.c.bf16 %v2953, %v2953
        %v3138 = vpack.c.bf16 %v2956, %v2956
        %v3139 = vpack.c.bf16 %v2958, %v2958
        %v3140 = vpack.c.bf16 %v2961, %v2961
        %v3141 = vpack.c.bf16 %v2963, %v2963
        %v3142 = vpack.c.bf16 %v2966, %v2966
        %v3143 = vpack.c.bf16 %v2968, %v2968
        %v3144 = vpack.c.bf16 %v2971, %v2971
        %v3145 = vpack.c.bf16 %v2973, %v2973
        %v3146 = vpack.c.bf16 %v2976, %v2976
        %v3147 = vpack.c.bf16 %v2978, %v2978
        %v3148 = vpack.c.bf16 %v2981, %v2981
        %v3149 = vpack.c.bf16 %v2983, %v2983
        %v3150 = vpack.c.bf16 %v2986, %v2986
        %v3151 = vpack.c.bf16 %v2988, %v2988
        %s3152 = scalar_lea.vmem %s363, 384 [#allocation4]
        %3153 = vst.msk [vmem:[%s3152] sm:$0xf] %vm1008, %v3120
        %3154 = vst.msk [vmem:[%s3152 + $0x4] sm:$0xf] %vm1008, %v3121
        %3155 = vst.msk [vmem:[%s3152 + $0x8] sm:$0xf] %vm1008, %v3122
        %3156 = vst.msk [vmem:[%s3152 + $0xc] sm:$0xf] %vm1008, %v3123
        %3157 = vst.msk [vmem:[%s3152 + $0x10] sm:$0xf] %vm1008, %v3124
        %3158 = vst.msk [vmem:[%s3152 + $0x14] sm:$0xf] %vm1008, %v3125
        %3159 = vst.msk [vmem:[%s3152 + $0x18] sm:$0xf] %vm1008, %v3126
        %3160 = vst.msk [vmem:[%s3152 + $0x1c] sm:$0xf] %vm1008, %v3127
        %3161 = vst.msk [vmem:[%s3152 + $0x20] sm:$0xf] %vm1008, %v3128
        %3162 = vst.msk [vmem:[%s3152 + $0x24] sm:$0xf] %vm1008, %v3129
        %3163 = vst.msk [vmem:[%s3152 + $0x28] sm:$0xf] %vm1008, %v3130
        %3164 = vst.msk [vmem:[%s3152 + $0x2c] sm:$0xf] %vm1008, %v3131
        %3165 = vst.msk [vmem:[%s3152 + $0x30] sm:$0xf] %vm1008, %v3132
        %3166 = vst.msk [vmem:[%s3152 + $0x34] sm:$0xf] %vm1008, %v3133
        %3167 = vst.msk [vmem:[%s3152 + $0x38] sm:$0xf] %vm1008, %v3134
        %3168 = vst.msk [vmem:[%s3152 + $0x3c] sm:$0xf] %vm1008, %v3135
        %3169 = vst.msk [vmem:[%s3152 + $0x40] sm:$0xf] %vm1008, %v3136
        %3170 = vst.msk [vmem:[%s3152 + $0x44] sm:$0xf] %vm1008, %v3137
        %3171 = vst.msk [vmem:[%s3152 + $0x48] sm:$0xf] %vm1008, %v3138
        %3172 = vst.msk [vmem:[%s3152 + $0x4c] sm:$0xf] %vm1008, %v3139
        %3173 = vst.msk [vmem:[%s3152 + $0x50] sm:$0xf] %vm1008, %v3140
        %3174 = vst.msk [vmem:[%s3152 + $0x54] sm:$0xf] %vm1008, %v3141
        %3175 = vst.msk [vmem:[%s3152 + $0x58] sm:$0xf] %vm1008, %v3142
        %3176 = vst.msk [vmem:[%s3152 + $0x5c] sm:$0xf] %vm1008, %v3143
        %3177 = vst.msk [vmem:[%s3152 + $0x60] sm:$0xf] %vm1008, %v3144
        %3178 = vst.msk [vmem:[%s3152 + $0x64] sm:$0xf] %vm1008, %v3145
        %3179 = vst.msk [vmem:[%s3152 + $0x68] sm:$0xf] %vm1008, %v3146
        %3180 = vst.msk [vmem:[%s3152 + $0x6c] sm:$0xf] %vm1008, %v3147
        %3181 = vst.msk [vmem:[%s3152 + $0x70] sm:$0xf] %vm1008, %v3148
        %3182 = vst.msk [vmem:[%s3152 + $0x74] sm:$0xf] %vm1008, %v3149
        %3183 = vst.msk [vmem:[%s3152 + $0x78] sm:$0xf] %vm1008, %v3150
        %3184 = vst.msk [vmem:[%s3152 + $0x7c] sm:$0xf] %vm1008, %v3151
        %s3185 = sand.u32 %s197, 1
        %s3186 = sand.u32 %s197, 1
        %s3187 = smul.addr %s3186, 512
        %s3188 = scalar_lea.vmem [#allocation2], %s3187
        %s3189 = sand.u32 %s225, 1
        %s3190 = sand.u32 %s225, 1
        %s3191 = smul.addr %s3190, 512
        %s3192 = scalar_lea.vmem [#allocation3], %s3191
        %s3193 = sand.u32 %s253, 1
        %s3194 = sand.u32 %s253, 1
        %s3195 = smul.addr %s3194, 512
        %s3196 = scalar_lea.vmem [#allocation4], %s3195
        // Predicated region
        $region49: #{tpu_custom_call.1} parent=47 // pred_check
          %p3197 = pneg %p207
        $region50: #{tpu_custom_call.1} parent=47 // pred_check_branch
          %3199 = sbr.rel (%p3197) target = $region52
        $region51: #{tpu_custom_call.1} parent=47 // pred_region
          %s3200 = smul.u32 32, %s26
          %s3201 = smul.addr %s25, 256
          %s3202 = sadd.s32 %s3200, %s3201
          %s3203 = smul.addr %s3202, 4
          %s3204 = scalar_lea.vmem %s7, %s3203
          // Predicated region
          $region53: #{tpu_custom_call.1} parent=51 // pred_check
            _
          $region54: #{tpu_custom_call.1} parent=51 // pred_check_branch
            %3206 = sbr.rel (0) target = $region56
          $region55: #{tpu_custom_call.1} parent=51 // pred_region
            // Predicated region
            $region57: #{tpu_custom_call.1} parent=55 // pred_check
              _
            $region58: #{tpu_custom_call.1} parent=55 // pred_check_branch
              %3208 = sbr.rel target = $region60
            $region59: #{tpu_custom_call.1} parent=55 // pred_region
              // Predicated region
              $region72: #{tpu_custom_call.1} parent=59 // pred_check
                _
              $region73: #{tpu_custom_call.1} parent=59 // pred_check_branch
                %3478 = sbr.rel (0) target = $region75
              $region74: #{tpu_custom_call.1} parent=59 // pred_region
                loop: start=0, step=1, limit=1
                $region76: #{tpu_custom_call.1} parent=74 // loop_pre_header
                  _
                $region77: #{tpu_custom_call.1} parent=74 // loop_header
                  %s3480 = sphi 0, %s3484
                  %p3481 = scmp.ge.s32.totalorder %s3480, 1
                  %s3485 = sphi %s3188, %s3188
                  %s3486 = sphi %s3204, %s3204
                $region78: #{tpu_custom_call.1} parent=74 // loop_header_branch
                  %3483 = sbr.rel (%p3481) target = $region82
                $region79: #{tpu_custom_call.1} parent=74 // loop_body
                  _
                $region80: #{tpu_custom_call.1} parent=74 // loop_footer
                  %s3484 = sadd.s32 1, %s3480
                $region81: #{tpu_custom_call.1} parent=74 // loop_footer_branch
                  %3479 = sbr.rel target = $region77
                $region82: #{tpu_custom_call.1} parent=74 // loop_exit
                  _
                %s3488 = ssub.s32 16, 1
                loop: start=0, step=1, limit=1
                $region83: #{tpu_custom_call.1} parent=74 // loop_pre_header
                  _
                $region84: #{tpu_custom_call.1} parent=74 // loop_header
                  %s3490 = sphi 0, %s3494
                  %p3491 = scmp.ge.s32.totalorder %s3490, 1
                  %s3495 = sphi %s3188, %s3188
                  %s3496 = sphi %s3204, %s3204
                $region85: #{tpu_custom_call.1} parent=74 // loop_header_branch
                  %3493 = sbr.rel (%p3491) target = $region89
                $region86: #{tpu_custom_call.1} parent=74 // loop_body
                  %v3497 = vld [vmem:[%s3495] sm:%s3488]
                  %3498 = vst [vmem:[%s3496] sm:%s3488] %v3497
                  %v3499 = vld [vmem:[%s3495 + $0x4] sm:%s3488]
                  %3500 = vst [vmem:[%s3496 + $0x4] sm:%s3488] %v3499
                  %v3501 = vld [vmem:[%s3495 + $0x8] sm:%s3488]
                  %3502 = vst [vmem:[%s3496 + $0x8] sm:%s3488] %v3501
                  %v3503 = vld [vmem:[%s3495 + $0xc] sm:%s3488]
                  %3504 = vst [vmem:[%s3496 + $0xc] sm:%s3488] %v3503
                  %v3505 = vld [vmem:[%s3495 + $0x10] sm:%s3488]
                  %3506 = vst [vmem:[%s3496 + $0x10] sm:%s3488] %v3505
                  %v3507 = vld [vmem:[%s3495 + $0x14] sm:%s3488]
                  %3508 = vst [vmem:[%s3496 + $0x14] sm:%s3488] %v3507
                  %v3509 = vld [vmem:[%s3495 + $0x18] sm:%s3488]
                  %3510 = vst [vmem:[%s3496 + $0x18] sm:%s3488] %v3509
                  %v3511 = vld [vmem:[%s3495 + $0x1c] sm:%s3488]
                  %3512 = vst [vmem:[%s3496 + $0x1c] sm:%s3488] %v3511
                  %v3513 = vld [vmem:[%s3495 + $0x20] sm:%s3488]
                  %3514 = vst [vmem:[%s3496 + $0x20] sm:%s3488] %v3513
                  %v3515 = vld [vmem:[%s3495 + $0x24] sm:%s3488]
                  %3516 = vst [vmem:[%s3496 + $0x24] sm:%s3488] %v3515
                  %v3517 = vld [vmem:[%s3495 + $0x28] sm:%s3488]
                  %3518 = vst [vmem:[%s3496 + $0x28] sm:%s3488] %v3517
                  %v3519 = vld [vmem:[%s3495 + $0x2c] sm:%s3488]
                  %3520 = vst [vmem:[%s3496 + $0x2c] sm:%s3488] %v3519
                  %v3521 = vld [vmem:[%s3495 + $0x30] sm:%s3488]
                  %3522 = vst [vmem:[%s3496 + $0x30] sm:%s3488] %v3521
                  %v3523 = vld [vmem:[%s3495 + $0x34] sm:%s3488]
                  %3524 = vst [vmem:[%s3496 + $0x34] sm:%s3488] %v3523
                  %v3525 = vld [vmem:[%s3495 + $0x38] sm:%s3488]
                  %3526 = vst [vmem:[%s3496 + $0x38] sm:%s3488] %v3525
                  %v3527 = vld [vmem:[%s3495 + $0x3c] sm:%s3488]
                  %3528 = vst [vmem:[%s3496 + $0x3c] sm:%s3488] %v3527
                  %v3529 = vld [vmem:[%s3495 + $0x40] sm:%s3488]
                  %3530 = vst [vmem:[%s3496 + $0x40] sm:%s3488] %v3529
                  %v3531 = vld [vmem:[%s3495 + $0x44] sm:%s3488]
                  %3532 = vst [vmem:[%s3496 + $0x44] sm:%s3488] %v3531
                  %v3533 = vld [vmem:[%s3495 + $0x48] sm:%s3488]
                  %3534 = vst [vmem:[%s3496 + $0x48] sm:%s3488] %v3533
                  %v3535 = vld [vmem:[%s3495 + $0x4c] sm:%s3488]
                  %3536 = vst [vmem:[%s3496 + $0x4c] sm:%s3488] %v3535
                  %v3537 = vld [vmem:[%s3495 + $0x50] sm:%s3488]
                  %3538 = vst [vmem:[%s3496 + $0x50] sm:%s3488] %v3537
                  %v3539 = vld [vmem:[%s3495 + $0x54] sm:%s3488]
                  %3540 = vst [vmem:[%s3496 + $0x54] sm:%s3488] %v3539
                  %v3541 = vld [vmem:[%s3495 + $0x58] sm:%s3488]
                  %3542 = vst [vmem:[%s3496 + $0x58] sm:%s3488] %v3541
                  %v3543 = vld [vmem:[%s3495 + $0x5c] sm:%s3488]
                  %3544 = vst [vmem:[%s3496 + $0x5c] sm:%s3488] %v3543
                  %v3545 = vld [vmem:[%s3495 + $0x60] sm:%s3488]
                  %3546 = vst [vmem:[%s3496 + $0x60] sm:%s3488] %v3545
                  %v3547 = vld [vmem:[%s3495 + $0x64] sm:%s3488]
                  %3548 = vst [vmem:[%s3496 + $0x64] sm:%s3488] %v3547
                  %v3549 = vld [vmem:[%s3495 + $0x68] sm:%s3488]
                  %3550 = vst [vmem:[%s3496 + $0x68] sm:%s3488] %v3549
                  %v3551 = vld [vmem:[%s3495 + $0x6c] sm:%s3488]
                  %3552 = vst [vmem:[%s3496 + $0x6c] sm:%s3488] %v3551
                  %v3553 = vld [vmem:[%s3495 + $0x70] sm:%s3488]
                  %3554 = vst [vmem:[%s3496 + $0x70] sm:%s3488] %v3553
                  %v3555 = vld [vmem:[%s3495 + $0x74] sm:%s3488]
                  %3556 = vst [vmem:[%s3496 + $0x74] sm:%s3488] %v3555
                  %v3557 = vld [vmem:[%s3495 + $0x78] sm:%s3488]
                  %3558 = vst [vmem:[%s3496 + $0x78] sm:%s3488] %v3557
                  %v3559 = vld [vmem:[%s3495 + $0x7c] sm:%s3488]
                  %3560 = vst [vmem:[%s3496 + $0x7c] sm:%s3488] %v3559
                  %v3561 = vld [vmem:[%s3495 + $0x80] sm:%s3488]
                  %3562 = vst [vmem:[%s3496 + $0x100] sm:%s3488] %v3561
                  %v3563 = vld [vmem:[%s3495 + $0x84] sm:%s3488]
                  %3564 = vst [vmem:[%s3496 + $0x104] sm:%s3488] %v3563
                  %v3565 = vld [vmem:[%s3495 + $0x88] sm:%s3488]
                  %3566 = vst [vmem:[%s3496 + $0x108] sm:%s3488] %v3565
                  %v3567 = vld [vmem:[%s3495 + $0x8c] sm:%s3488]
                  %3568 = vst [vmem:[%s3496 + $0x10c] sm:%s3488] %v3567
                  %v3569 = vld [vmem:[%s3495 + $0x90] sm:%s3488]
                  %3570 = vst [vmem:[%s3496 + $0x110] sm:%s3488] %v3569
                  %v3571 = vld [vmem:[%s3495 + $0x94] sm:%s3488]
                  %3572 = vst [vmem:[%s3496 + $0x114] sm:%s3488] %v3571
                  %v3573 = vld [vmem:[%s3495 + $0x98] sm:%s3488]
                  %3574 = vst [vmem:[%s3496 + $0x118] sm:%s3488] %v3573
                  %v3575 = vld [vmem:[%s3495 + $0x9c] sm:%s3488]
                  %3576 = vst [vmem:[%s3496 + $0x11c] sm:%s3488] %v3575
                  %v3577 = vld [vmem:[%s3495 + $0xa0] sm:%s3488]
                  %3578 = vst [vmem:[%s3496 + $0x120] sm:%s3488] %v3577
                  %v3579 = vld [vmem:[%s3495 + $0xa4] sm:%s3488]
                  %3580 = vst [vmem:[%s3496 + $0x124] sm:%s3488] %v3579
                  %v3581 = vld [vmem:[%s3495 + $0xa8] sm:%s3488]
                  %3582 = vst [vmem:[%s3496 + $0x128] sm:%s3488] %v3581
                  %v3583 = vld [vmem:[%s3495 + $0xac] sm:%s3488]
                  %3584 = vst [vmem:[%s3496 + $0x12c] sm:%s3488] %v3583
                  %v3585 = vld [vmem:[%s3495 + $0xb0] sm:%s3488]
                  %3586 = vst [vmem:[%s3496 + $0x130] sm:%s3488] %v3585
                  %v3587 = vld [vmem:[%s3495 + $0xb4] sm:%s3488]
                  %3588 = vst [vmem:[%s3496 + $0x134] sm:%s3488] %v3587
                  %v3589 = vld [vmem:[%s3495 + $0xb8] sm:%s3488]
                  %3590 = vst [vmem:[%s3496 + $0x138] sm:%s3488] %v3589
                  %v3591 = vld [vmem:[%s3495 + $0xbc] sm:%s3488]
                  %3592 = vst [vmem:[%s3496 + $0x13c] sm:%s3488] %v3591
                  %v3593 = vld [vmem:[%s3495 + $0xc0] sm:%s3488]
                  %3594 = vst [vmem:[%s3496 + $0x140] sm:%s3488] %v3593
                  %v3595 = vld [vmem:[%s3495 + $0xc4] sm:%s3488]
                  %3596 = vst [vmem:[%s3496 + $0x144] sm:%s3488] %v3595
                  %v3597 = vld [vmem:[%s3495 + $0xc8] sm:%s3488]
                  %3598 = vst [vmem:[%s3496 + $0x148] sm:%s3488] %v3597
                  %v3599 = vld [vmem:[%s3495 + $0xcc] sm:%s3488]
                  %3600 = vst [vmem:[%s3496 + $0x14c] sm:%s3488] %v3599
                  %v3601 = vld [vmem:[%s3495 + $0xd0] sm:%s3488]
                  %3602 = vst [vmem:[%s3496 + $0x150] sm:%s3488] %v3601
                  %v3603 = vld [vmem:[%s3495 + $0xd4] sm:%s3488]
                  %3604 = vst [vmem:[%s3496 + $0x154] sm:%s3488] %v3603
                  %v3605 = vld [vmem:[%s3495 + $0xd8] sm:%s3488]
                  %3606 = vst [vmem:[%s3496 + $0x158] sm:%s3488] %v3605
                  %v3607 = vld [vmem:[%s3495 + $0xdc] sm:%s3488]
                  %3608 = vst [vmem:[%s3496 + $0x15c] sm:%s3488] %v3607
                  %v3609 = vld [vmem:[%s3495 + $0xe0] sm:%s3488]
                  %3610 = vst [vmem:[%s3496 + $0x160] sm:%s3488] %v3609
                  %v3611 = vld [vmem:[%s3495 + $0xe4] sm:%s3488]
                  %3612 = vst [vmem:[%s3496 + $0x164] sm:%s3488] %v3611
                  %v3613 = vld [vmem:[%s3495 + $0xe8] sm:%s3488]
                  %3614 = vst [vmem:[%s3496 + $0x168] sm:%s3488] %v3613
                  %v3615 = vld [vmem:[%s3495 + $0xec] sm:%s3488]
                  %3616 = vst [vmem:[%s3496 + $0x16c] sm:%s3488] %v3615
                  %v3617 = vld [vmem:[%s3495 + $0xf0] sm:%s3488]
                  %3618 = vst [vmem:[%s3496 + $0x170] sm:%s3488] %v3617
                  %v3619 = vld [vmem:[%s3495 + $0xf4] sm:%s3488]
                  %3620 = vst [vmem:[%s3496 + $0x174] sm:%s3488] %v3619
                  %v3621 = vld [vmem:[%s3495 + $0xf8] sm:%s3488]
                  %3622 = vst [vmem:[%s3496 + $0x178] sm:%s3488] %v3621
                  %v3623 = vld [vmem:[%s3495 + $0xfc] sm:%s3488]
                  %3624 = vst [vmem:[%s3496 + $0x17c] sm:%s3488] %v3623
                  %v3625 = vld [vmem:[%s3495 + $0x100] sm:%s3488]
                  %3626 = vst [vmem:[%s3496 + $0x200] sm:%s3488] %v3625
                  %v3627 = vld [vmem:[%s3495 + $0x104] sm:%s3488]
                  %3628 = vst [vmem:[%s3496 + $0x204] sm:%s3488] %v3627
                  %v3629 = vld [vmem:[%s3495 + $0x108] sm:%s3488]
                  %3630 = vst [vmem:[%s3496 + $0x208] sm:%s3488] %v3629
                  %v3631 = vld [vmem:[%s3495 + $0x10c] sm:%s3488]
                  %3632 = vst [vmem:[%s3496 + $0x20c] sm:%s3488] %v3631
                  %v3633 = vld [vmem:[%s3495 + $0x110] sm:%s3488]
                  %3634 = vst [vmem:[%s3496 + $0x210] sm:%s3488] %v3633
                  %v3635 = vld [vmem:[%s3495 + $0x114] sm:%s3488]
                  %3636 = vst [vmem:[%s3496 + $0x214] sm:%s3488] %v3635
                  %v3637 = vld [vmem:[%s3495 + $0x118] sm:%s3488]
                  %3638 = vst [vmem:[%s3496 + $0x218] sm:%s3488] %v3637
                  %v3639 = vld [vmem:[%s3495 + $0x11c] sm:%s3488]
                  %3640 = vst [vmem:[%s3496 + $0x21c] sm:%s3488] %v3639
                  %v3641 = vld [vmem:[%s3495 + $0x120] sm:%s3488]
                  %3642 = vst [vmem:[%s3496 + $0x220] sm:%s3488] %v3641
                  %v3643 = vld [vmem:[%s3495 + $0x124] sm:%s3488]
                  %3644 = vst [vmem:[%s3496 + $0x224] sm:%s3488] %v3643
                  %v3645 = vld [vmem:[%s3495 + $0x128] sm:%s3488]
                  %3646 = vst [vmem:[%s3496 + $0x228] sm:%s3488] %v3645
                  %v3647 = vld [vmem:[%s3495 + $0x12c] sm:%s3488]
                  %3648 = vst [vmem:[%s3496 + $0x22c] sm:%s3488] %v3647
                  %v3649 = vld [vmem:[%s3495 + $0x130] sm:%s3488]
                  %3650 = vst [vmem:[%s3496 + $0x230] sm:%s3488] %v3649
                  %v3651 = vld [vmem:[%s3495 + $0x134] sm:%s3488]
                  %3652 = vst [vmem:[%s3496 + $0x234] sm:%s3488] %v3651
                  %v3653 = vld [vmem:[%s3495 + $0x138] sm:%s3488]
                  %3654 = vst [vmem:[%s3496 + $0x238] sm:%s3488] %v3653
                  %v3655 = vld [vmem:[%s3495 + $0x13c] sm:%s3488]
                  %3656 = vst [vmem:[%s3496 + $0x23c] sm:%s3488] %v3655
                  %v3657 = vld [vmem:[%s3495 + $0x140] sm:%s3488]
                  %3658 = vst [vmem:[%s3496 + $0x240] sm:%s3488] %v3657
                  %v3659 = vld [vmem:[%s3495 + $0x144] sm:%s3488]
                  %3660 = vst [vmem:[%s3496 + $0x244] sm:%s3488] %v3659
                  %v3661 = vld [vmem:[%s3495 + $0x148] sm:%s3488]
                  %3662 = vst [vmem:[%s3496 + $0x248] sm:%s3488] %v3661
                  %v3663 = vld [vmem:[%s3495 + $0x14c] sm:%s3488]
                  %3664 = vst [vmem:[%s3496 + $0x24c] sm:%s3488] %v3663
                  %v3665 = vld [vmem:[%s3495 + $0x150] sm:%s3488]
                  %3666 = vst [vmem:[%s3496 + $0x250] sm:%s3488] %v3665
                  %v3667 = vld [vmem:[%s3495 + $0x154] sm:%s3488]
                  %3668 = vst [vmem:[%s3496 + $0x254] sm:%s3488] %v3667
                  %v3669 = vld [vmem:[%s3495 + $0x158] sm:%s3488]
                  %3670 = vst [vmem:[%s3496 + $0x258] sm:%s3488] %v3669
                  %v3671 = vld [vmem:[%s3495 + $0x15c] sm:%s3488]
                  %3672 = vst [vmem:[%s3496 + $0x25c] sm:%s3488] %v3671
                  %v3673 = vld [vmem:[%s3495 + $0x160] sm:%s3488]
                  %3674 = vst [vmem:[%s3496 + $0x260] sm:%s3488] %v3673
                  %v3675 = vld [vmem:[%s3495 + $0x164] sm:%s3488]
                  %3676 = vst [vmem:[%s3496 + $0x264] sm:%s3488] %v3675
                  %v3677 = vld [vmem:[%s3495 + $0x168] sm:%s3488]
                  %3678 = vst [vmem:[%s3496 + $0x268] sm:%s3488] %v3677
                  %v3679 = vld [vmem:[%s3495 + $0x16c] sm:%s3488]
                  %3680 = vst [vmem:[%s3496 + $0x26c] sm:%s3488] %v3679
                  %v3681 = vld [vmem:[%s3495 + $0x170] sm:%s3488]
                  %3682 = vst [vmem:[%s3496 + $0x270] sm:%s3488] %v3681
                  %v3683 = vld [vmem:[%s3495 + $0x174] sm:%s3488]
                  %3684 = vst [vmem:[%s3496 + $0x274] sm:%s3488] %v3683
                  %v3685 = vld [vmem:[%s3495 + $0x178] sm:%s3488]
                  %3686 = vst [vmem:[%s3496 + $0x278] sm:%s3488] %v3685
                  %v3687 = vld [vmem:[%s3495 + $0x17c] sm:%s3488]
                  %3688 = vst [vmem:[%s3496 + $0x27c] sm:%s3488] %v3687
                  %v3689 = vld [vmem:[%s3495 + $0x180] sm:%s3488]
                  %3690 = vst [vmem:[%s3496 + $0x300] sm:%s3488] %v3689
                  %v3691 = vld [vmem:[%s3495 + $0x184] sm:%s3488]
                  %3692 = vst [vmem:[%s3496 + $0x304] sm:%s3488] %v3691
                  %v3693 = vld [vmem:[%s3495 + $0x188] sm:%s3488]
                  %3694 = vst [vmem:[%s3496 + $0x308] sm:%s3488] %v3693
                  %v3695 = vld [vmem:[%s3495 + $0x18c] sm:%s3488]
                  %3696 = vst [vmem:[%s3496 + $0x30c] sm:%s3488] %v3695
                  %v3697 = vld [vmem:[%s3495 + $0x190] sm:%s3488]
                  %3698 = vst [vmem:[%s3496 + $0x310] sm:%s3488] %v3697
                  %v3699 = vld [vmem:[%s3495 + $0x194] sm:%s3488]
                  %3700 = vst [vmem:[%s3496 + $0x314] sm:%s3488] %v3699
                  %v3701 = vld [vmem:[%s3495 + $0x198] sm:%s3488]
                  %3702 = vst [vmem:[%s3496 + $0x318] sm:%s3488] %v3701
                  %v3703 = vld [vmem:[%s3495 + $0x19c] sm:%s3488]
                  %3704 = vst [vmem:[%s3496 + $0x31c] sm:%s3488] %v3703
                  %v3705 = vld [vmem:[%s3495 + $0x1a0] sm:%s3488]
                  %3706 = vst [vmem:[%s3496 + $0x320] sm:%s3488] %v3705
                  %v3707 = vld [vmem:[%s3495 + $0x1a4] sm:%s3488]
                  %3708 = vst [vmem:[%s3496 + $0x324] sm:%s3488] %v3707
                  %v3709 = vld [vmem:[%s3495 + $0x1a8] sm:%s3488]
                  %3710 = vst [vmem:[%s3496 + $0x328] sm:%s3488] %v3709
                  %v3711 = vld [vmem:[%s3495 + $0x1ac] sm:%s3488]
                  %3712 = vst [vmem:[%s3496 + $0x32c] sm:%s3488] %v3711
                  %v3713 = vld [vmem:[%s3495 + $0x1b0] sm:%s3488]
                  %3714 = vst [vmem:[%s3496 + $0x330] sm:%s3488] %v3713
                  %v3715 = vld [vmem:[%s3495 + $0x1b4] sm:%s3488]
                  %3716 = vst [vmem:[%s3496 + $0x334] sm:%s3488] %v3715
                  %v3717 = vld [vmem:[%s3495 + $0x1b8] sm:%s3488]
                  %3718 = vst [vmem:[%s3496 + $0x338] sm:%s3488] %v3717
                  %v3719 = vld [vmem:[%s3495 + $0x1bc] sm:%s3488]
                  %3720 = vst [vmem:[%s3496 + $0x33c] sm:%s3488] %v3719
                  %v3721 = vld [vmem:[%s3495 + $0x1c0] sm:%s3488]
                  %3722 = vst [vmem:[%s3496 + $0x340] sm:%s3488] %v3721
                  %v3723 = vld [vmem:[%s3495 + $0x1c4] sm:%s3488]
                  %3724 = vst [vmem:[%s3496 + $0x344] sm:%s3488] %v3723
                  %v3725 = vld [vmem:[%s3495 + $0x1c8] sm:%s3488]
                  %3726 = vst [vmem:[%s3496 + $0x348] sm:%s3488] %v3725
                  %v3727 = vld [vmem:[%s3495 + $0x1cc] sm:%s3488]
                  %3728 = vst [vmem:[%s3496 + $0x34c] sm:%s3488] %v3727
                  %v3729 = vld [vmem:[%s3495 + $0x1d0] sm:%s3488]
                  %3730 = vst [vmem:[%s3496 + $0x350] sm:%s3488] %v3729
                  %v3731 = vld [vmem:[%s3495 + $0x1d4] sm:%s3488]
                  %3732 = vst [vmem:[%s3496 + $0x354] sm:%s3488] %v3731
                  %v3733 = vld [vmem:[%s3495 + $0x1d8] sm:%s3488]
                  %3734 = vst [vmem:[%s3496 + $0x358] sm:%s3488] %v3733
                  %v3735 = vld [vmem:[%s3495 + $0x1dc] sm:%s3488]
                  %3736 = vst [vmem:[%s3496 + $0x35c] sm:%s3488] %v3735
                  %v3737 = vld [vmem:[%s3495 + $0x1e0] sm:%s3488]
                  %3738 = vst [vmem:[%s3496 + $0x360] sm:%s3488] %v3737
                  %v3739 = vld [vmem:[%s3495 + $0x1e4] sm:%s3488]
                  %3740 = vst [vmem:[%s3496 + $0x364] sm:%s3488] %v3739
                  %v3741 = vld [vmem:[%s3495 + $0x1e8] sm:%s3488]
                  %3742 = vst [vmem:[%s3496 + $0x368] sm:%s3488] %v3741
                  %v3743 = vld [vmem:[%s3495 + $0x1ec] sm:%s3488]
                  %3744 = vst [vmem:[%s3496 + $0x36c] sm:%s3488] %v3743
                  %v3745 = vld [vmem:[%s3495 + $0x1f0] sm:%s3488]
                  %3746 = vst [vmem:[%s3496 + $0x370] sm:%s3488] %v3745
                  %v3747 = vld [vmem:[%s3495 + $0x1f4] sm:%s3488]
                  %3748 = vst [vmem:[%s3496 + $0x374] sm:%s3488] %v3747
                  %v3749 = vld [vmem:[%s3495 + $0x1f8] sm:%s3488]
                  %3750 = vst [vmem:[%s3496 + $0x378] sm:%s3488] %v3749
                  %v3751 = vld [vmem:[%s3495 + $0x1fc] sm:%s3488]
                  %3752 = vst [vmem:[%s3496 + $0x37c] sm:%s3488] %v3751
                $region87: #{tpu_custom_call.1} parent=74 // loop_footer
                  %s3494 = sadd.s32 1, %s3490
                $region88: #{tpu_custom_call.1} parent=74 // loop_footer_branch
                  %3489 = sbr.rel target = $region84
                $region89: #{tpu_custom_call.1} parent=74 // loop_exit
                  _
              $region75: #{tpu_custom_call.1} parent=59 // pred_fallthru
                _
            $region60: #{tpu_custom_call.1} parent=55 // pred_fallthru
              _
            // Predicated region
            $region61: #{tpu_custom_call.1} parent=55 // pred_check
              _
            $region62: #{tpu_custom_call.1} parent=55 // pred_check_branch
              %3210 = sbr.rel (0) target = $region64
            $region63: #{tpu_custom_call.1} parent=55 // pred_region
              %s3212 = ssub.s32 16, 1
              loop: start=0, step=1, limit=1
              $region65: #{tpu_custom_call.1} parent=63 // loop_pre_header
                _
              $region66: #{tpu_custom_call.1} parent=63 // loop_header
                %s3214 = sphi 0, %s3218
                %p3215 = scmp.ge.s32.totalorder %s3214, 1
                %s3219 = sphi %s3188, %s3188
                %s3220 = sphi %s3204, %s3204
              $region67: #{tpu_custom_call.1} parent=63 // loop_header_branch
                %3217 = sbr.rel (%p3215) target = $region71
              $region68: #{tpu_custom_call.1} parent=63 // loop_body
                %v3221 = vld [vmem:[%s3219] sm:%s3212]
                %3222 = vst [vmem:[%s3220] sm:%s3212] %v3221
                %v3223 = vld [vmem:[%s3219 + $0x4] sm:%s3212]
                %3224 = vst [vmem:[%s3220 + $0x4] sm:%s3212] %v3223
                %v3225 = vld [vmem:[%s3219 + $0x8] sm:%s3212]
                %3226 = vst [vmem:[%s3220 + $0x8] sm:%s3212] %v3225
                %v3227 = vld [vmem:[%s3219 + $0xc] sm:%s3212]
                %3228 = vst [vmem:[%s3220 + $0xc] sm:%s3212] %v3227
                %v3229 = vld [vmem:[%s3219 + $0x10] sm:%s3212]
                %3230 = vst [vmem:[%s3220 + $0x10] sm:%s3212] %v3229
                %v3231 = vld [vmem:[%s3219 + $0x14] sm:%s3212]
                %3232 = vst [vmem:[%s3220 + $0x14] sm:%s3212] %v3231
                %v3233 = vld [vmem:[%s3219 + $0x18] sm:%s3212]
                %3234 = vst [vmem:[%s3220 + $0x18] sm:%s3212] %v3233
                %v3235 = vld [vmem:[%s3219 + $0x1c] sm:%s3212]
                %3236 = vst [vmem:[%s3220 + $0x1c] sm:%s3212] %v3235
                %v3237 = vld [vmem:[%s3219 + $0x20] sm:%s3212]
                %3238 = vst [vmem:[%s3220 + $0x20] sm:%s3212] %v3237
                %v3239 = vld [vmem:[%s3219 + $0x24] sm:%s3212]
                %3240 = vst [vmem:[%s3220 + $0x24] sm:%s3212] %v3239
                %v3241 = vld [vmem:[%s3219 + $0x28] sm:%s3212]
                %3242 = vst [vmem:[%s3220 + $0x28] sm:%s3212] %v3241
                %v3243 = vld [vmem:[%s3219 + $0x2c] sm:%s3212]
                %3244 = vst [vmem:[%s3220 + $0x2c] sm:%s3212] %v3243
                %v3245 = vld [vmem:[%s3219 + $0x30] sm:%s3212]
                %3246 = vst [vmem:[%s3220 + $0x30] sm:%s3212] %v3245
                %v3247 = vld [vmem:[%s3219 + $0x34] sm:%s3212]
                %3248 = vst [vmem:[%s3220 + $0x34] sm:%s3212] %v3247
                %v3249 = vld [vmem:[%s3219 + $0x38] sm:%s3212]
                %3250 = vst [vmem:[%s3220 + $0x38] sm:%s3212] %v3249
                %v3251 = vld [vmem:[%s3219 + $0x3c] sm:%s3212]
                %3252 = vst [vmem:[%s3220 + $0x3c] sm:%s3212] %v3251
                %v3253 = vld [vmem:[%s3219 + $0x40] sm:%s3212]
                %3254 = vst [vmem:[%s3220 + $0x40] sm:%s3212] %v3253
                %v3255 = vld [vmem:[%s3219 + $0x44] sm:%s3212]
                %3256 = vst [vmem:[%s3220 + $0x44] sm:%s3212] %v3255
                %v3257 = vld [vmem:[%s3219 + $0x48] sm:%s3212]
                %3258 = vst [vmem:[%s3220 + $0x48] sm:%s3212] %v3257
                %v3259 = vld [vmem:[%s3219 + $0x4c] sm:%s3212]
                %3260 = vst [vmem:[%s3220 + $0x4c] sm:%s3212] %v3259
                %v3261 = vld [vmem:[%s3219 + $0x50] sm:%s3212]
                %3262 = vst [vmem:[%s3220 + $0x50] sm:%s3212] %v3261
                %v3263 = vld [vmem:[%s3219 + $0x54] sm:%s3212]
                %3264 = vst [vmem:[%s3220 + $0x54] sm:%s3212] %v3263
                %v3265 = vld [vmem:[%s3219 + $0x58] sm:%s3212]
                %3266 = vst [vmem:[%s3220 + $0x58] sm:%s3212] %v3265
                %v3267 = vld [vmem:[%s3219 + $0x5c] sm:%s3212]
                %3268 = vst [vmem:[%s3220 + $0x5c] sm:%s3212] %v3267
                %v3269 = vld [vmem:[%s3219 + $0x60] sm:%s3212]
                %3270 = vst [vmem:[%s3220 + $0x60] sm:%s3212] %v3269
                %v3271 = vld [vmem:[%s3219 + $0x64] sm:%s3212]
                %3272 = vst [vmem:[%s3220 + $0x64] sm:%s3212] %v3271
                %v3273 = vld [vmem:[%s3219 + $0x68] sm:%s3212]
                %3274 = vst [vmem:[%s3220 + $0x68] sm:%s3212] %v3273
                %v3275 = vld [vmem:[%s3219 + $0x6c] sm:%s3212]
                %3276 = vst [vmem:[%s3220 + $0x6c] sm:%s3212] %v3275
                %v3277 = vld [vmem:[%s3219 + $0x70] sm:%s3212]
                %3278 = vst [vmem:[%s3220 + $0x70] sm:%s3212] %v3277
                %v3279 = vld [vmem:[%s3219 + $0x74] sm:%s3212]
                %3280 = vst [vmem:[%s3220 + $0x74] sm:%s3212] %v3279
                %v3281 = vld [vmem:[%s3219 + $0x78] sm:%s3212]
                %3282 = vst [vmem:[%s3220 + $0x78] sm:%s3212] %v3281
                %v3283 = vld [vmem:[%s3219 + $0x7c] sm:%s3212]
                %3284 = vst [vmem:[%s3220 + $0x7c] sm:%s3212] %v3283
                %v3285 = vld [vmem:[%s3219 + $0x80] sm:%s3212]
                %3286 = vst [vmem:[%s3220 + $0x100] sm:%s3212] %v3285
                %v3287 = vld [vmem:[%s3219 + $0x84] sm:%s3212]
                %3288 = vst [vmem:[%s3220 + $0x104] sm:%s3212] %v3287
                %v3289 = vld [vmem:[%s3219 + $0x88] sm:%s3212]
                %3290 = vst [vmem:[%s3220 + $0x108] sm:%s3212] %v3289
                %v3291 = vld [vmem:[%s3219 + $0x8c] sm:%s3212]
                %3292 = vst [vmem:[%s3220 + $0x10c] sm:%s3212] %v3291
                %v3293 = vld [vmem:[%s3219 + $0x90] sm:%s3212]
                %3294 = vst [vmem:[%s3220 + $0x110] sm:%s3212] %v3293
                %v3295 = vld [vmem:[%s3219 + $0x94] sm:%s3212]
                %3296 = vst [vmem:[%s3220 + $0x114] sm:%s3212] %v3295
                %v3297 = vld [vmem:[%s3219 + $0x98] sm:%s3212]
                %3298 = vst [vmem:[%s3220 + $0x118] sm:%s3212] %v3297
                %v3299 = vld [vmem:[%s3219 + $0x9c] sm:%s3212]
                %3300 = vst [vmem:[%s3220 + $0x11c] sm:%s3212] %v3299
                %v3301 = vld [vmem:[%s3219 + $0xa0] sm:%s3212]
                %3302 = vst [vmem:[%s3220 + $0x120] sm:%s3212] %v3301
                %v3303 = vld [vmem:[%s3219 + $0xa4] sm:%s3212]
                %3304 = vst [vmem:[%s3220 + $0x124] sm:%s3212] %v3303
                %v3305 = vld [vmem:[%s3219 + $0xa8] sm:%s3212]
                %3306 = vst [vmem:[%s3220 + $0x128] sm:%s3212] %v3305
                %v3307 = vld [vmem:[%s3219 + $0xac] sm:%s3212]
                %3308 = vst [vmem:[%s3220 + $0x12c] sm:%s3212] %v3307
                %v3309 = vld [vmem:[%s3219 + $0xb0] sm:%s3212]
                %3310 = vst [vmem:[%s3220 + $0x130] sm:%s3212] %v3309
                %v3311 = vld [vmem:[%s3219 + $0xb4] sm:%s3212]
                %3312 = vst [vmem:[%s3220 + $0x134] sm:%s3212] %v3311
                %v3313 = vld [vmem:[%s3219 + $0xb8] sm:%s3212]
                %3314 = vst [vmem:[%s3220 + $0x138] sm:%s3212] %v3313
                %v3315 = vld [vmem:[%s3219 + $0xbc] sm:%s3212]
                %3316 = vst [vmem:[%s3220 + $0x13c] sm:%s3212] %v3315
                %v3317 = vld [vmem:[%s3219 + $0xc0] sm:%s3212]
                %3318 = vst [vmem:[%s3220 + $0x140] sm:%s3212] %v3317
                %v3319 = vld [vmem:[%s3219 + $0xc4] sm:%s3212]
                %3320 = vst [vmem:[%s3220 + $0x144] sm:%s3212] %v3319
                %v3321 = vld [vmem:[%s3219 + $0xc8] sm:%s3212]
                %3322 = vst [vmem:[%s3220 + $0x148] sm:%s3212] %v3321
                %v3323 = vld [vmem:[%s3219 + $0xcc] sm:%s3212]
                %3324 = vst [vmem:[%s3220 + $0x14c] sm:%s3212] %v3323
                %v3325 = vld [vmem:[%s3219 + $0xd0] sm:%s3212]
                %3326 = vst [vmem:[%s3220 + $0x150] sm:%s3212] %v3325
                %v3327 = vld [vmem:[%s3219 + $0xd4] sm:%s3212]
                %3328 = vst [vmem:[%s3220 + $0x154] sm:%s3212] %v3327
                %v3329 = vld [vmem:[%s3219 + $0xd8] sm:%s3212]
                %3330 = vst [vmem:[%s3220 + $0x158] sm:%s3212] %v3329
                %v3331 = vld [vmem:[%s3219 + $0xdc] sm:%s3212]
                %3332 = vst [vmem:[%s3220 + $0x15c] sm:%s3212] %v3331
                %v3333 = vld [vmem:[%s3219 + $0xe0] sm:%s3212]
                %3334 = vst [vmem:[%s3220 + $0x160] sm:%s3212] %v3333
                %v3335 = vld [vmem:[%s3219 + $0xe4] sm:%s3212]
                %3336 = vst [vmem:[%s3220 + $0x164] sm:%s3212] %v3335
                %v3337 = vld [vmem:[%s3219 + $0xe8] sm:%s3212]
                %3338 = vst [vmem:[%s3220 + $0x168] sm:%s3212] %v3337
                %v3339 = vld [vmem:[%s3219 + $0xec] sm:%s3212]
                %3340 = vst [vmem:[%s3220 + $0x16c] sm:%s3212] %v3339
                %v3341 = vld [vmem:[%s3219 + $0xf0] sm:%s3212]
                %3342 = vst [vmem:[%s3220 + $0x170] sm:%s3212] %v3341
                %v3343 = vld [vmem:[%s3219 + $0xf4] sm:%s3212]
                %3344 = vst [vmem:[%s3220 + $0x174] sm:%s3212] %v3343
                %v3345 = vld [vmem:[%s3219 + $0xf8] sm:%s3212]
                %3346 = vst [vmem:[%s3220 + $0x178] sm:%s3212] %v3345
                %v3347 = vld [vmem:[%s3219 + $0xfc] sm:%s3212]
                %3348 = vst [vmem:[%s3220 + $0x17c] sm:%s3212] %v3347
                %v3349 = vld [vmem:[%s3219 + $0x100] sm:%s3212]
                %3350 = vst [vmem:[%s3220 + $0x200] sm:%s3212] %v3349
                %v3351 = vld [vmem:[%s3219 + $0x104] sm:%s3212]
                %3352 = vst [vmem:[%s3220 + $0x204] sm:%s3212] %v3351
                %v3353 = vld [vmem:[%s3219 + $0x108] sm:%s3212]
                %3354 = vst [vmem:[%s3220 + $0x208] sm:%s3212] %v3353
                %v3355 = vld [vmem:[%s3219 + $0x10c] sm:%s3212]
                %3356 = vst [vmem:[%s3220 + $0x20c] sm:%s3212] %v3355
                %v3357 = vld [vmem:[%s3219 + $0x110] sm:%s3212]
                %3358 = vst [vmem:[%s3220 + $0x210] sm:%s3212] %v3357
                %v3359 = vld [vmem:[%s3219 + $0x114] sm:%s3212]
                %3360 = vst [vmem:[%s3220 + $0x214] sm:%s3212] %v3359
                %v3361 = vld [vmem:[%s3219 + $0x118] sm:%s3212]
                %3362 = vst [vmem:[%s3220 + $0x218] sm:%s3212] %v3361
                %v3363 = vld [vmem:[%s3219 + $0x11c] sm:%s3212]
                %3364 = vst [vmem:[%s3220 + $0x21c] sm:%s3212] %v3363
                %v3365 = vld [vmem:[%s3219 + $0x120] sm:%s3212]
                %3366 = vst [vmem:[%s3220 + $0x220] sm:%s3212] %v3365
                %v3367 = vld [vmem:[%s3219 + $0x124] sm:%s3212]
                %3368 = vst [vmem:[%s3220 + $0x224] sm:%s3212] %v3367
                %v3369 = vld [vmem:[%s3219 + $0x128] sm:%s3212]
                %3370 = vst [vmem:[%s3220 + $0x228] sm:%s3212] %v3369
                %v3371 = vld [vmem:[%s3219 + $0x12c] sm:%s3212]
                %3372 = vst [vmem:[%s3220 + $0x22c] sm:%s3212] %v3371
                %v3373 = vld [vmem:[%s3219 + $0x130] sm:%s3212]
                %3374 = vst [vmem:[%s3220 + $0x230] sm:%s3212] %v3373
                %v3375 = vld [vmem:[%s3219 + $0x134] sm:%s3212]
                %3376 = vst [vmem:[%s3220 + $0x234] sm:%s3212] %v3375
                %v3377 = vld [vmem:[%s3219 + $0x138] sm:%s3212]
                %3378 = vst [vmem:[%s3220 + $0x238] sm:%s3212] %v3377
                %v3379 = vld [vmem:[%s3219 + $0x13c] sm:%s3212]
                %3380 = vst [vmem:[%s3220 + $0x23c] sm:%s3212] %v3379
                %v3381 = vld [vmem:[%s3219 + $0x140] sm:%s3212]
                %3382 = vst [vmem:[%s3220 + $0x240] sm:%s3212] %v3381
                %v3383 = vld [vmem:[%s3219 + $0x144] sm:%s3212]
                %3384 = vst [vmem:[%s3220 + $0x244] sm:%s3212] %v3383
                %v3385 = vld [vmem:[%s3219 + $0x148] sm:%s3212]
                %3386 = vst [vmem:[%s3220 + $0x248] sm:%s3212] %v3385
                %v3387 = vld [vmem:[%s3219 + $0x14c] sm:%s3212]
                %3388 = vst [vmem:[%s3220 + $0x24c] sm:%s3212] %v3387
                %v3389 = vld [vmem:[%s3219 + $0x150] sm:%s3212]
                %3390 = vst [vmem:[%s3220 + $0x250] sm:%s3212] %v3389
                %v3391 = vld [vmem:[%s3219 + $0x154] sm:%s3212]
                %3392 = vst [vmem:[%s3220 + $0x254] sm:%s3212] %v3391
                %v3393 = vld [vmem:[%s3219 + $0x158] sm:%s3212]
                %3394 = vst [vmem:[%s3220 + $0x258] sm:%s3212] %v3393
                %v3395 = vld [vmem:[%s3219 + $0x15c] sm:%s3212]
                %3396 = vst [vmem:[%s3220 + $0x25c] sm:%s3212] %v3395
                %v3397 = vld [vmem:[%s3219 + $0x160] sm:%s3212]
                %3398 = vst [vmem:[%s3220 + $0x260] sm:%s3212] %v3397
                %v3399 = vld [vmem:[%s3219 + $0x164] sm:%s3212]
                %3400 = vst [vmem:[%s3220 + $0x264] sm:%s3212] %v3399
                %v3401 = vld [vmem:[%s3219 + $0x168] sm:%s3212]
                %3402 = vst [vmem:[%s3220 + $0x268] sm:%s3212] %v3401
                %v3403 = vld [vmem:[%s3219 + $0x16c] sm:%s3212]
                %3404 = vst [vmem:[%s3220 + $0x26c] sm:%s3212] %v3403
                %v3405 = vld [vmem:[%s3219 + $0x170] sm:%s3212]
                %3406 = vst [vmem:[%s3220 + $0x270] sm:%s3212] %v3405
                %v3407 = vld [vmem:[%s3219 + $0x174] sm:%s3212]
                %3408 = vst [vmem:[%s3220 + $0x274] sm:%s3212] %v3407
                %v3409 = vld [vmem:[%s3219 + $0x178] sm:%s3212]
                %3410 = vst [vmem:[%s3220 + $0x278] sm:%s3212] %v3409
                %v3411 = vld [vmem:[%s3219 + $0x17c] sm:%s3212]
                %3412 = vst [vmem:[%s3220 + $0x27c] sm:%s3212] %v3411
                %v3413 = vld [vmem:[%s3219 + $0x180] sm:%s3212]
                %3414 = vst [vmem:[%s3220 + $0x300] sm:%s3212] %v3413
                %v3415 = vld [vmem:[%s3219 + $0x184] sm:%s3212]
                %3416 = vst [vmem:[%s3220 + $0x304] sm:%s3212] %v3415
                %v3417 = vld [vmem:[%s3219 + $0x188] sm:%s3212]
                %3418 = vst [vmem:[%s3220 + $0x308] sm:%s3212] %v3417
                %v3419 = vld [vmem:[%s3219 + $0x18c] sm:%s3212]
                %3420 = vst [vmem:[%s3220 + $0x30c] sm:%s3212] %v3419
                %v3421 = vld [vmem:[%s3219 + $0x190] sm:%s3212]
                %3422 = vst [vmem:[%s3220 + $0x310] sm:%s3212] %v3421
                %v3423 = vld [vmem:[%s3219 + $0x194] sm:%s3212]
                %3424 = vst [vmem:[%s3220 + $0x314] sm:%s3212] %v3423
                %v3425 = vld [vmem:[%s3219 + $0x198] sm:%s3212]
                %3426 = vst [vmem:[%s3220 + $0x318] sm:%s3212] %v3425
                %v3427 = vld [vmem:[%s3219 + $0x19c] sm:%s3212]
                %3428 = vst [vmem:[%s3220 + $0x31c] sm:%s3212] %v3427
                %v3429 = vld [vmem:[%s3219 + $0x1a0] sm:%s3212]
                %3430 = vst [vmem:[%s3220 + $0x320] sm:%s3212] %v3429
                %v3431 = vld [vmem:[%s3219 + $0x1a4] sm:%s3212]
                %3432 = vst [vmem:[%s3220 + $0x324] sm:%s3212] %v3431
                %v3433 = vld [vmem:[%s3219 + $0x1a8] sm:%s3212]
                %3434 = vst [vmem:[%s3220 + $0x328] sm:%s3212] %v3433
                %v3435 = vld [vmem:[%s3219 + $0x1ac] sm:%s3212]
                %3436 = vst [vmem:[%s3220 + $0x32c] sm:%s3212] %v3435
                %v3437 = vld [vmem:[%s3219 + $0x1b0] sm:%s3212]
                %3438 = vst [vmem:[%s3220 + $0x330] sm:%s3212] %v3437
                %v3439 = vld [vmem:[%s3219 + $0x1b4] sm:%s3212]
                %3440 = vst [vmem:[%s3220 + $0x334] sm:%s3212] %v3439
                %v3441 = vld [vmem:[%s3219 + $0x1b8] sm:%s3212]
                %3442 = vst [vmem:[%s3220 + $0x338] sm:%s3212] %v3441
                %v3443 = vld [vmem:[%s3219 + $0x1bc] sm:%s3212]
                %3444 = vst [vmem:[%s3220 + $0x33c] sm:%s3212] %v3443
                %v3445 = vld [vmem:[%s3219 + $0x1c0] sm:%s3212]
                %3446 = vst [vmem:[%s3220 + $0x340] sm:%s3212] %v3445
                %v3447 = vld [vmem:[%s3219 + $0x1c4] sm:%s3212]
                %3448 = vst [vmem:[%s3220 + $0x344] sm:%s3212] %v3447
                %v3449 = vld [vmem:[%s3219 + $0x1c8] sm:%s3212]
                %3450 = vst [vmem:[%s3220 + $0x348] sm:%s3212] %v3449
                %v3451 = vld [vmem:[%s3219 + $0x1cc] sm:%s3212]
                %3452 = vst [vmem:[%s3220 + $0x34c] sm:%s3212] %v3451
                %v3453 = vld [vmem:[%s3219 + $0x1d0] sm:%s3212]
                %3454 = vst [vmem:[%s3220 + $0x350] sm:%s3212] %v3453
                %v3455 = vld [vmem:[%s3219 + $0x1d4] sm:%s3212]
                %3456 = vst [vmem:[%s3220 + $0x354] sm:%s3212] %v3455
                %v3457 = vld [vmem:[%s3219 + $0x1d8] sm:%s3212]
                %3458 = vst [vmem:[%s3220 + $0x358] sm:%s3212] %v3457
                %v3459 = vld [vmem:[%s3219 + $0x1dc] sm:%s3212]
                %3460 = vst [vmem:[%s3220 + $0x35c] sm:%s3212] %v3459
                %v3461 = vld [vmem:[%s3219 + $0x1e0] sm:%s3212]
                %3462 = vst [vmem:[%s3220 + $0x360] sm:%s3212] %v3461
                %v3463 = vld [vmem:[%s3219 + $0x1e4] sm:%s3212]
                %3464 = vst [vmem:[%s3220 + $0x364] sm:%s3212] %v3463
                %v3465 = vld [vmem:[%s3219 + $0x1e8] sm:%s3212]
                %3466 = vst [vmem:[%s3220 + $0x368] sm:%s3212] %v3465
                %v3467 = vld [vmem:[%s3219 + $0x1ec] sm:%s3212]
                %3468 = vst [vmem:[%s3220 + $0x36c] sm:%s3212] %v3467
                %v3469 = vld [vmem:[%s3219 + $0x1f0] sm:%s3212]
                %3470 = vst [vmem:[%s3220 + $0x370] sm:%s3212] %v3469
                %v3471 = vld [vmem:[%s3219 + $0x1f4] sm:%s3212]
                %3472 = vst [vmem:[%s3220 + $0x374] sm:%s3212] %v3471
                %v3473 = vld [vmem:[%s3219 + $0x1f8] sm:%s3212]
                %3474 = vst [vmem:[%s3220 + $0x378] sm:%s3212] %v3473
                %v3475 = vld [vmem:[%s3219 + $0x1fc] sm:%s3212]
                %3476 = vst [vmem:[%s3220 + $0x37c] sm:%s3212] %v3475
              $region69: #{tpu_custom_call.1} parent=63 // loop_footer
                %s3218 = sadd.s32 1, %s3214
              $region70: #{tpu_custom_call.1} parent=63 // loop_footer_branch
                %3213 = sbr.rel target = $region66
              $region71: #{tpu_custom_call.1} parent=63 // loop_exit
                _
            $region64: #{tpu_custom_call.1} parent=55 // pred_fallthru
              _
          $region56: #{tpu_custom_call.1} parent=51 // pred_fallthru
            _
          %3753 = vnop
        $region52: #{tpu_custom_call.1} parent=47 // pred_fallthru
          _
        // Predicated region
        $region90: #{tpu_custom_call.1} parent=47 // pred_check
          %p3754 = pneg %p235
        $region91: #{tpu_custom_call.1} parent=47 // pred_check_branch
          %3756 = sbr.rel (%p3754) target = $region93
        $region92: #{tpu_custom_call.1} parent=47 // pred_region
          %s3757 = smul.u32 32, %s26
          %s3758 = smul.addr %s25, 256
          %s3759 = sadd.s32 %s3757, %s3758
          %s3760 = smul.addr %s3759, 4
          %s3761 = scalar_lea.vmem %s8, %s3760
          // Predicated region
          $region94: #{tpu_custom_call.1} parent=92 // pred_check
            _
          $region95: #{tpu_custom_call.1} parent=92 // pred_check_branch
            %3763 = sbr.rel (0) target = $region97
          $region96: #{tpu_custom_call.1} parent=92 // pred_region
            // Predicated region
            $region98: #{tpu_custom_call.1} parent=96 // pred_check
              _
            $region99: #{tpu_custom_call.1} parent=96 // pred_check_branch
              %3765 = sbr.rel target = $region101
            $region100: #{tpu_custom_call.1} parent=96 // pred_region
              // Predicated region
              $region113: #{tpu_custom_call.1} parent=100 // pred_check
                _
              $region114: #{tpu_custom_call.1} parent=100 // pred_check_branch
                %4035 = sbr.rel (0) target = $region116
              $region115: #{tpu_custom_call.1} parent=100 // pred_region
                loop: start=0, step=1, limit=1
                $region117: #{tpu_custom_call.1} parent=115 // loop_pre_header
                  _
                $region118: #{tpu_custom_call.1} parent=115 // loop_header
                  %s4037 = sphi 0, %s4041
                  %p4038 = scmp.ge.s32.totalorder %s4037, 1
                  %s4042 = sphi %s3192, %s3192
                  %s4043 = sphi %s3761, %s3761
                $region119: #{tpu_custom_call.1} parent=115 // loop_header_branch
                  %4040 = sbr.rel (%p4038) target = $region123
                $region120: #{tpu_custom_call.1} parent=115 // loop_body
                  _
                $region121: #{tpu_custom_call.1} parent=115 // loop_footer
                  %s4041 = sadd.s32 1, %s4037
                $region122: #{tpu_custom_call.1} parent=115 // loop_footer_branch
                  %4036 = sbr.rel target = $region118
                $region123: #{tpu_custom_call.1} parent=115 // loop_exit
                  _
                %s4045 = ssub.s32 16, 1
                loop: start=0, step=1, limit=1
                $region124: #{tpu_custom_call.1} parent=115 // loop_pre_header
                  _
                $region125: #{tpu_custom_call.1} parent=115 // loop_header
                  %s4047 = sphi 0, %s4051
                  %p4048 = scmp.ge.s32.totalorder %s4047, 1
                  %s4052 = sphi %s3192, %s3192
                  %s4053 = sphi %s3761, %s3761
                $region126: #{tpu_custom_call.1} parent=115 // loop_header_branch
                  %4050 = sbr.rel (%p4048) target = $region130
                $region127: #{tpu_custom_call.1} parent=115 // loop_body
                  %v4054 = vld [vmem:[%s4052] sm:%s4045]
                  %4055 = vst [vmem:[%s4053] sm:%s4045] %v4054
                  %v4056 = vld [vmem:[%s4052 + $0x4] sm:%s4045]
                  %4057 = vst [vmem:[%s4053 + $0x4] sm:%s4045] %v4056
                  %v4058 = vld [vmem:[%s4052 + $0x8] sm:%s4045]
                  %4059 = vst [vmem:[%s4053 + $0x8] sm:%s4045] %v4058
                  %v4060 = vld [vmem:[%s4052 + $0xc] sm:%s4045]
                  %4061 = vst [vmem:[%s4053 + $0xc] sm:%s4045] %v4060
                  %v4062 = vld [vmem:[%s4052 + $0x10] sm:%s4045]
                  %4063 = vst [vmem:[%s4053 + $0x10] sm:%s4045] %v4062
                  %v4064 = vld [vmem:[%s4052 + $0x14] sm:%s4045]
                  %4065 = vst [vmem:[%s4053 + $0x14] sm:%s4045] %v4064
                  %v4066 = vld [vmem:[%s4052 + $0x18] sm:%s4045]
                  %4067 = vst [vmem:[%s4053 + $0x18] sm:%s4045] %v4066
                  %v4068 = vld [vmem:[%s4052 + $0x1c] sm:%s4045]
                  %4069 = vst [vmem:[%s4053 + $0x1c] sm:%s4045] %v4068
                  %v4070 = vld [vmem:[%s4052 + $0x20] sm:%s4045]
                  %4071 = vst [vmem:[%s4053 + $0x20] sm:%s4045] %v4070
                  %v4072 = vld [vmem:[%s4052 + $0x24] sm:%s4045]
                  %4073 = vst [vmem:[%s4053 + $0x24] sm:%s4045] %v4072
                  %v4074 = vld [vmem:[%s4052 + $0x28] sm:%s4045]
                  %4075 = vst [vmem:[%s4053 + $0x28] sm:%s4045] %v4074
                  %v4076 = vld [vmem:[%s4052 + $0x2c] sm:%s4045]
                  %4077 = vst [vmem:[%s4053 + $0x2c] sm:%s4045] %v4076
                  %v4078 = vld [vmem:[%s4052 + $0x30] sm:%s4045]
                  %4079 = vst [vmem:[%s4053 + $0x30] sm:%s4045] %v4078
                  %v4080 = vld [vmem:[%s4052 + $0x34] sm:%s4045]
                  %4081 = vst [vmem:[%s4053 + $0x34] sm:%s4045] %v4080
                  %v4082 = vld [vmem:[%s4052 + $0x38] sm:%s4045]
                  %4083 = vst [vmem:[%s4053 + $0x38] sm:%s4045] %v4082
                  %v4084 = vld [vmem:[%s4052 + $0x3c] sm:%s4045]
                  %4085 = vst [vmem:[%s4053 + $0x3c] sm:%s4045] %v4084
                  %v4086 = vld [vmem:[%s4052 + $0x40] sm:%s4045]
                  %4087 = vst [vmem:[%s4053 + $0x40] sm:%s4045] %v4086
                  %v4088 = vld [vmem:[%s4052 + $0x44] sm:%s4045]
                  %4089 = vst [vmem:[%s4053 + $0x44] sm:%s4045] %v4088
                  %v4090 = vld [vmem:[%s4052 + $0x48] sm:%s4045]
                  %4091 = vst [vmem:[%s4053 + $0x48] sm:%s4045] %v4090
                  %v4092 = vld [vmem:[%s4052 + $0x4c] sm:%s4045]
                  %4093 = vst [vmem:[%s4053 + $0x4c] sm:%s4045] %v4092
                  %v4094 = vld [vmem:[%s4052 + $0x50] sm:%s4045]
                  %4095 = vst [vmem:[%s4053 + $0x50] sm:%s4045] %v4094
                  %v4096 = vld [vmem:[%s4052 + $0x54] sm:%s4045]
                  %4097 = vst [vmem:[%s4053 + $0x54] sm:%s4045] %v4096
                  %v4098 = vld [vmem:[%s4052 + $0x58] sm:%s4045]
                  %4099 = vst [vmem:[%s4053 + $0x58] sm:%s4045] %v4098
                  %v4100 = vld [vmem:[%s4052 + $0x5c] sm:%s4045]
                  %4101 = vst [vmem:[%s4053 + $0x5c] sm:%s4045] %v4100
                  %v4102 = vld [vmem:[%s4052 + $0x60] sm:%s4045]
                  %4103 = vst [vmem:[%s4053 + $0x60] sm:%s4045] %v4102
                  %v4104 = vld [vmem:[%s4052 + $0x64] sm:%s4045]
                  %4105 = vst [vmem:[%s4053 + $0x64] sm:%s4045] %v4104
                  %v4106 = vld [vmem:[%s4052 + $0x68] sm:%s4045]
                  %4107 = vst [vmem:[%s4053 + $0x68] sm:%s4045] %v4106
                  %v4108 = vld [vmem:[%s4052 + $0x6c] sm:%s4045]
                  %4109 = vst [vmem:[%s4053 + $0x6c] sm:%s4045] %v4108
                  %v4110 = vld [vmem:[%s4052 + $0x70] sm:%s4045]
                  %4111 = vst [vmem:[%s4053 + $0x70] sm:%s4045] %v4110
                  %v4112 = vld [vmem:[%s4052 + $0x74] sm:%s4045]
                  %4113 = vst [vmem:[%s4053 + $0x74] sm:%s4045] %v4112
                  %v4114 = vld [vmem:[%s4052 + $0x78] sm:%s4045]
                  %4115 = vst [vmem:[%s4053 + $0x78] sm:%s4045] %v4114
                  %v4116 = vld [vmem:[%s4052 + $0x7c] sm:%s4045]
                  %4117 = vst [vmem:[%s4053 + $0x7c] sm:%s4045] %v4116
                  %v4118 = vld [vmem:[%s4052 + $0x80] sm:%s4045]
                  %4119 = vst [vmem:[%s4053 + $0x100] sm:%s4045] %v4118
                  %v4120 = vld [vmem:[%s4052 + $0x84] sm:%s4045]
                  %4121 = vst [vmem:[%s4053 + $0x104] sm:%s4045] %v4120
                  %v4122 = vld [vmem:[%s4052 + $0x88] sm:%s4045]
                  %4123 = vst [vmem:[%s4053 + $0x108] sm:%s4045] %v4122
                  %v4124 = vld [vmem:[%s4052 + $0x8c] sm:%s4045]
                  %4125 = vst [vmem:[%s4053 + $0x10c] sm:%s4045] %v4124
                  %v4126 = vld [vmem:[%s4052 + $0x90] sm:%s4045]
                  %4127 = vst [vmem:[%s4053 + $0x110] sm:%s4045] %v4126
                  %v4128 = vld [vmem:[%s4052 + $0x94] sm:%s4045]
                  %4129 = vst [vmem:[%s4053 + $0x114] sm:%s4045] %v4128
                  %v4130 = vld [vmem:[%s4052 + $0x98] sm:%s4045]
                  %4131 = vst [vmem:[%s4053 + $0x118] sm:%s4045] %v4130
                  %v4132 = vld [vmem:[%s4052 + $0x9c] sm:%s4045]
                  %4133 = vst [vmem:[%s4053 + $0x11c] sm:%s4045] %v4132
                  %v4134 = vld [vmem:[%s4052 + $0xa0] sm:%s4045]
                  %4135 = vst [vmem:[%s4053 + $0x120] sm:%s4045] %v4134
                  %v4136 = vld [vmem:[%s4052 + $0xa4] sm:%s4045]
                  %4137 = vst [vmem:[%s4053 + $0x124] sm:%s4045] %v4136
                  %v4138 = vld [vmem:[%s4052 + $0xa8] sm:%s4045]
                  %4139 = vst [vmem:[%s4053 + $0x128] sm:%s4045] %v4138
                  %v4140 = vld [vmem:[%s4052 + $0xac] sm:%s4045]
                  %4141 = vst [vmem:[%s4053 + $0x12c] sm:%s4045] %v4140
                  %v4142 = vld [vmem:[%s4052 + $0xb0] sm:%s4045]
                  %4143 = vst [vmem:[%s4053 + $0x130] sm:%s4045] %v4142
                  %v4144 = vld [vmem:[%s4052 + $0xb4] sm:%s4045]
                  %4145 = vst [vmem:[%s4053 + $0x134] sm:%s4045] %v4144
                  %v4146 = vld [vmem:[%s4052 + $0xb8] sm:%s4045]
                  %4147 = vst [vmem:[%s4053 + $0x138] sm:%s4045] %v4146
                  %v4148 = vld [vmem:[%s4052 + $0xbc] sm:%s4045]
                  %4149 = vst [vmem:[%s4053 + $0x13c] sm:%s4045] %v4148
                  %v4150 = vld [vmem:[%s4052 + $0xc0] sm:%s4045]
                  %4151 = vst [vmem:[%s4053 + $0x140] sm:%s4045] %v4150
                  %v4152 = vld [vmem:[%s4052 + $0xc4] sm:%s4045]
                  %4153 = vst [vmem:[%s4053 + $0x144] sm:%s4045] %v4152
                  %v4154 = vld [vmem:[%s4052 + $0xc8] sm:%s4045]
                  %4155 = vst [vmem:[%s4053 + $0x148] sm:%s4045] %v4154
                  %v4156 = vld [vmem:[%s4052 + $0xcc] sm:%s4045]
                  %4157 = vst [vmem:[%s4053 + $0x14c] sm:%s4045] %v4156
                  %v4158 = vld [vmem:[%s4052 + $0xd0] sm:%s4045]
                  %4159 = vst [vmem:[%s4053 + $0x150] sm:%s4045] %v4158
                  %v4160 = vld [vmem:[%s4052 + $0xd4] sm:%s4045]
                  %4161 = vst [vmem:[%s4053 + $0x154] sm:%s4045] %v4160
                  %v4162 = vld [vmem:[%s4052 + $0xd8] sm:%s4045]
                  %4163 = vst [vmem:[%s4053 + $0x158] sm:%s4045] %v4162
                  %v4164 = vld [vmem:[%s4052 + $0xdc] sm:%s4045]
                  %4165 = vst [vmem:[%s4053 + $0x15c] sm:%s4045] %v4164
                  %v4166 = vld [vmem:[%s4052 + $0xe0] sm:%s4045]
                  %4167 = vst [vmem:[%s4053 + $0x160] sm:%s4045] %v4166
                  %v4168 = vld [vmem:[%s4052 + $0xe4] sm:%s4045]
                  %4169 = vst [vmem:[%s4053 + $0x164] sm:%s4045] %v4168
                  %v4170 = vld [vmem:[%s4052 + $0xe8] sm:%s4045]
                  %4171 = vst [vmem:[%s4053 + $0x168] sm:%s4045] %v4170
                  %v4172 = vld [vmem:[%s4052 + $0xec] sm:%s4045]
                  %4173 = vst [vmem:[%s4053 + $0x16c] sm:%s4045] %v4172
                  %v4174 = vld [vmem:[%s4052 + $0xf0] sm:%s4045]
                  %4175 = vst [vmem:[%s4053 + $0x170] sm:%s4045] %v4174
                  %v4176 = vld [vmem:[%s4052 + $0xf4] sm:%s4045]
                  %4177 = vst [vmem:[%s4053 + $0x174] sm:%s4045] %v4176
                  %v4178 = vld [vmem:[%s4052 + $0xf8] sm:%s4045]
                  %4179 = vst [vmem:[%s4053 + $0x178] sm:%s4045] %v4178
                  %v4180 = vld [vmem:[%s4052 + $0xfc] sm:%s4045]
                  %4181 = vst [vmem:[%s4053 + $0x17c] sm:%s4045] %v4180
                  %v4182 = vld [vmem:[%s4052 + $0x100] sm:%s4045]
                  %4183 = vst [vmem:[%s4053 + $0x200] sm:%s4045] %v4182
                  %v4184 = vld [vmem:[%s4052 + $0x104] sm:%s4045]
                  %4185 = vst [vmem:[%s4053 + $0x204] sm:%s4045] %v4184
                  %v4186 = vld [vmem:[%s4052 + $0x108] sm:%s4045]
                  %4187 = vst [vmem:[%s4053 + $0x208] sm:%s4045] %v4186
                  %v4188 = vld [vmem:[%s4052 + $0x10c] sm:%s4045]
                  %4189 = vst [vmem:[%s4053 + $0x20c] sm:%s4045] %v4188
                  %v4190 = vld [vmem:[%s4052 + $0x110] sm:%s4045]
                  %4191 = vst [vmem:[%s4053 + $0x210] sm:%s4045] %v4190
                  %v4192 = vld [vmem:[%s4052 + $0x114] sm:%s4045]
                  %4193 = vst [vmem:[%s4053 + $0x214] sm:%s4045] %v4192
                  %v4194 = vld [vmem:[%s4052 + $0x118] sm:%s4045]
                  %4195 = vst [vmem:[%s4053 + $0x218] sm:%s4045] %v4194
                  %v4196 = vld [vmem:[%s4052 + $0x11c] sm:%s4045]
                  %4197 = vst [vmem:[%s4053 + $0x21c] sm:%s4045] %v4196
                  %v4198 = vld [vmem:[%s4052 + $0x120] sm:%s4045]
                  %4199 = vst [vmem:[%s4053 + $0x220] sm:%s4045] %v4198
                  %v4200 = vld [vmem:[%s4052 + $0x124] sm:%s4045]
                  %4201 = vst [vmem:[%s4053 + $0x224] sm:%s4045] %v4200
                  %v4202 = vld [vmem:[%s4052 + $0x128] sm:%s4045]
                  %4203 = vst [vmem:[%s4053 + $0x228] sm:%s4045] %v4202
                  %v4204 = vld [vmem:[%s4052 + $0x12c] sm:%s4045]
                  %4205 = vst [vmem:[%s4053 + $0x22c] sm:%s4045] %v4204
                  %v4206 = vld [vmem:[%s4052 + $0x130] sm:%s4045]
                  %4207 = vst [vmem:[%s4053 + $0x230] sm:%s4045] %v4206
                  %v4208 = vld [vmem:[%s4052 + $0x134] sm:%s4045]
                  %4209 = vst [vmem:[%s4053 + $0x234] sm:%s4045] %v4208
                  %v4210 = vld [vmem:[%s4052 + $0x138] sm:%s4045]
                  %4211 = vst [vmem:[%s4053 + $0x238] sm:%s4045] %v4210
                  %v4212 = vld [vmem:[%s4052 + $0x13c] sm:%s4045]
                  %4213 = vst [vmem:[%s4053 + $0x23c] sm:%s4045] %v4212
                  %v4214 = vld [vmem:[%s4052 + $0x140] sm:%s4045]
                  %4215 = vst [vmem:[%s4053 + $0x240] sm:%s4045] %v4214
                  %v4216 = vld [vmem:[%s4052 + $0x144] sm:%s4045]
                  %4217 = vst [vmem:[%s4053 + $0x244] sm:%s4045] %v4216
                  %v4218 = vld [vmem:[%s4052 + $0x148] sm:%s4045]
                  %4219 = vst [vmem:[%s4053 + $0x248] sm:%s4045] %v4218
                  %v4220 = vld [vmem:[%s4052 + $0x14c] sm:%s4045]
                  %4221 = vst [vmem:[%s4053 + $0x24c] sm:%s4045] %v4220
                  %v4222 = vld [vmem:[%s4052 + $0x150] sm:%s4045]
                  %4223 = vst [vmem:[%s4053 + $0x250] sm:%s4045] %v4222
                  %v4224 = vld [vmem:[%s4052 + $0x154] sm:%s4045]
                  %4225 = vst [vmem:[%s4053 + $0x254] sm:%s4045] %v4224
                  %v4226 = vld [vmem:[%s4052 + $0x158] sm:%s4045]
                  %4227 = vst [vmem:[%s4053 + $0x258] sm:%s4045] %v4226
                  %v4228 = vld [vmem:[%s4052 + $0x15c] sm:%s4045]
                  %4229 = vst [vmem:[%s4053 + $0x25c] sm:%s4045] %v4228
                  %v4230 = vld [vmem:[%s4052 + $0x160] sm:%s4045]
                  %4231 = vst [vmem:[%s4053 + $0x260] sm:%s4045] %v4230
                  %v4232 = vld [vmem:[%s4052 + $0x164] sm:%s4045]
                  %4233 = vst [vmem:[%s4053 + $0x264] sm:%s4045] %v4232
                  %v4234 = vld [vmem:[%s4052 + $0x168] sm:%s4045]
                  %4235 = vst [vmem:[%s4053 + $0x268] sm:%s4045] %v4234
                  %v4236 = vld [vmem:[%s4052 + $0x16c] sm:%s4045]
                  %4237 = vst [vmem:[%s4053 + $0x26c] sm:%s4045] %v4236
                  %v4238 = vld [vmem:[%s4052 + $0x170] sm:%s4045]
                  %4239 = vst [vmem:[%s4053 + $0x270] sm:%s4045] %v4238
                  %v4240 = vld [vmem:[%s4052 + $0x174] sm:%s4045]
                  %4241 = vst [vmem:[%s4053 + $0x274] sm:%s4045] %v4240
                  %v4242 = vld [vmem:[%s4052 + $0x178] sm:%s4045]
                  %4243 = vst [vmem:[%s4053 + $0x278] sm:%s4045] %v4242
                  %v4244 = vld [vmem:[%s4052 + $0x17c] sm:%s4045]
                  %4245 = vst [vmem:[%s4053 + $0x27c] sm:%s4045] %v4244
                  %v4246 = vld [vmem:[%s4052 + $0x180] sm:%s4045]
                  %4247 = vst [vmem:[%s4053 + $0x300] sm:%s4045] %v4246
                  %v4248 = vld [vmem:[%s4052 + $0x184] sm:%s4045]
                  %4249 = vst [vmem:[%s4053 + $0x304] sm:%s4045] %v4248
                  %v4250 = vld [vmem:[%s4052 + $0x188] sm:%s4045]
                  %4251 = vst [vmem:[%s4053 + $0x308] sm:%s4045] %v4250
                  %v4252 = vld [vmem:[%s4052 + $0x18c] sm:%s4045]
                  %4253 = vst [vmem:[%s4053 + $0x30c] sm:%s4045] %v4252
                  %v4254 = vld [vmem:[%s4052 + $0x190] sm:%s4045]
                  %4255 = vst [vmem:[%s4053 + $0x310] sm:%s4045] %v4254
                  %v4256 = vld [vmem:[%s4052 + $0x194] sm:%s4045]
                  %4257 = vst [vmem:[%s4053 + $0x314] sm:%s4045] %v4256
                  %v4258 = vld [vmem:[%s4052 + $0x198] sm:%s4045]
                  %4259 = vst [vmem:[%s4053 + $0x318] sm:%s4045] %v4258
                  %v4260 = vld [vmem:[%s4052 + $0x19c] sm:%s4045]
                  %4261 = vst [vmem:[%s4053 + $0x31c] sm:%s4045] %v4260
                  %v4262 = vld [vmem:[%s4052 + $0x1a0] sm:%s4045]
                  %4263 = vst [vmem:[%s4053 + $0x320] sm:%s4045] %v4262
                  %v4264 = vld [vmem:[%s4052 + $0x1a4] sm:%s4045]
                  %4265 = vst [vmem:[%s4053 + $0x324] sm:%s4045] %v4264
                  %v4266 = vld [vmem:[%s4052 + $0x1a8] sm:%s4045]
                  %4267 = vst [vmem:[%s4053 + $0x328] sm:%s4045] %v4266
                  %v4268 = vld [vmem:[%s4052 + $0x1ac] sm:%s4045]
                  %4269 = vst [vmem:[%s4053 + $0x32c] sm:%s4045] %v4268
                  %v4270 = vld [vmem:[%s4052 + $0x1b0] sm:%s4045]
                  %4271 = vst [vmem:[%s4053 + $0x330] sm:%s4045] %v4270
                  %v4272 = vld [vmem:[%s4052 + $0x1b4] sm:%s4045]
                  %4273 = vst [vmem:[%s4053 + $0x334] sm:%s4045] %v4272
                  %v4274 = vld [vmem:[%s4052 + $0x1b8] sm:%s4045]
                  %4275 = vst [vmem:[%s4053 + $0x338] sm:%s4045] %v4274
                  %v4276 = vld [vmem:[%s4052 + $0x1bc] sm:%s4045]
                  %4277 = vst [vmem:[%s4053 + $0x33c] sm:%s4045] %v4276
                  %v4278 = vld [vmem:[%s4052 + $0x1c0] sm:%s4045]
                  %4279 = vst [vmem:[%s4053 + $0x340] sm:%s4045] %v4278
                  %v4280 = vld [vmem:[%s4052 + $0x1c4] sm:%s4045]
                  %4281 = vst [vmem:[%s4053 + $0x344] sm:%s4045] %v4280
                  %v4282 = vld [vmem:[%s4052 + $0x1c8] sm:%s4045]
                  %4283 = vst [vmem:[%s4053 + $0x348] sm:%s4045] %v4282
                  %v4284 = vld [vmem:[%s4052 + $0x1cc] sm:%s4045]
                  %4285 = vst [vmem:[%s4053 + $0x34c] sm:%s4045] %v4284
                  %v4286 = vld [vmem:[%s4052 + $0x1d0] sm:%s4045]
                  %4287 = vst [vmem:[%s4053 + $0x350] sm:%s4045] %v4286
                  %v4288 = vld [vmem:[%s4052 + $0x1d4] sm:%s4045]
                  %4289 = vst [vmem:[%s4053 + $0x354] sm:%s4045] %v4288
                  %v4290 = vld [vmem:[%s4052 + $0x1d8] sm:%s4045]
                  %4291 = vst [vmem:[%s4053 + $0x358] sm:%s4045] %v4290
                  %v4292 = vld [vmem:[%s4052 + $0x1dc] sm:%s4045]
                  %4293 = vst [vmem:[%s4053 + $0x35c] sm:%s4045] %v4292
                  %v4294 = vld [vmem:[%s4052 + $0x1e0] sm:%s4045]
                  %4295 = vst [vmem:[%s4053 + $0x360] sm:%s4045] %v4294
                  %v4296 = vld [vmem:[%s4052 + $0x1e4] sm:%s4045]
                  %4297 = vst [vmem:[%s4053 + $0x364] sm:%s4045] %v4296
                  %v4298 = vld [vmem:[%s4052 + $0x1e8] sm:%s4045]
                  %4299 = vst [vmem:[%s4053 + $0x368] sm:%s4045] %v4298
                  %v4300 = vld [vmem:[%s4052 + $0x1ec] sm:%s4045]
                  %4301 = vst [vmem:[%s4053 + $0x36c] sm:%s4045] %v4300
                  %v4302 = vld [vmem:[%s4052 + $0x1f0] sm:%s4045]
                  %4303 = vst [vmem:[%s4053 + $0x370] sm:%s4045] %v4302
                  %v4304 = vld [vmem:[%s4052 + $0x1f4] sm:%s4045]
                  %4305 = vst [vmem:[%s4053 + $0x374] sm:%s4045] %v4304
                  %v4306 = vld [vmem:[%s4052 + $0x1f8] sm:%s4045]
                  %4307 = vst [vmem:[%s4053 + $0x378] sm:%s4045] %v4306
                  %v4308 = vld [vmem:[%s4052 + $0x1fc] sm:%s4045]
                  %4309 = vst [vmem:[%s4053 + $0x37c] sm:%s4045] %v4308
                $region128: #{tpu_custom_call.1} parent=115 // loop_footer
                  %s4051 = sadd.s32 1, %s4047
                $region129: #{tpu_custom_call.1} parent=115 // loop_footer_branch
                  %4046 = sbr.rel target = $region125
                $region130: #{tpu_custom_call.1} parent=115 // loop_exit
                  _
              $region116: #{tpu_custom_call.1} parent=100 // pred_fallthru
                _
            $region101: #{tpu_custom_call.1} parent=96 // pred_fallthru
              _
            // Predicated region
            $region102: #{tpu_custom_call.1} parent=96 // pred_check
              _
            $region103: #{tpu_custom_call.1} parent=96 // pred_check_branch
              %3767 = sbr.rel (0) target = $region105
            $region104: #{tpu_custom_call.1} parent=96 // pred_region
              %s3769 = ssub.s32 16, 1
              loop: start=0, step=1, limit=1
              $region106: #{tpu_custom_call.1} parent=104 // loop_pre_header
                _
              $region107: #{tpu_custom_call.1} parent=104 // loop_header
                %s3771 = sphi 0, %s3775
                %p3772 = scmp.ge.s32.totalorder %s3771, 1
                %s3776 = sphi %s3192, %s3192
                %s3777 = sphi %s3761, %s3761
              $region108: #{tpu_custom_call.1} parent=104 // loop_header_branch
                %3774 = sbr.rel (%p3772) target = $region112
              $region109: #{tpu_custom_call.1} parent=104 // loop_body
                %v3778 = vld [vmem:[%s3776] sm:%s3769]
                %3779 = vst [vmem:[%s3777] sm:%s3769] %v3778
                %v3780 = vld [vmem:[%s3776 + $0x4] sm:%s3769]
                %3781 = vst [vmem:[%s3777 + $0x4] sm:%s3769] %v3780
                %v3782 = vld [vmem:[%s3776 + $0x8] sm:%s3769]
                %3783 = vst [vmem:[%s3777 + $0x8] sm:%s3769] %v3782
                %v3784 = vld [vmem:[%s3776 + $0xc] sm:%s3769]
                %3785 = vst [vmem:[%s3777 + $0xc] sm:%s3769] %v3784
                %v3786 = vld [vmem:[%s3776 + $0x10] sm:%s3769]
                %3787 = vst [vmem:[%s3777 + $0x10] sm:%s3769] %v3786
                %v3788 = vld [vmem:[%s3776 + $0x14] sm:%s3769]
                %3789 = vst [vmem:[%s3777 + $0x14] sm:%s3769] %v3788
                %v3790 = vld [vmem:[%s3776 + $0x18] sm:%s3769]
                %3791 = vst [vmem:[%s3777 + $0x18] sm:%s3769] %v3790
                %v3792 = vld [vmem:[%s3776 + $0x1c] sm:%s3769]
                %3793 = vst [vmem:[%s3777 + $0x1c] sm:%s3769] %v3792
                %v3794 = vld [vmem:[%s3776 + $0x20] sm:%s3769]
                %3795 = vst [vmem:[%s3777 + $0x20] sm:%s3769] %v3794
                %v3796 = vld [vmem:[%s3776 + $0x24] sm:%s3769]
                %3797 = vst [vmem:[%s3777 + $0x24] sm:%s3769] %v3796
                %v3798 = vld [vmem:[%s3776 + $0x28] sm:%s3769]
                %3799 = vst [vmem:[%s3777 + $0x28] sm:%s3769] %v3798
                %v3800 = vld [vmem:[%s3776 + $0x2c] sm:%s3769]
                %3801 = vst [vmem:[%s3777 + $0x2c] sm:%s3769] %v3800
                %v3802 = vld [vmem:[%s3776 + $0x30] sm:%s3769]
                %3803 = vst [vmem:[%s3777 + $0x30] sm:%s3769] %v3802
                %v3804 = vld [vmem:[%s3776 + $0x34] sm:%s3769]
                %3805 = vst [vmem:[%s3777 + $0x34] sm:%s3769] %v3804
                %v3806 = vld [vmem:[%s3776 + $0x38] sm:%s3769]
                %3807 = vst [vmem:[%s3777 + $0x38] sm:%s3769] %v3806
                %v3808 = vld [vmem:[%s3776 + $0x3c] sm:%s3769]
                %3809 = vst [vmem:[%s3777 + $0x3c] sm:%s3769] %v3808
                %v3810 = vld [vmem:[%s3776 + $0x40] sm:%s3769]
                %3811 = vst [vmem:[%s3777 + $0x40] sm:%s3769] %v3810
                %v3812 = vld [vmem:[%s3776 + $0x44] sm:%s3769]
                %3813 = vst [vmem:[%s3777 + $0x44] sm:%s3769] %v3812
                %v3814 = vld [vmem:[%s3776 + $0x48] sm:%s3769]
                %3815 = vst [vmem:[%s3777 + $0x48] sm:%s3769] %v3814
                %v3816 = vld [vmem:[%s3776 + $0x4c] sm:%s3769]
                %3817 = vst [vmem:[%s3777 + $0x4c] sm:%s3769] %v3816
                %v3818 = vld [vmem:[%s3776 + $0x50] sm:%s3769]
                %3819 = vst [vmem:[%s3777 + $0x50] sm:%s3769] %v3818
                %v3820 = vld [vmem:[%s3776 + $0x54] sm:%s3769]
                %3821 = vst [vmem:[%s3777 + $0x54] sm:%s3769] %v3820
                %v3822 = vld [vmem:[%s3776 + $0x58] sm:%s3769]
                %3823 = vst [vmem:[%s3777 + $0x58] sm:%s3769] %v3822
                %v3824 = vld [vmem:[%s3776 + $0x5c] sm:%s3769]
                %3825 = vst [vmem:[%s3777 + $0x5c] sm:%s3769] %v3824
                %v3826 = vld [vmem:[%s3776 + $0x60] sm:%s3769]
                %3827 = vst [vmem:[%s3777 + $0x60] sm:%s3769] %v3826
                %v3828 = vld [vmem:[%s3776 + $0x64] sm:%s3769]
                %3829 = vst [vmem:[%s3777 + $0x64] sm:%s3769] %v3828
                %v3830 = vld [vmem:[%s3776 + $0x68] sm:%s3769]
                %3831 = vst [vmem:[%s3777 + $0x68] sm:%s3769] %v3830
                %v3832 = vld [vmem:[%s3776 + $0x6c] sm:%s3769]
                %3833 = vst [vmem:[%s3777 + $0x6c] sm:%s3769] %v3832
                %v3834 = vld [vmem:[%s3776 + $0x70] sm:%s3769]
                %3835 = vst [vmem:[%s3777 + $0x70] sm:%s3769] %v3834
                %v3836 = vld [vmem:[%s3776 + $0x74] sm:%s3769]
                %3837 = vst [vmem:[%s3777 + $0x74] sm:%s3769] %v3836
                %v3838 = vld [vmem:[%s3776 + $0x78] sm:%s3769]
                %3839 = vst [vmem:[%s3777 + $0x78] sm:%s3769] %v3838
                %v3840 = vld [vmem:[%s3776 + $0x7c] sm:%s3769]
                %3841 = vst [vmem:[%s3777 + $0x7c] sm:%s3769] %v3840
                %v3842 = vld [vmem:[%s3776 + $0x80] sm:%s3769]
                %3843 = vst [vmem:[%s3777 + $0x100] sm:%s3769] %v3842
                %v3844 = vld [vmem:[%s3776 + $0x84] sm:%s3769]
                %3845 = vst [vmem:[%s3777 + $0x104] sm:%s3769] %v3844
                %v3846 = vld [vmem:[%s3776 + $0x88] sm:%s3769]
                %3847 = vst [vmem:[%s3777 + $0x108] sm:%s3769] %v3846
                %v3848 = vld [vmem:[%s3776 + $0x8c] sm:%s3769]
                %3849 = vst [vmem:[%s3777 + $0x10c] sm:%s3769] %v3848
                %v3850 = vld [vmem:[%s3776 + $0x90] sm:%s3769]
                %3851 = vst [vmem:[%s3777 + $0x110] sm:%s3769] %v3850
                %v3852 = vld [vmem:[%s3776 + $0x94] sm:%s3769]
                %3853 = vst [vmem:[%s3777 + $0x114] sm:%s3769] %v3852
                %v3854 = vld [vmem:[%s3776 + $0x98] sm:%s3769]
                %3855 = vst [vmem:[%s3777 + $0x118] sm:%s3769] %v3854
                %v3856 = vld [vmem:[%s3776 + $0x9c] sm:%s3769]
                %3857 = vst [vmem:[%s3777 + $0x11c] sm:%s3769] %v3856
                %v3858 = vld [vmem:[%s3776 + $0xa0] sm:%s3769]
                %3859 = vst [vmem:[%s3777 + $0x120] sm:%s3769] %v3858
                %v3860 = vld [vmem:[%s3776 + $0xa4] sm:%s3769]
                %3861 = vst [vmem:[%s3777 + $0x124] sm:%s3769] %v3860
                %v3862 = vld [vmem:[%s3776 + $0xa8] sm:%s3769]
                %3863 = vst [vmem:[%s3777 + $0x128] sm:%s3769] %v3862
                %v3864 = vld [vmem:[%s3776 + $0xac] sm:%s3769]
                %3865 = vst [vmem:[%s3777 + $0x12c] sm:%s3769] %v3864
                %v3866 = vld [vmem:[%s3776 + $0xb0] sm:%s3769]
                %3867 = vst [vmem:[%s3777 + $0x130] sm:%s3769] %v3866
                %v3868 = vld [vmem:[%s3776 + $0xb4] sm:%s3769]
                %3869 = vst [vmem:[%s3777 + $0x134] sm:%s3769] %v3868
                %v3870 = vld [vmem:[%s3776 + $0xb8] sm:%s3769]
                %3871 = vst [vmem:[%s3777 + $0x138] sm:%s3769] %v3870
                %v3872 = vld [vmem:[%s3776 + $0xbc] sm:%s3769]
                %3873 = vst [vmem:[%s3777 + $0x13c] sm:%s3769] %v3872
                %v3874 = vld [vmem:[%s3776 + $0xc0] sm:%s3769]
                %3875 = vst [vmem:[%s3777 + $0x140] sm:%s3769] %v3874
                %v3876 = vld [vmem:[%s3776 + $0xc4] sm:%s3769]
                %3877 = vst [vmem:[%s3777 + $0x144] sm:%s3769] %v3876
                %v3878 = vld [vmem:[%s3776 + $0xc8] sm:%s3769]
                %3879 = vst [vmem:[%s3777 + $0x148] sm:%s3769] %v3878
                %v3880 = vld [vmem:[%s3776 + $0xcc] sm:%s3769]
                %3881 = vst [vmem:[%s3777 + $0x14c] sm:%s3769] %v3880
                %v3882 = vld [vmem:[%s3776 + $0xd0] sm:%s3769]
                %3883 = vst [vmem:[%s3777 + $0x150] sm:%s3769] %v3882
                %v3884 = vld [vmem:[%s3776 + $0xd4] sm:%s3769]
                %3885 = vst [vmem:[%s3777 + $0x154] sm:%s3769] %v3884
                %v3886 = vld [vmem:[%s3776 + $0xd8] sm:%s3769]
                %3887 = vst [vmem:[%s3777 + $0x158] sm:%s3769] %v3886
                %v3888 = vld [vmem:[%s3776 + $0xdc] sm:%s3769]
                %3889 = vst [vmem:[%s3777 + $0x15c] sm:%s3769] %v3888
                %v3890 = vld [vmem:[%s3776 + $0xe0] sm:%s3769]
                %3891 = vst [vmem:[%s3777 + $0x160] sm:%s3769] %v3890
                %v3892 = vld [vmem:[%s3776 + $0xe4] sm:%s3769]
                %3893 = vst [vmem:[%s3777 + $0x164] sm:%s3769] %v3892
                %v3894 = vld [vmem:[%s3776 + $0xe8] sm:%s3769]
                %3895 = vst [vmem:[%s3777 + $0x168] sm:%s3769] %v3894
                %v3896 = vld [vmem:[%s3776 + $0xec] sm:%s3769]
                %3897 = vst [vmem:[%s3777 + $0x16c] sm:%s3769] %v3896
                %v3898 = vld [vmem:[%s3776 + $0xf0] sm:%s3769]
                %3899 = vst [vmem:[%s3777 + $0x170] sm:%s3769] %v3898
                %v3900 = vld [vmem:[%s3776 + $0xf4] sm:%s3769]
                %3901 = vst [vmem:[%s3777 + $0x174] sm:%s3769] %v3900
                %v3902 = vld [vmem:[%s3776 + $0xf8] sm:%s3769]
                %3903 = vst [vmem:[%s3777 + $0x178] sm:%s3769] %v3902
                %v3904 = vld [vmem:[%s3776 + $0xfc] sm:%s3769]
                %3905 = vst [vmem:[%s3777 + $0x17c] sm:%s3769] %v3904
                %v3906 = vld [vmem:[%s3776 + $0x100] sm:%s3769]
                %3907 = vst [vmem:[%s3777 + $0x200] sm:%s3769] %v3906
                %v3908 = vld [vmem:[%s3776 + $0x104] sm:%s3769]
                %3909 = vst [vmem:[%s3777 + $0x204] sm:%s3769] %v3908
                %v3910 = vld [vmem:[%s3776 + $0x108] sm:%s3769]
                %3911 = vst [vmem:[%s3777 + $0x208] sm:%s3769] %v3910
                %v3912 = vld [vmem:[%s3776 + $0x10c] sm:%s3769]
                %3913 = vst [vmem:[%s3777 + $0x20c] sm:%s3769] %v3912
                %v3914 = vld [vmem:[%s3776 + $0x110] sm:%s3769]
                %3915 = vst [vmem:[%s3777 + $0x210] sm:%s3769] %v3914
                %v3916 = vld [vmem:[%s3776 + $0x114] sm:%s3769]
                %3917 = vst [vmem:[%s3777 + $0x214] sm:%s3769] %v3916
                %v3918 = vld [vmem:[%s3776 + $0x118] sm:%s3769]
                %3919 = vst [vmem:[%s3777 + $0x218] sm:%s3769] %v3918
                %v3920 = vld [vmem:[%s3776 + $0x11c] sm:%s3769]
                %3921 = vst [vmem:[%s3777 + $0x21c] sm:%s3769] %v3920
                %v3922 = vld [vmem:[%s3776 + $0x120] sm:%s3769]
                %3923 = vst [vmem:[%s3777 + $0x220] sm:%s3769] %v3922
                %v3924 = vld [vmem:[%s3776 + $0x124] sm:%s3769]
                %3925 = vst [vmem:[%s3777 + $0x224] sm:%s3769] %v3924
                %v3926 = vld [vmem:[%s3776 + $0x128] sm:%s3769]
                %3927 = vst [vmem:[%s3777 + $0x228] sm:%s3769] %v3926
                %v3928 = vld [vmem:[%s3776 + $0x12c] sm:%s3769]
                %3929 = vst [vmem:[%s3777 + $0x22c] sm:%s3769] %v3928
                %v3930 = vld [vmem:[%s3776 + $0x130] sm:%s3769]
                %3931 = vst [vmem:[%s3777 + $0x230] sm:%s3769] %v3930
                %v3932 = vld [vmem:[%s3776 + $0x134] sm:%s3769]
                %3933 = vst [vmem:[%s3777 + $0x234] sm:%s3769] %v3932
                %v3934 = vld [vmem:[%s3776 + $0x138] sm:%s3769]
                %3935 = vst [vmem:[%s3777 + $0x238] sm:%s3769] %v3934
                %v3936 = vld [vmem:[%s3776 + $0x13c] sm:%s3769]
                %3937 = vst [vmem:[%s3777 + $0x23c] sm:%s3769] %v3936
                %v3938 = vld [vmem:[%s3776 + $0x140] sm:%s3769]
                %3939 = vst [vmem:[%s3777 + $0x240] sm:%s3769] %v3938
                %v3940 = vld [vmem:[%s3776 + $0x144] sm:%s3769]
                %3941 = vst [vmem:[%s3777 + $0x244] sm:%s3769] %v3940
                %v3942 = vld [vmem:[%s3776 + $0x148] sm:%s3769]
                %3943 = vst [vmem:[%s3777 + $0x248] sm:%s3769] %v3942
                %v3944 = vld [vmem:[%s3776 + $0x14c] sm:%s3769]
                %3945 = vst [vmem:[%s3777 + $0x24c] sm:%s3769] %v3944
                %v3946 = vld [vmem:[%s3776 + $0x150] sm:%s3769]
                %3947 = vst [vmem:[%s3777 + $0x250] sm:%s3769] %v3946
                %v3948 = vld [vmem:[%s3776 + $0x154] sm:%s3769]
                %3949 = vst [vmem:[%s3777 + $0x254] sm:%s3769] %v3948
                %v3950 = vld [vmem:[%s3776 + $0x158] sm:%s3769]
                %3951 = vst [vmem:[%s3777 + $0x258] sm:%s3769] %v3950
                %v3952 = vld [vmem:[%s3776 + $0x15c] sm:%s3769]
                %3953 = vst [vmem:[%s3777 + $0x25c] sm:%s3769] %v3952
                %v3954 = vld [vmem:[%s3776 + $0x160] sm:%s3769]
                %3955 = vst [vmem:[%s3777 + $0x260] sm:%s3769] %v3954
                %v3956 = vld [vmem:[%s3776 + $0x164] sm:%s3769]
                %3957 = vst [vmem:[%s3777 + $0x264] sm:%s3769] %v3956
                %v3958 = vld [vmem:[%s3776 + $0x168] sm:%s3769]
                %3959 = vst [vmem:[%s3777 + $0x268] sm:%s3769] %v3958
                %v3960 = vld [vmem:[%s3776 + $0x16c] sm:%s3769]
                %3961 = vst [vmem:[%s3777 + $0x26c] sm:%s3769] %v3960
                %v3962 = vld [vmem:[%s3776 + $0x170] sm:%s3769]
                %3963 = vst [vmem:[%s3777 + $0x270] sm:%s3769] %v3962
                %v3964 = vld [vmem:[%s3776 + $0x174] sm:%s3769]
                %3965 = vst [vmem:[%s3777 + $0x274] sm:%s3769] %v3964
                %v3966 = vld [vmem:[%s3776 + $0x178] sm:%s3769]
                %3967 = vst [vmem:[%s3777 + $0x278] sm:%s3769] %v3966
                %v3968 = vld [vmem:[%s3776 + $0x17c] sm:%s3769]
                %3969 = vst [vmem:[%s3777 + $0x27c] sm:%s3769] %v3968
                %v3970 = vld [vmem:[%s3776 + $0x180] sm:%s3769]
                %3971 = vst [vmem:[%s3777 + $0x300] sm:%s3769] %v3970
                %v3972 = vld [vmem:[%s3776 + $0x184] sm:%s3769]
                %3973 = vst [vmem:[%s3777 + $0x304] sm:%s3769] %v3972
                %v3974 = vld [vmem:[%s3776 + $0x188] sm:%s3769]
                %3975 = vst [vmem:[%s3777 + $0x308] sm:%s3769] %v3974
                %v3976 = vld [vmem:[%s3776 + $0x18c] sm:%s3769]
                %3977 = vst [vmem:[%s3777 + $0x30c] sm:%s3769] %v3976
                %v3978 = vld [vmem:[%s3776 + $0x190] sm:%s3769]
                %3979 = vst [vmem:[%s3777 + $0x310] sm:%s3769] %v3978
                %v3980 = vld [vmem:[%s3776 + $0x194] sm:%s3769]
                %3981 = vst [vmem:[%s3777 + $0x314] sm:%s3769] %v3980
                %v3982 = vld [vmem:[%s3776 + $0x198] sm:%s3769]
                %3983 = vst [vmem:[%s3777 + $0x318] sm:%s3769] %v3982
                %v3984 = vld [vmem:[%s3776 + $0x19c] sm:%s3769]
                %3985 = vst [vmem:[%s3777 + $0x31c] sm:%s3769] %v3984
                %v3986 = vld [vmem:[%s3776 + $0x1a0] sm:%s3769]
                %3987 = vst [vmem:[%s3777 + $0x320] sm:%s3769] %v3986
                %v3988 = vld [vmem:[%s3776 + $0x1a4] sm:%s3769]
                %3989 = vst [vmem:[%s3777 + $0x324] sm:%s3769] %v3988
                %v3990 = vld [vmem:[%s3776 + $0x1a8] sm:%s3769]
                %3991 = vst [vmem:[%s3777 + $0x328] sm:%s3769] %v3990
                %v3992 = vld [vmem:[%s3776 + $0x1ac] sm:%s3769]
                %3993 = vst [vmem:[%s3777 + $0x32c] sm:%s3769] %v3992
                %v3994 = vld [vmem:[%s3776 + $0x1b0] sm:%s3769]
                %3995 = vst [vmem:[%s3777 + $0x330] sm:%s3769] %v3994
                %v3996 = vld [vmem:[%s3776 + $0x1b4] sm:%s3769]
                %3997 = vst [vmem:[%s3777 + $0x334] sm:%s3769] %v3996
                %v3998 = vld [vmem:[%s3776 + $0x1b8] sm:%s3769]
                %3999 = vst [vmem:[%s3777 + $0x338] sm:%s3769] %v3998
                %v4000 = vld [vmem:[%s3776 + $0x1bc] sm:%s3769]
                %4001 = vst [vmem:[%s3777 + $0x33c] sm:%s3769] %v4000
                %v4002 = vld [vmem:[%s3776 + $0x1c0] sm:%s3769]
                %4003 = vst [vmem:[%s3777 + $0x340] sm:%s3769] %v4002
                %v4004 = vld [vmem:[%s3776 + $0x1c4] sm:%s3769]
                %4005 = vst [vmem:[%s3777 + $0x344] sm:%s3769] %v4004
                %v4006 = vld [vmem:[%s3776 + $0x1c8] sm:%s3769]
                %4007 = vst [vmem:[%s3777 + $0x348] sm:%s3769] %v4006
                %v4008 = vld [vmem:[%s3776 + $0x1cc] sm:%s3769]
                %4009 = vst [vmem:[%s3777 + $0x34c] sm:%s3769] %v4008
                %v4010 = vld [vmem:[%s3776 + $0x1d0] sm:%s3769]
                %4011 = vst [vmem:[%s3777 + $0x350] sm:%s3769] %v4010
                %v4012 = vld [vmem:[%s3776 + $0x1d4] sm:%s3769]
                %4013 = vst [vmem:[%s3777 + $0x354] sm:%s3769] %v4012
                %v4014 = vld [vmem:[%s3776 + $0x1d8] sm:%s3769]
                %4015 = vst [vmem:[%s3777 + $0x358] sm:%s3769] %v4014
                %v4016 = vld [vmem:[%s3776 + $0x1dc] sm:%s3769]
                %4017 = vst [vmem:[%s3777 + $0x35c] sm:%s3769] %v4016
                %v4018 = vld [vmem:[%s3776 + $0x1e0] sm:%s3769]
                %4019 = vst [vmem:[%s3777 + $0x360] sm:%s3769] %v4018
                %v4020 = vld [vmem:[%s3776 + $0x1e4] sm:%s3769]
                %4021 = vst [vmem:[%s3777 + $0x364] sm:%s3769] %v4020
                %v4022 = vld [vmem:[%s3776 + $0x1e8] sm:%s3769]
                %4023 = vst [vmem:[%s3777 + $0x368] sm:%s3769] %v4022
                %v4024 = vld [vmem:[%s3776 + $0x1ec] sm:%s3769]
                %4025 = vst [vmem:[%s3777 + $0x36c] sm:%s3769] %v4024
                %v4026 = vld [vmem:[%s3776 + $0x1f0] sm:%s3769]
                %4027 = vst [vmem:[%s3777 + $0x370] sm:%s3769] %v4026
                %v4028 = vld [vmem:[%s3776 + $0x1f4] sm:%s3769]
                %4029 = vst [vmem:[%s3777 + $0x374] sm:%s3769] %v4028
                %v4030 = vld [vmem:[%s3776 + $0x1f8] sm:%s3769]
                %4031 = vst [vmem:[%s3777 + $0x378] sm:%s3769] %v4030
                %v4032 = vld [vmem:[%s3776 + $0x1fc] sm:%s3769]
                %4033 = vst [vmem:[%s3777 + $0x37c] sm:%s3769] %v4032
              $region110: #{tpu_custom_call.1} parent=104 // loop_footer
                %s3775 = sadd.s32 1, %s3771
              $region111: #{tpu_custom_call.1} parent=104 // loop_footer_branch
                %3770 = sbr.rel target = $region107
              $region112: #{tpu_custom_call.1} parent=104 // loop_exit
                _
            $region105: #{tpu_custom_call.1} parent=96 // pred_fallthru
              _
          $region97: #{tpu_custom_call.1} parent=92 // pred_fallthru
            _
          %4310 = vnop
        $region93: #{tpu_custom_call.1} parent=47 // pred_fallthru
          _
        // Predicated region
        $region131: #{tpu_custom_call.1} parent=47 // pred_check
          %p4311 = pneg %p263
        $region132: #{tpu_custom_call.1} parent=47 // pred_check_branch
          %4313 = sbr.rel (%p4311) target = $region134
        $region133: #{tpu_custom_call.1} parent=47 // pred_region
          %s4314 = smul.u32 32, %s26
          %s4315 = smul.addr %s25, 256
          %s4316 = sadd.s32 %s4314, %s4315
          %s4317 = smul.addr %s4316, 4
          %s4318 = scalar_lea.vmem %s9, %s4317
          // Predicated region
          $region135: #{tpu_custom_call.1} parent=133 // pred_check
            _
          $region136: #{tpu_custom_call.1} parent=133 // pred_check_branch
            %4320 = sbr.rel (0) target = $region138
          $region137: #{tpu_custom_call.1} parent=133 // pred_region
            // Predicated region
            $region139: #{tpu_custom_call.1} parent=137 // pred_check
              _
            $region140: #{tpu_custom_call.1} parent=137 // pred_check_branch
              %4322 = sbr.rel target = $region142
            $region141: #{tpu_custom_call.1} parent=137 // pred_region
              // Predicated region
              $region154: #{tpu_custom_call.1} parent=141 // pred_check
                _
              $region155: #{tpu_custom_call.1} parent=141 // pred_check_branch
                %4592 = sbr.rel (0) target = $region157
              $region156: #{tpu_custom_call.1} parent=141 // pred_region
                loop: start=0, step=1, limit=1
                $region158: #{tpu_custom_call.1} parent=156 // loop_pre_header
                  _
                $region159: #{tpu_custom_call.1} parent=156 // loop_header
                  %s4594 = sphi 0, %s4598
                  %p4595 = scmp.ge.s32.totalorder %s4594, 1
                  %s4599 = sphi %s3196, %s3196
                  %s4600 = sphi %s4318, %s4318
                $region160: #{tpu_custom_call.1} parent=156 // loop_header_branch
                  %4597 = sbr.rel (%p4595) target = $region164
                $region161: #{tpu_custom_call.1} parent=156 // loop_body
                  _
                $region162: #{tpu_custom_call.1} parent=156 // loop_footer
                  %s4598 = sadd.s32 1, %s4594
                $region163: #{tpu_custom_call.1} parent=156 // loop_footer_branch
                  %4593 = sbr.rel target = $region159
                $region164: #{tpu_custom_call.1} parent=156 // loop_exit
                  _
                %s4602 = ssub.s32 16, 1
                loop: start=0, step=1, limit=1
                $region165: #{tpu_custom_call.1} parent=156 // loop_pre_header
                  _
                $region166: #{tpu_custom_call.1} parent=156 // loop_header
                  %s4604 = sphi 0, %s4608
                  %p4605 = scmp.ge.s32.totalorder %s4604, 1
                  %s4609 = sphi %s3196, %s3196
                  %s4610 = sphi %s4318, %s4318
                $region167: #{tpu_custom_call.1} parent=156 // loop_header_branch
                  %4607 = sbr.rel (%p4605) target = $region171
                $region168: #{tpu_custom_call.1} parent=156 // loop_body
                  %v4611 = vld [vmem:[%s4609] sm:%s4602]
                  %4612 = vst [vmem:[%s4610] sm:%s4602] %v4611
                  %v4613 = vld [vmem:[%s4609 + $0x4] sm:%s4602]
                  %4614 = vst [vmem:[%s4610 + $0x4] sm:%s4602] %v4613
                  %v4615 = vld [vmem:[%s4609 + $0x8] sm:%s4602]
                  %4616 = vst [vmem:[%s4610 + $0x8] sm:%s4602] %v4615
                  %v4617 = vld [vmem:[%s4609 + $0xc] sm:%s4602]
                  %4618 = vst [vmem:[%s4610 + $0xc] sm:%s4602] %v4617
                  %v4619 = vld [vmem:[%s4609 + $0x10] sm:%s4602]
                  %4620 = vst [vmem:[%s4610 + $0x10] sm:%s4602] %v4619
                  %v4621 = vld [vmem:[%s4609 + $0x14] sm:%s4602]
                  %4622 = vst [vmem:[%s4610 + $0x14] sm:%s4602] %v4621
                  %v4623 = vld [vmem:[%s4609 + $0x18] sm:%s4602]
                  %4624 = vst [vmem:[%s4610 + $0x18] sm:%s4602] %v4623
                  %v4625 = vld [vmem:[%s4609 + $0x1c] sm:%s4602]
                  %4626 = vst [vmem:[%s4610 + $0x1c] sm:%s4602] %v4625
                  %v4627 = vld [vmem:[%s4609 + $0x20] sm:%s4602]
                  %4628 = vst [vmem:[%s4610 + $0x20] sm:%s4602] %v4627
                  %v4629 = vld [vmem:[%s4609 + $0x24] sm:%s4602]
                  %4630 = vst [vmem:[%s4610 + $0x24] sm:%s4602] %v4629
                  %v4631 = vld [vmem:[%s4609 + $0x28] sm:%s4602]
                  %4632 = vst [vmem:[%s4610 + $0x28] sm:%s4602] %v4631
                  %v4633 = vld [vmem:[%s4609 + $0x2c] sm:%s4602]
                  %4634 = vst [vmem:[%s4610 + $0x2c] sm:%s4602] %v4633
                  %v4635 = vld [vmem:[%s4609 + $0x30] sm:%s4602]
                  %4636 = vst [vmem:[%s4610 + $0x30] sm:%s4602] %v4635
                  %v4637 = vld [vmem:[%s4609 + $0x34] sm:%s4602]
                  %4638 = vst [vmem:[%s4610 + $0x34] sm:%s4602] %v4637
                  %v4639 = vld [vmem:[%s4609 + $0x38] sm:%s4602]
                  %4640 = vst [vmem:[%s4610 + $0x38] sm:%s4602] %v4639
                  %v4641 = vld [vmem:[%s4609 + $0x3c] sm:%s4602]
                  %4642 = vst [vmem:[%s4610 + $0x3c] sm:%s4602] %v4641
                  %v4643 = vld [vmem:[%s4609 + $0x40] sm:%s4602]
                  %4644 = vst [vmem:[%s4610 + $0x40] sm:%s4602] %v4643
                  %v4645 = vld [vmem:[%s4609 + $0x44] sm:%s4602]
                  %4646 = vst [vmem:[%s4610 + $0x44] sm:%s4602] %v4645
                  %v4647 = vld [vmem:[%s4609 + $0x48] sm:%s4602]
                  %4648 = vst [vmem:[%s4610 + $0x48] sm:%s4602] %v4647
                  %v4649 = vld [vmem:[%s4609 + $0x4c] sm:%s4602]
                  %4650 = vst [vmem:[%s4610 + $0x4c] sm:%s4602] %v4649
                  %v4651 = vld [vmem:[%s4609 + $0x50] sm:%s4602]
                  %4652 = vst [vmem:[%s4610 + $0x50] sm:%s4602] %v4651
                  %v4653 = vld [vmem:[%s4609 + $0x54] sm:%s4602]
                  %4654 = vst [vmem:[%s4610 + $0x54] sm:%s4602] %v4653
                  %v4655 = vld [vmem:[%s4609 + $0x58] sm:%s4602]
                  %4656 = vst [vmem:[%s4610 + $0x58] sm:%s4602] %v4655
                  %v4657 = vld [vmem:[%s4609 + $0x5c] sm:%s4602]
                  %4658 = vst [vmem:[%s4610 + $0x5c] sm:%s4602] %v4657
                  %v4659 = vld [vmem:[%s4609 + $0x60] sm:%s4602]
                  %4660 = vst [vmem:[%s4610 + $0x60] sm:%s4602] %v4659
                  %v4661 = vld [vmem:[%s4609 + $0x64] sm:%s4602]
                  %4662 = vst [vmem:[%s4610 + $0x64] sm:%s4602] %v4661
                  %v4663 = vld [vmem:[%s4609 + $0x68] sm:%s4602]
                  %4664 = vst [vmem:[%s4610 + $0x68] sm:%s4602] %v4663
                  %v4665 = vld [vmem:[%s4609 + $0x6c] sm:%s4602]
                  %4666 = vst [vmem:[%s4610 + $0x6c] sm:%s4602] %v4665
                  %v4667 = vld [vmem:[%s4609 + $0x70] sm:%s4602]
                  %4668 = vst [vmem:[%s4610 + $0x70] sm:%s4602] %v4667
                  %v4669 = vld [vmem:[%s4609 + $0x74] sm:%s4602]
                  %4670 = vst [vmem:[%s4610 + $0x74] sm:%s4602] %v4669
                  %v4671 = vld [vmem:[%s4609 + $0x78] sm:%s4602]
                  %4672 = vst [vmem:[%s4610 + $0x78] sm:%s4602] %v4671
                  %v4673 = vld [vmem:[%s4609 + $0x7c] sm:%s4602]
                  %4674 = vst [vmem:[%s4610 + $0x7c] sm:%s4602] %v4673
                  %v4675 = vld [vmem:[%s4609 + $0x80] sm:%s4602]
                  %4676 = vst [vmem:[%s4610 + $0x100] sm:%s4602] %v4675
                  %v4677 = vld [vmem:[%s4609 + $0x84] sm:%s4602]
                  %4678 = vst [vmem:[%s4610 + $0x104] sm:%s4602] %v4677
                  %v4679 = vld [vmem:[%s4609 + $0x88] sm:%s4602]
                  %4680 = vst [vmem:[%s4610 + $0x108] sm:%s4602] %v4679
                  %v4681 = vld [vmem:[%s4609 + $0x8c] sm:%s4602]
                  %4682 = vst [vmem:[%s4610 + $0x10c] sm:%s4602] %v4681
                  %v4683 = vld [vmem:[%s4609 + $0x90] sm:%s4602]
                  %4684 = vst [vmem:[%s4610 + $0x110] sm:%s4602] %v4683
                  %v4685 = vld [vmem:[%s4609 + $0x94] sm:%s4602]
                  %4686 = vst [vmem:[%s4610 + $0x114] sm:%s4602] %v4685
                  %v4687 = vld [vmem:[%s4609 + $0x98] sm:%s4602]
                  %4688 = vst [vmem:[%s4610 + $0x118] sm:%s4602] %v4687
                  %v4689 = vld [vmem:[%s4609 + $0x9c] sm:%s4602]
                  %4690 = vst [vmem:[%s4610 + $0x11c] sm:%s4602] %v4689
                  %v4691 = vld [vmem:[%s4609 + $0xa0] sm:%s4602]
                  %4692 = vst [vmem:[%s4610 + $0x120] sm:%s4602] %v4691
                  %v4693 = vld [vmem:[%s4609 + $0xa4] sm:%s4602]
                  %4694 = vst [vmem:[%s4610 + $0x124] sm:%s4602] %v4693
                  %v4695 = vld [vmem:[%s4609 + $0xa8] sm:%s4602]
                  %4696 = vst [vmem:[%s4610 + $0x128] sm:%s4602] %v4695
                  %v4697 = vld [vmem:[%s4609 + $0xac] sm:%s4602]
                  %4698 = vst [vmem:[%s4610 + $0x12c] sm:%s4602] %v4697
                  %v4699 = vld [vmem:[%s4609 + $0xb0] sm:%s4602]
                  %4700 = vst [vmem:[%s4610 + $0x130] sm:%s4602] %v4699
                  %v4701 = vld [vmem:[%s4609 + $0xb4] sm:%s4602]
                  %4702 = vst [vmem:[%s4610 + $0x134] sm:%s4602] %v4701
                  %v4703 = vld [vmem:[%s4609 + $0xb8] sm:%s4602]
                  %4704 = vst [vmem:[%s4610 + $0x138] sm:%s4602] %v4703
                  %v4705 = vld [vmem:[%s4609 + $0xbc] sm:%s4602]
                  %4706 = vst [vmem:[%s4610 + $0x13c] sm:%s4602] %v4705
                  %v4707 = vld [vmem:[%s4609 + $0xc0] sm:%s4602]
                  %4708 = vst [vmem:[%s4610 + $0x140] sm:%s4602] %v4707
                  %v4709 = vld [vmem:[%s4609 + $0xc4] sm:%s4602]
                  %4710 = vst [vmem:[%s4610 + $0x144] sm:%s4602] %v4709
                  %v4711 = vld [vmem:[%s4609 + $0xc8] sm:%s4602]
                  %4712 = vst [vmem:[%s4610 + $0x148] sm:%s4602] %v4711
                  %v4713 = vld [vmem:[%s4609 + $0xcc] sm:%s4602]
                  %4714 = vst [vmem:[%s4610 + $0x14c] sm:%s4602] %v4713
                  %v4715 = vld [vmem:[%s4609 + $0xd0] sm:%s4602]
                  %4716 = vst [vmem:[%s4610 + $0x150] sm:%s4602] %v4715
                  %v4717 = vld [vmem:[%s4609 + $0xd4] sm:%s4602]
                  %4718 = vst [vmem:[%s4610 + $0x154] sm:%s4602] %v4717
                  %v4719 = vld [vmem:[%s4609 + $0xd8] sm:%s4602]
                  %4720 = vst [vmem:[%s4610 + $0x158] sm:%s4602] %v4719
                  %v4721 = vld [vmem:[%s4609 + $0xdc] sm:%s4602]
                  %4722 = vst [vmem:[%s4610 + $0x15c] sm:%s4602] %v4721
                  %v4723 = vld [vmem:[%s4609 + $0xe0] sm:%s4602]
                  %4724 = vst [vmem:[%s4610 + $0x160] sm:%s4602] %v4723
                  %v4725 = vld [vmem:[%s4609 + $0xe4] sm:%s4602]
                  %4726 = vst [vmem:[%s4610 + $0x164] sm:%s4602] %v4725
                  %v4727 = vld [vmem:[%s4609 + $0xe8] sm:%s4602]
                  %4728 = vst [vmem:[%s4610 + $0x168] sm:%s4602] %v4727
                  %v4729 = vld [vmem:[%s4609 + $0xec] sm:%s4602]
                  %4730 = vst [vmem:[%s4610 + $0x16c] sm:%s4602] %v4729
                  %v4731 = vld [vmem:[%s4609 + $0xf0] sm:%s4602]
                  %4732 = vst [vmem:[%s4610 + $0x170] sm:%s4602] %v4731
                  %v4733 = vld [vmem:[%s4609 + $0xf4] sm:%s4602]
                  %4734 = vst [vmem:[%s4610 + $0x174] sm:%s4602] %v4733
                  %v4735 = vld [vmem:[%s4609 + $0xf8] sm:%s4602]
                  %4736 = vst [vmem:[%s4610 + $0x178] sm:%s4602] %v4735
                  %v4737 = vld [vmem:[%s4609 + $0xfc] sm:%s4602]
                  %4738 = vst [vmem:[%s4610 + $0x17c] sm:%s4602] %v4737
                  %v4739 = vld [vmem:[%s4609 + $0x100] sm:%s4602]
                  %4740 = vst [vmem:[%s4610 + $0x200] sm:%s4602] %v4739
                  %v4741 = vld [vmem:[%s4609 + $0x104] sm:%s4602]
                  %4742 = vst [vmem:[%s4610 + $0x204] sm:%s4602] %v4741
                  %v4743 = vld [vmem:[%s4609 + $0x108] sm:%s4602]
                  %4744 = vst [vmem:[%s4610 + $0x208] sm:%s4602] %v4743
                  %v4745 = vld [vmem:[%s4609 + $0x10c] sm:%s4602]
                  %4746 = vst [vmem:[%s4610 + $0x20c] sm:%s4602] %v4745
                  %v4747 = vld [vmem:[%s4609 + $0x110] sm:%s4602]
                  %4748 = vst [vmem:[%s4610 + $0x210] sm:%s4602] %v4747
                  %v4749 = vld [vmem:[%s4609 + $0x114] sm:%s4602]
                  %4750 = vst [vmem:[%s4610 + $0x214] sm:%s4602] %v4749
                  %v4751 = vld [vmem:[%s4609 + $0x118] sm:%s4602]
                  %4752 = vst [vmem:[%s4610 + $0x218] sm:%s4602] %v4751
                  %v4753 = vld [vmem:[%s4609 + $0x11c] sm:%s4602]
                  %4754 = vst [vmem:[%s4610 + $0x21c] sm:%s4602] %v4753
                  %v4755 = vld [vmem:[%s4609 + $0x120] sm:%s4602]
                  %4756 = vst [vmem:[%s4610 + $0x220] sm:%s4602] %v4755
                  %v4757 = vld [vmem:[%s4609 + $0x124] sm:%s4602]
                  %4758 = vst [vmem:[%s4610 + $0x224] sm:%s4602] %v4757
                  %v4759 = vld [vmem:[%s4609 + $0x128] sm:%s4602]
                  %4760 = vst [vmem:[%s4610 + $0x228] sm:%s4602] %v4759
                  %v4761 = vld [vmem:[%s4609 + $0x12c] sm:%s4602]
                  %4762 = vst [vmem:[%s4610 + $0x22c] sm:%s4602] %v4761
                  %v4763 = vld [vmem:[%s4609 + $0x130] sm:%s4602]
                  %4764 = vst [vmem:[%s4610 + $0x230] sm:%s4602] %v4763
                  %v4765 = vld [vmem:[%s4609 + $0x134] sm:%s4602]
                  %4766 = vst [vmem:[%s4610 + $0x234] sm:%s4602] %v4765
                  %v4767 = vld [vmem:[%s4609 + $0x138] sm:%s4602]
                  %4768 = vst [vmem:[%s4610 + $0x238] sm:%s4602] %v4767
                  %v4769 = vld [vmem:[%s4609 + $0x13c] sm:%s4602]
                  %4770 = vst [vmem:[%s4610 + $0x23c] sm:%s4602] %v4769
                  %v4771 = vld [vmem:[%s4609 + $0x140] sm:%s4602]
                  %4772 = vst [vmem:[%s4610 + $0x240] sm:%s4602] %v4771
                  %v4773 = vld [vmem:[%s4609 + $0x144] sm:%s4602]
                  %4774 = vst [vmem:[%s4610 + $0x244] sm:%s4602] %v4773
                  %v4775 = vld [vmem:[%s4609 + $0x148] sm:%s4602]
                  %4776 = vst [vmem:[%s4610 + $0x248] sm:%s4602] %v4775
                  %v4777 = vld [vmem:[%s4609 + $0x14c] sm:%s4602]
                  %4778 = vst [vmem:[%s4610 + $0x24c] sm:%s4602] %v4777
                  %v4779 = vld [vmem:[%s4609 + $0x150] sm:%s4602]
                  %4780 = vst [vmem:[%s4610 + $0x250] sm:%s4602] %v4779
                  %v4781 = vld [vmem:[%s4609 + $0x154] sm:%s4602]
                  %4782 = vst [vmem:[%s4610 + $0x254] sm:%s4602] %v4781
                  %v4783 = vld [vmem:[%s4609 + $0x158] sm:%s4602]
                  %4784 = vst [vmem:[%s4610 + $0x258] sm:%s4602] %v4783
                  %v4785 = vld [vmem:[%s4609 + $0x15c] sm:%s4602]
                  %4786 = vst [vmem:[%s4610 + $0x25c] sm:%s4602] %v4785
                  %v4787 = vld [vmem:[%s4609 + $0x160] sm:%s4602]
                  %4788 = vst [vmem:[%s4610 + $0x260] sm:%s4602] %v4787
                  %v4789 = vld [vmem:[%s4609 + $0x164] sm:%s4602]
                  %4790 = vst [vmem:[%s4610 + $0x264] sm:%s4602] %v4789
                  %v4791 = vld [vmem:[%s4609 + $0x168] sm:%s4602]
                  %4792 = vst [vmem:[%s4610 + $0x268] sm:%s4602] %v4791
                  %v4793 = vld [vmem:[%s4609 + $0x16c] sm:%s4602]
                  %4794 = vst [vmem:[%s4610 + $0x26c] sm:%s4602] %v4793
                  %v4795 = vld [vmem:[%s4609 + $0x170] sm:%s4602]
                  %4796 = vst [vmem:[%s4610 + $0x270] sm:%s4602] %v4795
                  %v4797 = vld [vmem:[%s4609 + $0x174] sm:%s4602]
                  %4798 = vst [vmem:[%s4610 + $0x274] sm:%s4602] %v4797
                  %v4799 = vld [vmem:[%s4609 + $0x178] sm:%s4602]
                  %4800 = vst [vmem:[%s4610 + $0x278] sm:%s4602] %v4799
                  %v4801 = vld [vmem:[%s4609 + $0x17c] sm:%s4602]
                  %4802 = vst [vmem:[%s4610 + $0x27c] sm:%s4602] %v4801
                  %v4803 = vld [vmem:[%s4609 + $0x180] sm:%s4602]
                  %4804 = vst [vmem:[%s4610 + $0x300] sm:%s4602] %v4803
                  %v4805 = vld [vmem:[%s4609 + $0x184] sm:%s4602]
                  %4806 = vst [vmem:[%s4610 + $0x304] sm:%s4602] %v4805
                  %v4807 = vld [vmem:[%s4609 + $0x188] sm:%s4602]
                  %4808 = vst [vmem:[%s4610 + $0x308] sm:%s4602] %v4807
                  %v4809 = vld [vmem:[%s4609 + $0x18c] sm:%s4602]
                  %4810 = vst [vmem:[%s4610 + $0x30c] sm:%s4602] %v4809
                  %v4811 = vld [vmem:[%s4609 + $0x190] sm:%s4602]
                  %4812 = vst [vmem:[%s4610 + $0x310] sm:%s4602] %v4811
                  %v4813 = vld [vmem:[%s4609 + $0x194] sm:%s4602]
                  %4814 = vst [vmem:[%s4610 + $0x314] sm:%s4602] %v4813
                  %v4815 = vld [vmem:[%s4609 + $0x198] sm:%s4602]
                  %4816 = vst [vmem:[%s4610 + $0x318] sm:%s4602] %v4815
                  %v4817 = vld [vmem:[%s4609 + $0x19c] sm:%s4602]
                  %4818 = vst [vmem:[%s4610 + $0x31c] sm:%s4602] %v4817
                  %v4819 = vld [vmem:[%s4609 + $0x1a0] sm:%s4602]
                  %4820 = vst [vmem:[%s4610 + $0x320] sm:%s4602] %v4819
                  %v4821 = vld [vmem:[%s4609 + $0x1a4] sm:%s4602]
                  %4822 = vst [vmem:[%s4610 + $0x324] sm:%s4602] %v4821
                  %v4823 = vld [vmem:[%s4609 + $0x1a8] sm:%s4602]
                  %4824 = vst [vmem:[%s4610 + $0x328] sm:%s4602] %v4823
                  %v4825 = vld [vmem:[%s4609 + $0x1ac] sm:%s4602]
                  %4826 = vst [vmem:[%s4610 + $0x32c] sm:%s4602] %v4825
                  %v4827 = vld [vmem:[%s4609 + $0x1b0] sm:%s4602]
                  %4828 = vst [vmem:[%s4610 + $0x330] sm:%s4602] %v4827
                  %v4829 = vld [vmem:[%s4609 + $0x1b4] sm:%s4602]
                  %4830 = vst [vmem:[%s4610 + $0x334] sm:%s4602] %v4829
                  %v4831 = vld [vmem:[%s4609 + $0x1b8] sm:%s4602]
                  %4832 = vst [vmem:[%s4610 + $0x338] sm:%s4602] %v4831
                  %v4833 = vld [vmem:[%s4609 + $0x1bc] sm:%s4602]
                  %4834 = vst [vmem:[%s4610 + $0x33c] sm:%s4602] %v4833
                  %v4835 = vld [vmem:[%s4609 + $0x1c0] sm:%s4602]
                  %4836 = vst [vmem:[%s4610 + $0x340] sm:%s4602] %v4835
                  %v4837 = vld [vmem:[%s4609 + $0x1c4] sm:%s4602]
                  %4838 = vst [vmem:[%s4610 + $0x344] sm:%s4602] %v4837
                  %v4839 = vld [vmem:[%s4609 + $0x1c8] sm:%s4602]
                  %4840 = vst [vmem:[%s4610 + $0x348] sm:%s4602] %v4839
                  %v4841 = vld [vmem:[%s4609 + $0x1cc] sm:%s4602]
                  %4842 = vst [vmem:[%s4610 + $0x34c] sm:%s4602] %v4841
                  %v4843 = vld [vmem:[%s4609 + $0x1d0] sm:%s4602]
                  %4844 = vst [vmem:[%s4610 + $0x350] sm:%s4602] %v4843
                  %v4845 = vld [vmem:[%s4609 + $0x1d4] sm:%s4602]
                  %4846 = vst [vmem:[%s4610 + $0x354] sm:%s4602] %v4845
                  %v4847 = vld [vmem:[%s4609 + $0x1d8] sm:%s4602]
                  %4848 = vst [vmem:[%s4610 + $0x358] sm:%s4602] %v4847
                  %v4849 = vld [vmem:[%s4609 + $0x1dc] sm:%s4602]
                  %4850 = vst [vmem:[%s4610 + $0x35c] sm:%s4602] %v4849
                  %v4851 = vld [vmem:[%s4609 + $0x1e0] sm:%s4602]
                  %4852 = vst [vmem:[%s4610 + $0x360] sm:%s4602] %v4851
                  %v4853 = vld [vmem:[%s4609 + $0x1e4] sm:%s4602]
                  %4854 = vst [vmem:[%s4610 + $0x364] sm:%s4602] %v4853
                  %v4855 = vld [vmem:[%s4609 + $0x1e8] sm:%s4602]
                  %4856 = vst [vmem:[%s4610 + $0x368] sm:%s4602] %v4855
                  %v4857 = vld [vmem:[%s4609 + $0x1ec] sm:%s4602]
                  %4858 = vst [vmem:[%s4610 + $0x36c] sm:%s4602] %v4857
                  %v4859 = vld [vmem:[%s4609 + $0x1f0] sm:%s4602]
                  %4860 = vst [vmem:[%s4610 + $0x370] sm:%s4602] %v4859
                  %v4861 = vld [vmem:[%s4609 + $0x1f4] sm:%s4602]
                  %4862 = vst [vmem:[%s4610 + $0x374] sm:%s4602] %v4861
                  %v4863 = vld [vmem:[%s4609 + $0x1f8] sm:%s4602]
                  %4864 = vst [vmem:[%s4610 + $0x378] sm:%s4602] %v4863
                  %v4865 = vld [vmem:[%s4609 + $0x1fc] sm:%s4602]
                  %4866 = vst [vmem:[%s4610 + $0x37c] sm:%s4602] %v4865
                $region169: #{tpu_custom_call.1} parent=156 // loop_footer
                  %s4608 = sadd.s32 1, %s4604
                $region170: #{tpu_custom_call.1} parent=156 // loop_footer_branch
                  %4603 = sbr.rel target = $region166
                $region171: #{tpu_custom_call.1} parent=156 // loop_exit
                  _
              $region157: #{tpu_custom_call.1} parent=141 // pred_fallthru
                _
            $region142: #{tpu_custom_call.1} parent=137 // pred_fallthru
              _
            // Predicated region
            $region143: #{tpu_custom_call.1} parent=137 // pred_check
              _
            $region144: #{tpu_custom_call.1} parent=137 // pred_check_branch
              %4324 = sbr.rel (0) target = $region146
            $region145: #{tpu_custom_call.1} parent=137 // pred_region
              %s4326 = ssub.s32 16, 1
              loop: start=0, step=1, limit=1
              $region147: #{tpu_custom_call.1} parent=145 // loop_pre_header
                _
              $region148: #{tpu_custom_call.1} parent=145 // loop_header
                %s4328 = sphi 0, %s4332
                %p4329 = scmp.ge.s32.totalorder %s4328, 1
                %s4333 = sphi %s3196, %s3196
                %s4334 = sphi %s4318, %s4318
              $region149: #{tpu_custom_call.1} parent=145 // loop_header_branch
                %4331 = sbr.rel (%p4329) target = $region153
              $region150: #{tpu_custom_call.1} parent=145 // loop_body
                %v4335 = vld [vmem:[%s4333] sm:%s4326]
                %4336 = vst [vmem:[%s4334] sm:%s4326] %v4335
                %v4337 = vld [vmem:[%s4333 + $0x4] sm:%s4326]
                %4338 = vst [vmem:[%s4334 + $0x4] sm:%s4326] %v4337
                %v4339 = vld [vmem:[%s4333 + $0x8] sm:%s4326]
                %4340 = vst [vmem:[%s4334 + $0x8] sm:%s4326] %v4339
                %v4341 = vld [vmem:[%s4333 + $0xc] sm:%s4326]
                %4342 = vst [vmem:[%s4334 + $0xc] sm:%s4326] %v4341
                %v4343 = vld [vmem:[%s4333 + $0x10] sm:%s4326]
                %4344 = vst [vmem:[%s4334 + $0x10] sm:%s4326] %v4343
                %v4345 = vld [vmem:[%s4333 + $0x14] sm:%s4326]
                %4346 = vst [vmem:[%s4334 + $0x14] sm:%s4326] %v4345
                %v4347 = vld [vmem:[%s4333 + $0x18] sm:%s4326]
                %4348 = vst [vmem:[%s4334 + $0x18] sm:%s4326] %v4347
                %v4349 = vld [vmem:[%s4333 + $0x1c] sm:%s4326]
                %4350 = vst [vmem:[%s4334 + $0x1c] sm:%s4326] %v4349
                %v4351 = vld [vmem:[%s4333 + $0x20] sm:%s4326]
                %4352 = vst [vmem:[%s4334 + $0x20] sm:%s4326] %v4351
                %v4353 = vld [vmem:[%s4333 + $0x24] sm:%s4326]
                %4354 = vst [vmem:[%s4334 + $0x24] sm:%s4326] %v4353
                %v4355 = vld [vmem:[%s4333 + $0x28] sm:%s4326]
                %4356 = vst [vmem:[%s4334 + $0x28] sm:%s4326] %v4355
                %v4357 = vld [vmem:[%s4333 + $0x2c] sm:%s4326]
                %4358 = vst [vmem:[%s4334 + $0x2c] sm:%s4326] %v4357
                %v4359 = vld [vmem:[%s4333 + $0x30] sm:%s4326]
                %4360 = vst [vmem:[%s4334 + $0x30] sm:%s4326] %v4359
                %v4361 = vld [vmem:[%s4333 + $0x34] sm:%s4326]
                %4362 = vst [vmem:[%s4334 + $0x34] sm:%s4326] %v4361
                %v4363 = vld [vmem:[%s4333 + $0x38] sm:%s4326]
                %4364 = vst [vmem:[%s4334 + $0x38] sm:%s4326] %v4363
                %v4365 = vld [vmem:[%s4333 + $0x3c] sm:%s4326]
                %4366 = vst [vmem:[%s4334 + $0x3c] sm:%s4326] %v4365
                %v4367 = vld [vmem:[%s4333 + $0x40] sm:%s4326]
                %4368 = vst [vmem:[%s4334 + $0x40] sm:%s4326] %v4367
                %v4369 = vld [vmem:[%s4333 + $0x44] sm:%s4326]
                %4370 = vst [vmem:[%s4334 + $0x44] sm:%s4326] %v4369
                %v4371 = vld [vmem:[%s4333 + $0x48] sm:%s4326]
                %4372 = vst [vmem:[%s4334 + $0x48] sm:%s4326] %v4371
                %v4373 = vld [vmem:[%s4333 + $0x4c] sm:%s4326]
                %4374 = vst [vmem:[%s4334 + $0x4c] sm:%s4326] %v4373
                %v4375 = vld [vmem:[%s4333 + $0x50] sm:%s4326]
                %4376 = vst [vmem:[%s4334 + $0x50] sm:%s4326] %v4375
                %v4377 = vld [vmem:[%s4333 + $0x54] sm:%s4326]
                %4378 = vst [vmem:[%s4334 + $0x54] sm:%s4326] %v4377
                %v4379 = vld [vmem:[%s4333 + $0x58] sm:%s4326]
                %4380 = vst [vmem:[%s4334 + $0x58] sm:%s4326] %v4379
                %v4381 = vld [vmem:[%s4333 + $0x5c] sm:%s4326]
                %4382 = vst [vmem:[%s4334 + $0x5c] sm:%s4326] %v4381
                %v4383 = vld [vmem:[%s4333 + $0x60] sm:%s4326]
                %4384 = vst [vmem:[%s4334 + $0x60] sm:%s4326] %v4383
                %v4385 = vld [vmem:[%s4333 + $0x64] sm:%s4326]
                %4386 = vst [vmem:[%s4334 + $0x64] sm:%s4326] %v4385
                %v4387 = vld [vmem:[%s4333 + $0x68] sm:%s4326]
                %4388 = vst [vmem:[%s4334 + $0x68] sm:%s4326] %v4387
                %v4389 = vld [vmem:[%s4333 + $0x6c] sm:%s4326]
                %4390 = vst [vmem:[%s4334 + $0x6c] sm:%s4326] %v4389
                %v4391 = vld [vmem:[%s4333 + $0x70] sm:%s4326]
                %4392 = vst [vmem:[%s4334 + $0x70] sm:%s4326] %v4391
                %v4393 = vld [vmem:[%s4333 + $0x74] sm:%s4326]
                %4394 = vst [vmem:[%s4334 + $0x74] sm:%s4326] %v4393
                %v4395 = vld [vmem:[%s4333 + $0x78] sm:%s4326]
                %4396 = vst [vmem:[%s4334 + $0x78] sm:%s4326] %v4395
                %v4397 = vld [vmem:[%s4333 + $0x7c] sm:%s4326]
                %4398 = vst [vmem:[%s4334 + $0x7c] sm:%s4326] %v4397
                %v4399 = vld [vmem:[%s4333 + $0x80] sm:%s4326]
                %4400 = vst [vmem:[%s4334 + $0x100] sm:%s4326] %v4399
                %v4401 = vld [vmem:[%s4333 + $0x84] sm:%s4326]
                %4402 = vst [vmem:[%s4334 + $0x104] sm:%s4326] %v4401
                %v4403 = vld [vmem:[%s4333 + $0x88] sm:%s4326]
                %4404 = vst [vmem:[%s4334 + $0x108] sm:%s4326] %v4403
                %v4405 = vld [vmem:[%s4333 + $0x8c] sm:%s4326]
                %4406 = vst [vmem:[%s4334 + $0x10c] sm:%s4326] %v4405
                %v4407 = vld [vmem:[%s4333 + $0x90] sm:%s4326]
                %4408 = vst [vmem:[%s4334 + $0x110] sm:%s4326] %v4407
                %v4409 = vld [vmem:[%s4333 + $0x94] sm:%s4326]
                %4410 = vst [vmem:[%s4334 + $0x114] sm:%s4326] %v4409
                %v4411 = vld [vmem:[%s4333 + $0x98] sm:%s4326]
                %4412 = vst [vmem:[%s4334 + $0x118] sm:%s4326] %v4411
                %v4413 = vld [vmem:[%s4333 + $0x9c] sm:%s4326]
                %4414 = vst [vmem:[%s4334 + $0x11c] sm:%s4326] %v4413
                %v4415 = vld [vmem:[%s4333 + $0xa0] sm:%s4326]
                %4416 = vst [vmem:[%s4334 + $0x120] sm:%s4326] %v4415
                %v4417 = vld [vmem:[%s4333 + $0xa4] sm:%s4326]
                %4418 = vst [vmem:[%s4334 + $0x124] sm:%s4326] %v4417
                %v4419 = vld [vmem:[%s4333 + $0xa8] sm:%s4326]
                %4420 = vst [vmem:[%s4334 + $0x128] sm:%s4326] %v4419
                %v4421 = vld [vmem:[%s4333 + $0xac] sm:%s4326]
                %4422 = vst [vmem:[%s4334 + $0x12c] sm:%s4326] %v4421
                %v4423 = vld [vmem:[%s4333 + $0xb0] sm:%s4326]
                %4424 = vst [vmem:[%s4334 + $0x130] sm:%s4326] %v4423
                %v4425 = vld [vmem:[%s4333 + $0xb4] sm:%s4326]
                %4426 = vst [vmem:[%s4334 + $0x134] sm:%s4326] %v4425
                %v4427 = vld [vmem:[%s4333 + $0xb8] sm:%s4326]
                %4428 = vst [vmem:[%s4334 + $0x138] sm:%s4326] %v4427
                %v4429 = vld [vmem:[%s4333 + $0xbc] sm:%s4326]
                %4430 = vst [vmem:[%s4334 + $0x13c] sm:%s4326] %v4429
                %v4431 = vld [vmem:[%s4333 + $0xc0] sm:%s4326]
                %4432 = vst [vmem:[%s4334 + $0x140] sm:%s4326] %v4431
                %v4433 = vld [vmem:[%s4333 + $0xc4] sm:%s4326]
                %4434 = vst [vmem:[%s4334 + $0x144] sm:%s4326] %v4433
                %v4435 = vld [vmem:[%s4333 + $0xc8] sm:%s4326]
                %4436 = vst [vmem:[%s4334 + $0x148] sm:%s4326] %v4435
                %v4437 = vld [vmem:[%s4333 + $0xcc] sm:%s4326]
                %4438 = vst [vmem:[%s4334 + $0x14c] sm:%s4326] %v4437
                %v4439 = vld [vmem:[%s4333 + $0xd0] sm:%s4326]
                %4440 = vst [vmem:[%s4334 + $0x150] sm:%s4326] %v4439
                %v4441 = vld [vmem:[%s4333 + $0xd4] sm:%s4326]
                %4442 = vst [vmem:[%s4334 + $0x154] sm:%s4326] %v4441
                %v4443 = vld [vmem:[%s4333 + $0xd8] sm:%s4326]
                %4444 = vst [vmem:[%s4334 + $0x158] sm:%s4326] %v4443
                %v4445 = vld [vmem:[%s4333 + $0xdc] sm:%s4326]
                %4446 = vst [vmem:[%s4334 + $0x15c] sm:%s4326] %v4445
                %v4447 = vld [vmem:[%s4333 + $0xe0] sm:%s4326]
                %4448 = vst [vmem:[%s4334 + $0x160] sm:%s4326] %v4447
                %v4449 = vld [vmem:[%s4333 + $0xe4] sm:%s4326]
                %4450 = vst [vmem:[%s4334 + $0x164] sm:%s4326] %v4449
                %v4451 = vld [vmem:[%s4333 + $0xe8] sm:%s4326]
                %4452 = vst [vmem:[%s4334 + $0x168] sm:%s4326] %v4451
                %v4453 = vld [vmem:[%s4333 + $0xec] sm:%s4326]
                %4454 = vst [vmem:[%s4334 + $0x16c] sm:%s4326] %v4453
                %v4455 = vld [vmem:[%s4333 + $0xf0] sm:%s4326]
                %4456 = vst [vmem:[%s4334 + $0x170] sm:%s4326] %v4455
                %v4457 = vld [vmem:[%s4333 + $0xf4] sm:%s4326]
                %4458 = vst [vmem:[%s4334 + $0x174] sm:%s4326] %v4457
                %v4459 = vld [vmem:[%s4333 + $0xf8] sm:%s4326]
                %4460 = vst [vmem:[%s4334 + $0x178] sm:%s4326] %v4459
                %v4461 = vld [vmem:[%s4333 + $0xfc] sm:%s4326]
                %4462 = vst [vmem:[%s4334 + $0x17c] sm:%s4326] %v4461
                %v4463 = vld [vmem:[%s4333 + $0x100] sm:%s4326]
                %4464 = vst [vmem:[%s4334 + $0x200] sm:%s4326] %v4463
                %v4465 = vld [vmem:[%s4333 + $0x104] sm:%s4326]
                %4466 = vst [vmem:[%s4334 + $0x204] sm:%s4326] %v4465
                %v4467 = vld [vmem:[%s4333 + $0x108] sm:%s4326]
                %4468 = vst [vmem:[%s4334 + $0x208] sm:%s4326] %v4467
                %v4469 = vld [vmem:[%s4333 + $0x10c] sm:%s4326]
                %4470 = vst [vmem:[%s4334 + $0x20c] sm:%s4326] %v4469
                %v4471 = vld [vmem:[%s4333 + $0x110] sm:%s4326]
                %4472 = vst [vmem:[%s4334 + $0x210] sm:%s4326] %v4471
                %v4473 = vld [vmem:[%s4333 + $0x114] sm:%s4326]
                %4474 = vst [vmem:[%s4334 + $0x214] sm:%s4326] %v4473
                %v4475 = vld [vmem:[%s4333 + $0x118] sm:%s4326]
                %4476 = vst [vmem:[%s4334 + $0x218] sm:%s4326] %v4475
                %v4477 = vld [vmem:[%s4333 + $0x11c] sm:%s4326]
                %4478 = vst [vmem:[%s4334 + $0x21c] sm:%s4326] %v4477
                %v4479 = vld [vmem:[%s4333 + $0x120] sm:%s4326]
                %4480 = vst [vmem:[%s4334 + $0x220] sm:%s4326] %v4479
                %v4481 = vld [vmem:[%s4333 + $0x124] sm:%s4326]
                %4482 = vst [vmem:[%s4334 + $0x224] sm:%s4326] %v4481
                %v4483 = vld [vmem:[%s4333 + $0x128] sm:%s4326]
                %4484 = vst [vmem:[%s4334 + $0x228] sm:%s4326] %v4483
                %v4485 = vld [vmem:[%s4333 + $0x12c] sm:%s4326]
                %4486 = vst [vmem:[%s4334 + $0x22c] sm:%s4326] %v4485
                %v4487 = vld [vmem:[%s4333 + $0x130] sm:%s4326]
                %4488 = vst [vmem:[%s4334 + $0x230] sm:%s4326] %v4487
                %v4489 = vld [vmem:[%s4333 + $0x134] sm:%s4326]
                %4490 = vst [vmem:[%s4334 + $0x234] sm:%s4326] %v4489
                %v4491 = vld [vmem:[%s4333 + $0x138] sm:%s4326]
                %4492 = vst [vmem:[%s4334 + $0x238] sm:%s4326] %v4491
                %v4493 = vld [vmem:[%s4333 + $0x13c] sm:%s4326]
                %4494 = vst [vmem:[%s4334 + $0x23c] sm:%s4326] %v4493
                %v4495 = vld [vmem:[%s4333 + $0x140] sm:%s4326]
                %4496 = vst [vmem:[%s4334 + $0x240] sm:%s4326] %v4495
                %v4497 = vld [vmem:[%s4333 + $0x144] sm:%s4326]
                %4498 = vst [vmem:[%s4334 + $0x244] sm:%s4326] %v4497
                %v4499 = vld [vmem:[%s4333 + $0x148] sm:%s4326]
                %4500 = vst [vmem:[%s4334 + $0x248] sm:%s4326] %v4499
                %v4501 = vld [vmem:[%s4333 + $0x14c] sm:%s4326]
                %4502 = vst [vmem:[%s4334 + $0x24c] sm:%s4326] %v4501
                %v4503 = vld [vmem:[%s4333 + $0x150] sm:%s4326]
                %4504 = vst [vmem:[%s4334 + $0x250] sm:%s4326] %v4503
                %v4505 = vld [vmem:[%s4333 + $0x154] sm:%s4326]
                %4506 = vst [vmem:[%s4334 + $0x254] sm:%s4326] %v4505
                %v4507 = vld [vmem:[%s4333 + $0x158] sm:%s4326]
                %4508 = vst [vmem:[%s4334 + $0x258] sm:%s4326] %v4507
                %v4509 = vld [vmem:[%s4333 + $0x15c] sm:%s4326]
                %4510 = vst [vmem:[%s4334 + $0x25c] sm:%s4326] %v4509
                %v4511 = vld [vmem:[%s4333 + $0x160] sm:%s4326]
                %4512 = vst [vmem:[%s4334 + $0x260] sm:%s4326] %v4511
                %v4513 = vld [vmem:[%s4333 + $0x164] sm:%s4326]
                %4514 = vst [vmem:[%s4334 + $0x264] sm:%s4326] %v4513
                %v4515 = vld [vmem:[%s4333 + $0x168] sm:%s4326]
                %4516 = vst [vmem:[%s4334 + $0x268] sm:%s4326] %v4515
                %v4517 = vld [vmem:[%s4333 + $0x16c] sm:%s4326]
                %4518 = vst [vmem:[%s4334 + $0x26c] sm:%s4326] %v4517
                %v4519 = vld [vmem:[%s4333 + $0x170] sm:%s4326]
                %4520 = vst [vmem:[%s4334 + $0x270] sm:%s4326] %v4519
                %v4521 = vld [vmem:[%s4333 + $0x174] sm:%s4326]
                %4522 = vst [vmem:[%s4334 + $0x274] sm:%s4326] %v4521
                %v4523 = vld [vmem:[%s4333 + $0x178] sm:%s4326]
                %4524 = vst [vmem:[%s4334 + $0x278] sm:%s4326] %v4523
                %v4525 = vld [vmem:[%s4333 + $0x17c] sm:%s4326]
                %4526 = vst [vmem:[%s4334 + $0x27c] sm:%s4326] %v4525
                %v4527 = vld [vmem:[%s4333 + $0x180] sm:%s4326]
                %4528 = vst [vmem:[%s4334 + $0x300] sm:%s4326] %v4527
                %v4529 = vld [vmem:[%s4333 + $0x184] sm:%s4326]
                %4530 = vst [vmem:[%s4334 + $0x304] sm:%s4326] %v4529
                %v4531 = vld [vmem:[%s4333 + $0x188] sm:%s4326]
                %4532 = vst [vmem:[%s4334 + $0x308] sm:%s4326] %v4531
                %v4533 = vld [vmem:[%s4333 + $0x18c] sm:%s4326]
                %4534 = vst [vmem:[%s4334 + $0x30c] sm:%s4326] %v4533
                %v4535 = vld [vmem:[%s4333 + $0x190] sm:%s4326]
                %4536 = vst [vmem:[%s4334 + $0x310] sm:%s4326] %v4535
                %v4537 = vld [vmem:[%s4333 + $0x194] sm:%s4326]
                %4538 = vst [vmem:[%s4334 + $0x314] sm:%s4326] %v4537
                %v4539 = vld [vmem:[%s4333 + $0x198] sm:%s4326]
                %4540 = vst [vmem:[%s4334 + $0x318] sm:%s4326] %v4539
                %v4541 = vld [vmem:[%s4333 + $0x19c] sm:%s4326]
                %4542 = vst [vmem:[%s4334 + $0x31c] sm:%s4326] %v4541
                %v4543 = vld [vmem:[%s4333 + $0x1a0] sm:%s4326]
                %4544 = vst [vmem:[%s4334 + $0x320] sm:%s4326] %v4543
                %v4545 = vld [vmem:[%s4333 + $0x1a4] sm:%s4326]
                %4546 = vst [vmem:[%s4334 + $0x324] sm:%s4326] %v4545
                %v4547 = vld [vmem:[%s4333 + $0x1a8] sm:%s4326]
                %4548 = vst [vmem:[%s4334 + $0x328] sm:%s4326] %v4547
                %v4549 = vld [vmem:[%s4333 + $0x1ac] sm:%s4326]
                %4550 = vst [vmem:[%s4334 + $0x32c] sm:%s4326] %v4549
                %v4551 = vld [vmem:[%s4333 + $0x1b0] sm:%s4326]
                %4552 = vst [vmem:[%s4334 + $0x330] sm:%s4326] %v4551
                %v4553 = vld [vmem:[%s4333 + $0x1b4] sm:%s4326]
                %4554 = vst [vmem:[%s4334 + $0x334] sm:%s4326] %v4553
                %v4555 = vld [vmem:[%s4333 + $0x1b8] sm:%s4326]
                %4556 = vst [vmem:[%s4334 + $0x338] sm:%s4326] %v4555
                %v4557 = vld [vmem:[%s4333 + $0x1bc] sm:%s4326]
                %4558 = vst [vmem:[%s4334 + $0x33c] sm:%s4326] %v4557
                %v4559 = vld [vmem:[%s4333 + $0x1c0] sm:%s4326]
                %4560 = vst [vmem:[%s4334 + $0x340] sm:%s4326] %v4559
                %v4561 = vld [vmem:[%s4333 + $0x1c4] sm:%s4326]
                %4562 = vst [vmem:[%s4334 + $0x344] sm:%s4326] %v4561
                %v4563 = vld [vmem:[%s4333 + $0x1c8] sm:%s4326]
                %4564 = vst [vmem:[%s4334 + $0x348] sm:%s4326] %v4563
                %v4565 = vld [vmem:[%s4333 + $0x1cc] sm:%s4326]
                %4566 = vst [vmem:[%s4334 + $0x34c] sm:%s4326] %v4565
                %v4567 = vld [vmem:[%s4333 + $0x1d0] sm:%s4326]
                %4568 = vst [vmem:[%s4334 + $0x350] sm:%s4326] %v4567
                %v4569 = vld [vmem:[%s4333 + $0x1d4] sm:%s4326]
                %4570 = vst [vmem:[%s4334 + $0x354] sm:%s4326] %v4569
                %v4571 = vld [vmem:[%s4333 + $0x1d8] sm:%s4326]
                %4572 = vst [vmem:[%s4334 + $0x358] sm:%s4326] %v4571
                %v4573 = vld [vmem:[%s4333 + $0x1dc] sm:%s4326]
                %4574 = vst [vmem:[%s4334 + $0x35c] sm:%s4326] %v4573
                %v4575 = vld [vmem:[%s4333 + $0x1e0] sm:%s4326]
                %4576 = vst [vmem:[%s4334 + $0x360] sm:%s4326] %v4575
                %v4577 = vld [vmem:[%s4333 + $0x1e4] sm:%s4326]
                %4578 = vst [vmem:[%s4334 + $0x364] sm:%s4326] %v4577
                %v4579 = vld [vmem:[%s4333 + $0x1e8] sm:%s4326]
                %4580 = vst [vmem:[%s4334 + $0x368] sm:%s4326] %v4579
                %v4581 = vld [vmem:[%s4333 + $0x1ec] sm:%s4326]
                %4582 = vst [vmem:[%s4334 + $0x36c] sm:%s4326] %v4581
                %v4583 = vld [vmem:[%s4333 + $0x1f0] sm:%s4326]
                %4584 = vst [vmem:[%s4334 + $0x370] sm:%s4326] %v4583
                %v4585 = vld [vmem:[%s4333 + $0x1f4] sm:%s4326]
                %4586 = vst [vmem:[%s4334 + $0x374] sm:%s4326] %v4585
                %v4587 = vld [vmem:[%s4333 + $0x1f8] sm:%s4326]
                %4588 = vst [vmem:[%s4334 + $0x378] sm:%s4326] %v4587
                %v4589 = vld [vmem:[%s4333 + $0x1fc] sm:%s4326]
                %4590 = vst [vmem:[%s4334 + $0x37c] sm:%s4326] %v4589
              $region151: #{tpu_custom_call.1} parent=145 // loop_footer
                %s4332 = sadd.s32 1, %s4328
              $region152: #{tpu_custom_call.1} parent=145 // loop_footer_branch
                %4327 = sbr.rel target = $region148
              $region153: #{tpu_custom_call.1} parent=145 // loop_exit
                _
            $region146: #{tpu_custom_call.1} parent=137 // pred_fallthru
              _
          $region138: #{tpu_custom_call.1} parent=133 // pred_fallthru
            _
          %4867 = vnop
        $region134: #{tpu_custom_call.1} parent=47 // pred_fallthru
          _
      $region48: #{tpu_custom_call.1} parent=5 // pred_fallthru
        _
      %p4868 = scmp.le.s32.totalorder 2, %s16
      // Predicated region
      $region172: #{tpu_custom_call.1} parent=5 // pred_check
        %p4869 = pneg %p4868
      $region173: #{tpu_custom_call.1} parent=5 // pred_check_branch
        %4871 = sbr.rel (%p4869) target = $region175
      $region174: #{tpu_custom_call.1} parent=5 // pred_region
        %s4872 = ssub.s32 %s16, 2
        // Predicated region
        $region176: #{tpu_custom_call.1} parent=174 // pred_check
          %p4873 = pneg %p213
        $region177: #{tpu_custom_call.1} parent=174 // pred_check_branch
          %4875 = sbr.rel (%p4873) target = $region179
        $region178: #{tpu_custom_call.1} parent=174 // pred_region
          %s4876 = sand.u32 %s198, 1
          %s4877 = sand.u32 %s198, 1
          %s4878 = smul.addr %s4877, 512
          %s4879 = scalar_lea.vmem [#allocation2], %s4878
        $region179: #{tpu_custom_call.1} parent=174 // pred_fallthru
          _
        // Predicated region
        $region180: #{tpu_custom_call.1} parent=174 // pred_check
          %p4880 = pneg %p241
        $region181: #{tpu_custom_call.1} parent=174 // pred_check_branch
          %4882 = sbr.rel (%p4880) target = $region183
        $region182: #{tpu_custom_call.1} parent=174 // pred_region
          %s4883 = sand.u32 %s226, 1
          %s4884 = sand.u32 %s226, 1
          %s4885 = smul.addr %s4884, 512
          %s4886 = scalar_lea.vmem [#allocation3], %s4885
        $region183: #{tpu_custom_call.1} parent=174 // pred_fallthru
          _
        // Predicated region
        $region184: #{tpu_custom_call.1} parent=174 // pred_check
          %p4887 = pneg %p269
        $region185: #{tpu_custom_call.1} parent=174 // pred_check_branch
          %4889 = sbr.rel (%p4887) target = $region187
        $region186: #{tpu_custom_call.1} parent=174 // pred_region
          %s4890 = sand.u32 %s254, 1
          %s4891 = sand.u32 %s254, 1
          %s4892 = smul.addr %s4891, 512
          %s4893 = scalar_lea.vmem [#allocation4], %s4892
        $region187: #{tpu_custom_call.1} parent=174 // pred_fallthru
          _
      $region175: #{tpu_custom_call.1} parent=5 // pred_fallthru
        _
    $region6: #{tpu_custom_call.1} parent=1 // loop_footer
      %s20 = sadd.s32 1, %s16
    $region7: #{tpu_custom_call.1} parent=1 // loop_footer_branch
      %15 = sbr.rel target = $region3
    $region8: #{tpu_custom_call.1} parent=1 // loop_exit
      _

</llo_original>
